<compile_context>
chip_gen: v7x
topology: tpu7x:2x2x1
jax: 0.10.0
libtpu: 0.0.40
codegen_flags: <defaults>
</compile_context>

<pallas_src>
import numpy as np
import jax
import jax.numpy as jnp
from jax.experimental import pallas as pl
from jax.experimental.pallas import tpu as pltpu

C_IN, C_MID = 48, 288
H_IN = W_IN = 14
KH = KW = 5
STRIDE = 2
PAD = 2
H_OUT = (H_IN + 2 * PAD - KH) // STRIDE + 1     # 7
EPS = 1e-5
N_PIX = H_IN * W_IN                             # 196 real pixels (N=1) for BN stats

QH = (H_IN + 2 * PAD) // 2                      # 9: quadrant side (18x18 padded grid / 2)
Q_ROWS = QH * QH                                # 81 valid rows per quadrant
QP = 88                                         # quadrant row stride (>= 83 reads, mult. of 8)
M_TOT = 4 * QP                                  # 352 scratch rows (4 parity quadrants)
ACC_ROWS = 64                                   # 7*9 = 63 useful accumulator rows, padded to 64


# ---------------------------------------------------------------------------
# Fused kernel (single invocation, no grid):
#   pad + quadrant-scatter (constant 0/1 matrix @ MXU) -> 1x1 conv (MXU) ->
#   training-mode BN + ReLU -> depthwise 5x5 stride 2 as 25 slab FMAs.
# ---------------------------------------------------------------------------
def fused_kernel(xt_ref, s_ref, mask_ref, w1_ref, g_ref, b_ref, wdw_ref,
                 o_ref, y_ref):
    # --- pad + quadrant scatter + 1x1 conv, all on the MXU (bf16 in, f32 acc) --
    x_bf = xt_ref[...].astype(jnp.bfloat16)                       # (196, 48)
    xq = jnp.dot(s_ref[...], x_bf,
                 preferred_element_type=jnp.float32)              # (352, 48)
    xq = xq.astype(jnp.bfloat16)                                  # exact: 0/1 scatter of bf16 values
    y = jnp.dot(xq, w1_ref[...],
                preferred_element_type=jnp.float32)               # (352, 288)

    # --- BatchNorm (training-mode batch stats), single reduction pass ---------
    # Non-real rows of the scatter output are exact zeros -> they drop out of
    # the sums; divide by the number of real pixels.
    inv_n = jnp.float32(1.0 / N_PIX)
    mean = jnp.sum(y, axis=0, keepdims=True) * inv_n              # (1, 288)
    ex2 = jnp.sum(y * y, axis=0, keepdims=True) * inv_n
    var = jnp.maximum(ex2 - mean * mean, 0.0)                     # biased variance
    scale = g_ref[...] * jax.lax.rsqrt(var + EPS)                 # gamma folded
    shift = b_ref[...] - mean * scale                             # beta folded
    # normalize + affine + ReLU; re-zero the padding rows so the depthwise conv
    # sees zero padding of the ReLU output (PyTorch semantics).
    y_ref[...] = jnp.maximum(y * scale + shift, 0.0) * mask_ref[...]

    # --- depthwise 5x5, stride 2, pad 2: 25 contiguous (64, 288) slab FMAs ----
    # Quadrant (kh%2, kw%2) holds the matching row/col parity of the padded
    # grid; within it, tap (kh,kw) is the contiguous slab starting at
    # (kh//2)*9 + (kw//2).  Accumulator row index = oh*9 + j; columns j<7 are
    # the valid output columns (extracted by the wrapper), j>=7 is discarded.
    acc = jnp.zeros((ACC_ROWS, C_MID), jnp.float32)
    for kh in range(KH):
        for kw in range(KW):
            quad = 2 * (kh % 2) + (kw % 2)
            start = quad * QP + (kh // 2) * QH + (kw // 2)
            slab = y_ref[pl.ds(start, ACC_ROWS), :]               # (64, 288)
            acc = acc + slab * wdw_ref[pl.ds(kh * KW + kw, 1), :]
    o_ref[...] = acc                                              # one full aligned store


# ---------------------------------------------------------------------------
# One-time parameter / constant prep (outside the hot path).
# ---------------------------------------------------------------------------
def prepare_params(w1, gamma, beta, w_dw):
    # Constant scatter matrix S: (quadrant-packed padded row d) <- (real pixel p)
    # and the matching real-row mask.
    s = np.zeros((M_TOT, N_PIX), np.float32)
    mask = np.zeros((M_TOT, 1), np.float32)
    for pr in range(2):
        for pc in range(2):
            quad = 2 * pr + pc
            for r in range(QH):
                for c in range(QH):
                    hp, wp = 2 * r + pr, 2 * c + pc               # padded coords
                    d = quad * QP + r * QH + c
                    if PAD <= hp < PAD + H_IN and PAD <= wp < PAD + W_IN:
                        s[d, (hp - PAD) * W_IN + (wp - PAD)] = 1.0
                        mask[d, 0] = 1.0
    return (jnp.asarray(s, jnp.bfloat16),                         # (352, 196)
            jnp.asarray(mask, jnp.float32),                       # (352, 1)
            w1.astype(jnp.bfloat16),                              # (48, 288)
            gamma.reshape(1, C_MID),                              # (1, 288)
            beta.reshape(1, C_MID),                               # (1, 288)
            w_dw.reshape(KH * KW, C_MID))                         # (25, 288)


# ---------------------------------------------------------------------------
# Wrapper: exactly one cheap XLA op on each side of one fused pallas_call.
# ---------------------------------------------------------------------------
def model_forward(x_nchw, params):
    s, mask, w1_bf, g, b, wdw = params
    assert x_nchw.shape == (1, C_IN, H_IN, W_IN)

    # Input glue (one op): NCHW (1,48,14,14) -> pixel-major (196, 48).
    xt = jnp.transpose(x_nchw.reshape(C_IN, N_PIX))

    out64 = pl.pallas_call(
        fused_kernel,
        out_shape=jax.ShapeDtypeStruct((ACC_ROWS, C_MID), jnp.float32),
        scratch_shapes=[pltpu.VMEM((M_TOT, C_MID), jnp.float32)],
    )(xt, s, mask, w1_bf, g, b, wdw)

    # Output glue (one op): rows are oh*9 + j; keep j < 7 and go back to NCHW.
    out = out64[:H_OUT * QH].reshape(H_OUT, QH, C_MID)[:, :H_OUT, :]   # (7,7,288)
    return jnp.transpose(out, (2, 0, 1)).reshape(1, C_MID, H_OUT, H_OUT)


# ---------------------------------------------------------------------------
# Pure-JAX f32 reference (for correctness check)
# ---------------------------------------------------------------------------
def reference(x_nchw, w1, gamma, beta, w_dw):
    w1_oihw = jnp.transpose(w1)[:, :, None, None]                 # (288,48,1,1)
    y = jax.lax.conv_general_dilated(
        x_nchw, w1_oihw, window_strides=(1, 1), padding='VALID',
        dimension_numbers=('NCHW', 'OIHW', 'NCHW'))
    mean = y.mean(axis=(0, 2, 3), keepdims=True)
    var = ((y - mean) ** 2).mean(axis=(0, 2, 3), keepdims=True)
    y = (y - mean) * jax.lax.rsqrt(var + EPS)
    y = y * gamma[None, :, None, None] + beta[None, :, None, None]
    y = jnp.maximum(y, 0.0)
    wd = jnp.transpose(w_dw, (2, 0, 1))[:, None, :, :]            # (288,1,5,5)
    return jax.lax.conv_general_dilated(
        y, wd, window_strides=(STRIDE, STRIDE),
        padding=((PAD, PAD), (PAD, PAD)),
        dimension_numbers=('NCHW', 'OIHW', 'NCHW'),
        feature_group_count=C_MID)


if __name__ == "__main__":
    key = jax.random.PRNGKey(0)
    k1, k2, k3, k4, k5 = jax.random.split(key, 5)

    # Input matching the module's declared shape [1, 48, 14, 14]
    x = jax.random.normal(k1, (1, C_IN, H_IN, W_IN), dtype=jnp.float32)

    # Deterministic synthetic parameters (shapes per the module __init__)
    w1 = 0.1 * jax.random.normal(k2, (C_IN, C_MID), dtype=jnp.float32)      # 1x1 conv (in,out)
    gamma = 1.0 + 0.1 * jax.random.normal(k3, (C_MID,), dtype=jnp.float32)
    beta = 0.1 * jax.random.normal(k4, (C_MID,), dtype=jnp.float32)
    w_dw = 0.1 * jax.random.normal(k5, (KH, KW, C_MID), dtype=jnp.float32)  # depthwise (kh,kw,c)

    params = prepare_params(w1, gamma, beta, w_dw)

    fwd = jax.jit(model_forward)
    out = jax.block_until_ready(fwd(x, params))
    assert out.shape == (1, C_MID, H_OUT, H_OUT), out.shape

    ref = reference(x, w1, gamma, beta, w_dw)
    max_err = float(jnp.max(jnp.abs(out - ref)))
    # bf16 MXU inputs (f32 accumulation / stats) -> slightly relaxed tolerance.
    assert jnp.allclose(out, ref, atol=2e-2, rtol=2e-2), max_err

    print("KERNEL_OK")
</pallas_src>

<mosaic_0001>
module attributes {stable_mosaic.version = 11 : i64} {
  func.func @fused_kernel(%arg0: memref<196x48xf32, #tpu.memory_space<vmem>>, %arg1: memref<352x196xbf16, #tpu.memory_space<vmem>>, %arg2: memref<352x1xf32, #tpu.memory_space<vmem>>, %arg3: memref<48x288xbf16, #tpu.memory_space<vmem>>, %arg4: memref<1x288xf32, #tpu.memory_space<vmem>>, %arg5: memref<1x288xf32, #tpu.memory_space<vmem>>, %arg6: memref<25x288xf32, #tpu.memory_space<vmem>>, %arg7: memref<64x288xf32, #tpu.memory_space<vmem>>, %arg8: memref<352x288xf32, #tpu.memory_space<vmem>>) attributes {dimension_semantics = [], scalar_prefetch = 0 : i64, scratch_operands = 1 : i64, tpu.core_type = #tpu.core_type<tc>} {
    %c0 = arith.constant 0 : index
    %c0_0 = arith.constant 0 : index
    %0 = vector.load %arg0[%c0, %c0_0] : memref<196x48xf32, #tpu.memory_space<vmem>>, vector<196x48xf32>
    %1 = arith.truncf %0 : vector<196x48xf32> to vector<196x48xbf16>
    %c0_1 = arith.constant 0 : index
    %c0_2 = arith.constant 0 : index
    %2 = vector.load %arg1[%c0_1, %c0_2] : memref<352x196xbf16, #tpu.memory_space<vmem>>, vector<352x196xbf16>
    %cst = arith.constant dense<0.000000e+00> : vector<352x48xf32>
    %3 = tpu.matmul %2, %1, %cst {dimension_numbers = #tpu.dot_dimension_numbers<[1], [0], [0], [1], [0, 0, 1, 1], [], []>} : vector<352x196xbf16>, vector<196x48xbf16>, vector<352x48xf32> -> vector<352x48xf32>
    %4 = arith.truncf %3 : vector<352x48xf32> to vector<352x48xbf16>
    %c0_3 = arith.constant 0 : index
    %c0_4 = arith.constant 0 : index
    %5 = vector.load %arg3[%c0_3, %c0_4] : memref<48x288xbf16, #tpu.memory_space<vmem>>, vector<48x288xbf16>
    %cst_5 = arith.constant dense<0.000000e+00> : vector<352x288xf32>
    %6 = tpu.matmul %4, %5, %cst_5 {dimension_numbers = #tpu.dot_dimension_numbers<[1], [0], [0], [1], [0, 0, 1, 1], [], []>} : vector<352x48xbf16>, vector<48x288xbf16>, vector<352x288xf32> -> vector<352x288xf32>
    %cst_6 = arith.constant dense<0.000000e+00> : vector<288xf32>
    %7 = vector.multi_reduction <add>, %6, %cst_6 [0] : vector<352x288xf32> to vector<288xf32>
    %8 = vector.shape_cast %7 : vector<288xf32> to vector<1x288xf32>
    %cst_7 = arith.constant 0.00510204071 : f32
    %9 = vector.broadcast %cst_7 : f32 to vector<1x288xf32>
    %10 = arith.mulf %8, %9 : vector<1x288xf32>
    %11 = arith.mulf %6, %6 : vector<352x288xf32>
    %cst_8 = arith.constant dense<0.000000e+00> : vector<288xf32>
    %12 = vector.multi_reduction <add>, %11, %cst_8 [0] : vector<352x288xf32> to vector<288xf32>
    %13 = vector.shape_cast %12 : vector<288xf32> to vector<1x288xf32>
    %cst_9 = arith.constant 0.00510204071 : f32
    %14 = vector.broadcast %cst_9 : f32 to vector<1x288xf32>
    %15 = arith.mulf %13, %14 : vector<1x288xf32>
    %16 = arith.mulf %10, %10 : vector<1x288xf32>
    %17 = arith.subf %15, %16 : vector<1x288xf32>
    %cst_10 = arith.constant 0.000000e+00 : f32
    %18 = vector.broadcast %cst_10 : f32 to vector<1x288xf32>
    %19 = arith.maximumf %17, %18 : vector<1x288xf32>
    %c0_11 = arith.constant 0 : index
    %c0_12 = arith.constant 0 : index
    %20 = vector.load %arg4[%c0_11, %c0_12] : memref<1x288xf32, #tpu.memory_space<vmem>>, vector<1x288xf32>
    %cst_13 = arith.constant 9.99999974E-6 : f32
    %21 = vector.broadcast %cst_13 : f32 to vector<1x288xf32>
    %22 = arith.addf %19, %21 : vector<1x288xf32>
    %23 = math.rsqrt %22 : vector<1x288xf32>
    %24 = arith.mulf %20, %23 : vector<1x288xf32>
    %c0_14 = arith.constant 0 : index
    %c0_15 = arith.constant 0 : index
    %25 = vector.load %arg5[%c0_14, %c0_15] : memref<1x288xf32, #tpu.memory_space<vmem>>, vector<1x288xf32>
    %26 = arith.mulf %10, %24 : vector<1x288xf32>
    %27 = arith.subf %25, %26 : vector<1x288xf32>
    %28 = vector.broadcast %24 : vector<1x288xf32> to vector<352x288xf32>
    %29 = arith.mulf %6, %28 : vector<352x288xf32>
    %30 = vector.broadcast %27 : vector<1x288xf32> to vector<352x288xf32>
    %31 = arith.addf %29, %30 : vector<352x288xf32>
    %cst_16 = arith.constant 0.000000e+00 : f32
    %32 = vector.broadcast %cst_16 : f32 to vector<352x288xf32>
    %33 = arith.maximumf %31, %32 : vector<352x288xf32>
    %c0_17 = arith.constant 0 : index
    %c0_18 = arith.constant 0 : index
    %34 = vector.load %arg2[%c0_17, %c0_18] : memref<352x1xf32, #tpu.memory_space<vmem>>, vector<352x1xf32>
    %35 = vector.broadcast %34 : vector<352x1xf32> to vector<352x288xf32>
    %36 = arith.mulf %33, %35 : vector<352x288xf32>
    %c0_19 = arith.constant 0 : index
    %c0_20 = arith.constant 0 : index
    %37 = vector.load %arg8[%c0_19, %c0_20] : memref<352x288xf32, #tpu.memory_space<vmem>>, vector<352x288xf32>
    tpu.vector_store %arg8[%c0_19, %c0_20], %36 {strides = array<i32>} : memref<352x288xf32, #tpu.memory_space<vmem>>, vector<352x288xf32>,
    %cst_21 = arith.constant 0.000000e+00 : f32
    %38 = vector.broadcast %cst_21 : f32 to vector<64x288xf32>
    %c0_22 = arith.constant 0 : index
    %c0_23 = arith.constant 0 : index
    %39 = vector.load %arg8[%c0_22, %c0_23] : memref<352x288xf32, #tpu.memory_space<vmem>>, vector<64x288xf32>
    %c0_24 = arith.constant 0 : index
    %c0_25 = arith.constant 0 : index
    %40 = vector.load %arg6[%c0_24, %c0_25] : memref<25x288xf32, #tpu.memory_space<vmem>>, vector<1x288xf32>
    %41 = vector.broadcast %40 : vector<1x288xf32> to vector<64x288xf32>
    %42 = arith.mulf %39, %41 : vector<64x288xf32>
    %43 = arith.addf %38, %42 : vector<64x288xf32>
    %c88 = arith.constant 88 : index
    %c0_26 = arith.constant 0 : index
    %44 = vector.load %arg8[%c88, %c0_26] : memref<352x288xf32, #tpu.memory_space<vmem>>, vector<64x288xf32>
    %c1 = arith.constant 1 : index
    %c0_27 = arith.constant 0 : index
    %45 = vector.load %arg6[%c1, %c0_27] : memref<25x288xf32, #tpu.memory_space<vmem>>, vector<1x288xf32>
    %46 = vector.broadcast %45 : vector<1x288xf32> to vector<64x288xf32>
    %47 = arith.mulf %44, %46 : vector<64x288xf32>
    %48 = arith.addf %43, %47 : vector<64x288xf32>
    %c1_28 = arith.constant 1 : index
    %c0_29 = arith.constant 0 : index
    %49 = vector.load %arg8[%c1_28, %c0_29] : memref<352x288xf32, #tpu.memory_space<vmem>>, vector<64x288xf32>
    %c2 = arith.constant 2 : index
    %c0_30 = arith.constant 0 : index
    %50 = vector.load %arg6[%c2, %c0_30] : memref<25x288xf32, #tpu.memory_space<vmem>>, vector<1x288xf32>
    %51 = vector.broadcast %50 : vector<1x288xf32> to vector<64x288xf32>
    %52 = arith.mulf %49, %51 : vector<64x288xf32>
    %53 = arith.addf %48, %52 : vector<64x288xf32>
    %c89 = arith.constant 89 : index
    %c0_31 = arith.constant 0 : index
    %54 = vector.load %arg8[%c89, %c0_31] : memref<352x288xf32, #tpu.memory_space<vmem>>, vector<64x288xf32>
    %c3 = arith.constant 3 : index
    %c0_32 = arith.constant 0 : index
    %55 = vector.load %arg6[%c3, %c0_32] : memref<25x288xf32, #tpu.memory_space<vmem>>, vector<1x288xf32>
    %56 = vector.broadcast %55 : vector<1x288xf32> to vector<64x288xf32>
    %57 = arith.mulf %54, %56 : vector<64x288xf32>
    %58 = arith.addf %53, %57 : vector<64x288xf32>
    %c2_33 = arith.constant 2 : index
    %c0_34 = arith.constant 0 : index
    %59 = vector.load %arg8[%c2_33, %c0_34] : memref<352x288xf32, #tpu.memory_space<vmem>>, vector<64x288xf32>
    %c4 = arith.constant 4 : index
    %c0_35 = arith.constant 0 : index
    %60 = vector.load %arg6[%c4, %c0_35] : memref<25x288xf32, #tpu.memory_space<vmem>>, vector<1x288xf32>
    %61 = vector.broadcast %60 : vector<1x288xf32> to vector<64x288xf32>
    %62 = arith.mulf %59, %61 : vector<64x288xf32>
    %63 = arith.addf %58, %62 : vector<64x288xf32>
    %c176 = arith.constant 176 : index
    %c0_36 = arith.constant 0 : index
    %64 = vector.load %arg8[%c176, %c0_36] : memref<352x288xf32, #tpu.memory_space<vmem>>, vector<64x288xf32>
    %c5 = arith.constant 5 : index
    %c0_37 = arith.constant 0 : index
    %65 = vector.load %arg6[%c5, %c0_37] : memref<25x288xf32, #tpu.memory_space<vmem>>, vector<1x288xf32>
    %66 = vector.broadcast %65 : vector<1x288xf32> to vector<64x288xf32>
    %67 = arith.mulf %64, %66 : vector<64x288xf32>
    %68 = arith.addf %63, %67 : vector<64x288xf32>
    %c264 = arith.constant 264 : index
    %c0_38 = arith.constant 0 : index
    %69 = vector.load %arg8[%c264, %c0_38] : memref<352x288xf32, #tpu.memory_space<vmem>>, vector<64x288xf32>
    %c6 = arith.constant 6 : index
    %c0_39 = arith.constant 0 : index
    %70 = vector.load %arg6[%c6, %c0_39] : memref<25x288xf32, #tpu.memory_space<vmem>>, vector<1x288xf32>
    %71 = vector.broadcast %70 : vector<1x288xf32> to vector<64x288xf32>
    %72 = arith.mulf %69, %71 : vector<64x288xf32>
    %73 = arith.addf %68, %72 : vector<64x288xf32>
    %c177 = arith.constant 177 : index
    %c0_40 = arith.constant 0 : index
    %74 = vector.load %arg8[%c177, %c0_40] : memref<352x288xf32, #tpu.memory_space<vmem>>, vector<64x288xf32>
    %c7 = arith.constant 7 : index
    %c0_41 = arith.constant 0 : index
    %75 = vector.load %arg6[%c7, %c0_41] : memref<25x288xf32, #tpu.memory_space<vmem>>, vector<1x288xf32>
    %76 = vector.broadcast %75 : vector<1x288xf32> to vector<64x288xf32>
    %77 = arith.mulf %74, %76 : vector<64x288xf32>
    %78 = arith.addf %73, %77 : vector<64x288xf32>
    %c265 = arith.constant 265 : index
    %c0_42 = arith.constant 0 : index
    %79 = vector.load %arg8[%c265, %c0_42] : memref<352x288xf32, #tpu.memory_space<vmem>>, vector<64x288xf32>
    %c8 = arith.constant 8 : index
    %c0_43 = arith.constant 0 : index
    %80 = vector.load %arg6[%c8, %c0_43] : memref<25x288xf32, #tpu.memory_space<vmem>>, vector<1x288xf32>
    %81 = vector.broadcast %80 : vector<1x288xf32> to vector<64x288xf32>
    %82 = arith.mulf %79, %81 : vector<64x288xf32>
    %83 = arith.addf %78, %82 : vector<64x288xf32>
    %c178 = arith.constant 178 : index
    %c0_44 = arith.constant 0 : index
    %84 = vector.load %arg8[%c178, %c0_44] : memref<352x288xf32, #tpu.memory_space<vmem>>, vector<64x288xf32>
    %c9 = arith.constant 9 : index
    %c0_45 = arith.constant 0 : index
    %85 = vector.load %arg6[%c9, %c0_45] : memref<25x288xf32, #tpu.memory_space<vmem>>, vector<1x288xf32>
    %86 = vector.broadcast %85 : vector<1x288xf32> to vector<64x288xf32>
    %87 = arith.mulf %84, %86 : vector<64x288xf32>
    %88 = arith.addf %83, %87 : vector<64x288xf32>
    %c9_46 = arith.constant 9 : index
    %c0_47 = arith.constant 0 : index
    %89 = vector.load %arg8[%c9_46, %c0_47] : memref<352x288xf32, #tpu.memory_space<vmem>>, vector<64x288xf32>
    %c10 = arith.constant 10 : index
    %c0_48 = arith.constant 0 : index
    %90 = vector.load %arg6[%c10, %c0_48] : memref<25x288xf32, #tpu.memory_space<vmem>>, vector<1x288xf32>
    %91 = vector.broadcast %90 : vector<1x288xf32> to vector<64x288xf32>
    %92 = arith.mulf %89, %91 : vector<64x288xf32>
    %93 = arith.addf %88, %92 : vector<64x288xf32>
    %c97 = arith.constant 97 : index
    %c0_49 = arith.constant 0 : index
    %94 = vector.load %arg8[%c97, %c0_49] : memref<352x288xf32, #tpu.memory_space<vmem>>, vector<64x288xf32>
    %c11 = arith.constant 11 : index
    %c0_50 = arith.constant 0 : index
    %95 = vector.load %arg6[%c11, %c0_50] : memref<25x288xf32, #tpu.memory_space<vmem>>, vector<1x288xf32>
    %96 = vector.broadcast %95 : vector<1x288xf32> to vector<64x288xf32>
    %97 = arith.mulf %94, %96 : vector<64x288xf32>
    %98 = arith.addf %93, %97 : vector<64x288xf32>
    %c10_51 = arith.constant 10 : index
    %c0_52 = arith.constant 0 : index
    %99 = vector.load %arg8[%c10_51, %c0_52] : memref<352x288xf32, #tpu.memory_space<vmem>>, vector<64x288xf32>
    %c12 = arith.constant 12 : index
    %c0_53 = arith.constant 0 : index
    %100 = vector.load %arg6[%c12, %c0_53] : memref<25x288xf32, #tpu.memory_space<vmem>>, vector<1x288xf32>
    %101 = vector.broadcast %100 : vector<1x288xf32> to vector<64x288xf32>
    %102 = arith.mulf %99, %101 : vector<64x288xf32>
    %103 = arith.addf %98, %102 : vector<64x288xf32>
    %c98 = arith.constant 98 : index
    %c0_54 = arith.constant 0 : index
    %104 = vector.load %arg8[%c98, %c0_54] : memref<352x288xf32, #tpu.memory_space<vmem>>, vector<64x288xf32>
    %c13 = arith.constant 13 : index
    %c0_55 = arith.constant 0 : index
    %105 = vector.load %arg6[%c13, %c0_55] : memref<25x288xf32, #tpu.memory_space<vmem>>, vector<1x288xf32>
    %106 = vector.broadcast %105 : vector<1x288xf32> to vector<64x288xf32>
    %107 = arith.mulf %104, %106 : vector<64x288xf32>
    %108 = arith.addf %103, %107 : vector<64x288xf32>
    %c11_56 = arith.constant 11 : index
    %c0_57 = arith.constant 0 : index
    %109 = vector.load %arg8[%c11_56, %c0_57] : memref<352x288xf32, #tpu.memory_space<vmem>>, vector<64x288xf32>
    %c14 = arith.constant 14 : index
    %c0_58 = arith.constant 0 : index
    %110 = vector.load %arg6[%c14, %c0_58] : memref<25x288xf32, #tpu.memory_space<vmem>>, vector<1x288xf32>
    %111 = vector.broadcast %110 : vector<1x288xf32> to vector<64x288xf32>
    %112 = arith.mulf %109, %111 : vector<64x288xf32>
    %113 = arith.addf %108, %112 : vector<64x288xf32>
    %c185 = arith.constant 185 : index
    %c0_59 = arith.constant 0 : index
    %114 = vector.load %arg8[%c185, %c0_59] : memref<352x288xf32, #tpu.memory_space<vmem>>, vector<64x288xf32>
    %c15 = arith.constant 15 : index
    %c0_60 = arith.constant 0 : index
    %115 = vector.load %arg6[%c15, %c0_60] : memref<25x288xf32, #tpu.memory_space<vmem>>, vector<1x288xf32>
    %116 = vector.broadcast %115 : vector<1x288xf32> to vector<64x288xf32>
    %117 = arith.mulf %114, %116 : vector<64x288xf32>
    %118 = arith.addf %113, %117 : vector<64x288xf32>
    %c273 = arith.constant 273 : index
    %c0_61 = arith.constant 0 : index
    %119 = vector.load %arg8[%c273, %c0_61] : memref<352x288xf32, #tpu.memory_space<vmem>>, vector<64x288xf32>
    %c16 = arith.constant 16 : index
    %c0_62 = arith.constant 0 : index
    %120 = vector.load %arg6[%c16, %c0_62] : memref<25x288xf32, #tpu.memory_space<vmem>>, vector<1x288xf32>
    %121 = vector.broadcast %120 : vector<1x288xf32> to vector<64x288xf32>
    %122 = arith.mulf %119, %121 : vector<64x288xf32>
    %123 = arith.addf %118, %122 : vector<64x288xf32>
    %c186 = arith.constant 186 : index
    %c0_63 = arith.constant 0 : index
    %124 = vector.load %arg8[%c186, %c0_63] : memref<352x288xf32, #tpu.memory_space<vmem>>, vector<64x288xf32>
    %c17 = arith.constant 17 : index
    %c0_64 = arith.constant 0 : index
    %125 = vector.load %arg6[%c17, %c0_64] : memref<25x288xf32, #tpu.memory_space<vmem>>, vector<1x288xf32>
    %126 = vector.broadcast %125 : vector<1x288xf32> to vector<64x288xf32>
    %127 = arith.mulf %124, %126 : vector<64x288xf32>
    %128 = arith.addf %123, %127 : vector<64x288xf32>
    %c274 = arith.constant 274 : index
    %c0_65 = arith.constant 0 : index
    %129 = vector.load %arg8[%c274, %c0_65] : memref<352x288xf32, #tpu.memory_space<vmem>>, vector<64x288xf32>
    %c18 = arith.constant 18 : index
    %c0_66 = arith.constant 0 : index
    %130 = vector.load %arg6[%c18, %c0_66] : memref<25x288xf32, #tpu.memory_space<vmem>>, vector<1x288xf32>
    %131 = vector.broadcast %130 : vector<1x288xf32> to vector<64x288xf32>
    %132 = arith.mulf %129, %131 : vector<64x288xf32>
    %133 = arith.addf %128, %132 : vector<64x288xf32>
    %c187 = arith.constant 187 : index
    %c0_67 = arith.constant 0 : index
    %134 = vector.load %arg8[%c187, %c0_67] : memref<352x288xf32, #tpu.memory_space<vmem>>, vector<64x288xf32>
    %c19 = arith.constant 19 : index
    %c0_68 = arith.constant 0 : index
    %135 = vector.load %arg6[%c19, %c0_68] : memref<25x288xf32, #tpu.memory_space<vmem>>, vector<1x288xf32>
    %136 = vector.broadcast %135 : vector<1x288xf32> to vector<64x288xf32>
    %137 = arith.mulf %134, %136 : vector<64x288xf32>
    %138 = arith.addf %133, %137 : vector<64x288xf32>
    %c18_69 = arith.constant 18 : index
    %c0_70 = arith.constant 0 : index
    %139 = vector.load %arg8[%c18_69, %c0_70] : memref<352x288xf32, #tpu.memory_space<vmem>>, vector<64x288xf32>
    %c20 = arith.constant 20 : index
    %c0_71 = arith.constant 0 : index
    %140 = vector.load %arg6[%c20, %c0_71] : memref<25x288xf32, #tpu.memory_space<vmem>>, vector<1x288xf32>
    %141 = vector.broadcast %140 : vector<1x288xf32> to vector<64x288xf32>
    %142 = arith.mulf %139, %141 : vector<64x288xf32>
    %143 = arith.addf %138, %142 : vector<64x288xf32>
    %c106 = arith.constant 106 : index
    %c0_72 = arith.constant 0 : index
    %144 = vector.load %arg8[%c106, %c0_72] : memref<352x288xf32, #tpu.memory_space<vmem>>, vector<64x288xf32>
    %c21 = arith.constant 21 : index
    %c0_73 = arith.constant 0 : index
    %145 = vector.load %arg6[%c21, %c0_73] : memref<25x288xf32, #tpu.memory_space<vmem>>, vector<1x288xf32>
    %146 = vector.broadcast %145 : vector<1x288xf32> to vector<64x288xf32>
    %147 = arith.mulf %144, %146 : vector<64x288xf32>
    %148 = arith.addf %143, %147 : vector<64x288xf32>
    %c19_74 = arith.constant 19 : index
    %c0_75 = arith.constant 0 : index
    %149 = vector.load %arg8[%c19_74, %c0_75] : memref<352x288xf32, #tpu.memory_space<vmem>>, vector<64x288xf32>
    %c22 = arith.constant 22 : index
    %c0_76 = arith.constant 0 : index
    %150 = vector.load %arg6[%c22, %c0_76] : memref<25x288xf32, #tpu.memory_space<vmem>>, vector<1x288xf32>
    %151 = vector.broadcast %150 : vector<1x288xf32> to vector<64x288xf32>
    %152 = arith.mulf %149, %151 : vector<64x288xf32>
    %153 = arith.addf %148, %152 : vector<64x288xf32>
    %c107 = arith.constant 107 : index
    %c0_77 = arith.constant 0 : index
    %154 = vector.load %arg8[%c107, %c0_77] : memref<352x288xf32, #tpu.memory_space<vmem>>, vector<64x288xf32>
    %c23 = arith.constant 23 : index
    %c0_78 = arith.constant 0 : index
    %155 = vector.load %arg6[%c23, %c0_78] : memref<25x288xf32, #tpu.memory_space<vmem>>, vector<1x288xf32>
    %156 = vector.broadcast %155 : vector<1x288xf32> to vector<64x288xf32>
    %157 = arith.mulf %154, %156 : vector<64x288xf32>
    %158 = arith.addf %153, %157 : vector<64x288xf32>
    %c20_79 = arith.constant 20 : index
    %c0_80 = arith.constant 0 : index
    %159 = vector.load %arg8[%c20_79, %c0_80] : memref<352x288xf32, #tpu.memory_space<vmem>>, vector<64x288xf32>
    %c24 = arith.constant 24 : index
    %c0_81 = arith.constant 0 : index
    %160 = vector.load %arg6[%c24, %c0_81] : memref<25x288xf32, #tpu.memory_space<vmem>>, vector<1x288xf32>
    %161 = vector.broadcast %160 : vector<1x288xf32> to vector<64x288xf32>
    %162 = arith.mulf %159, %161 : vector<64x288xf32>
    %163 = arith.addf %158, %162 : vector<64x288xf32>
    %c0_82 = arith.constant 0 : index
    %c0_83 = arith.constant 0 : index
    %164 = vector.load %arg7[%c0_82, %c0_83] : memref<64x288xf32, #tpu.memory_space<vmem>>, vector<64x288xf32>
    tpu.vector_store %arg7[%c0_82, %c0_83], %163 {strides = array<i32>} : memref<64x288xf32, #tpu.memory_space<vmem>>, vector<64x288xf32>,
    return
  }
}

</mosaic_0001>

<llo_original>
// kernel: model_forward.1
$region0: #{model_forward.1}
  #allocation0 [shape = 'u32[]', space=smem, size = 0x4, offset = 0x4, fixed_abs, tag = 'smem constant byte address 0x4 - core index']
  #allocation1 [shape = 'u32[144,128]{1,0:T(1,128)}', space=vmem, size = 0x12000, scoped, tag = 'internal scratch']
  #allocation2 [shape = 'f32[352,288]{1,0:T(8,128)}', space=vmem, size = 0x84000, scoped, tag = 'scratch operand']
  %s0 = inlined_call_operand.vmem [shape: f32[196,48], index: 0, kind: input, shape index: {}]
  %s1 = inlined_call_operand.vmem [shape: bf16[352,196], index: 1, kind: input, shape index: {}]
  %s2 = inlined_call_operand.vmem [shape: f32[352,1], index: 2, kind: input, shape index: {}]
  %s3 = inlined_call_operand.vmem [shape: bf16[48,288], index: 3, kind: input, shape index: {}]
  %s4 = inlined_call_operand.vmem [shape: f32[1,288], index: 4, kind: input, shape index: {}]
  %s5 = inlined_call_operand.vmem [shape: f32[1,288], index: 5, kind: input, shape index: {}]
  %s6 = inlined_call_operand.vmem [shape: f32[25,288], index: 6, kind: input, shape index: {}]
  %s7 = inlined_call_operand.vmem [shape: f32[64,288], index: 7, kind: output, shape index: {}]
  %s8 = sld [smem:[#allocation0]]
  $region38: #{model_forward.1} parent=0
    _
  %s10 = ssub.s32 1, %s8
  %s11 = scalar_select 0, %s10, %s8
  // Predicated region
  $region2: #{model_forward.1} parent=0 // pred_check
    _
  $region3: #{model_forward.1} parent=0 // pred_check_branch
    %13 = sbr.rel (0) target = $region5
  $region4: #{model_forward.1} parent=0 // pred_region
    _
  $region5: #{model_forward.1} parent=0 // pred_fallthru
    _
  // Predicated region
  $region6: #{model_forward.1} parent=0 // pred_check
    _
  $region7: #{model_forward.1} parent=0 // pred_check_branch
    %15 = sbr.rel (0) target = $region9
  $region8: #{model_forward.1} parent=0 // pred_region
    _
  $region9: #{model_forward.1} parent=0 // pred_fallthru
    _
  // Predicated region
  $region10: #{model_forward.1} parent=0 // pred_check
    _
  $region11: #{model_forward.1} parent=0 // pred_check_branch
    %17 = sbr.rel (0) target = $region13
  $region12: #{model_forward.1} parent=0 // pred_region
    _
  $region13: #{model_forward.1} parent=0 // pred_fallthru
    _
  // Predicated region
  $region14: #{model_forward.1} parent=0 // pred_check
    _
  $region15: #{model_forward.1} parent=0 // pred_check_branch
    %19 = sbr.rel (0) target = $region17
  $region16: #{model_forward.1} parent=0 // pred_region
    _
  $region17: #{model_forward.1} parent=0 // pred_fallthru
    _
  // Predicated region
  $region18: #{model_forward.1} parent=0 // pred_check
    _
  $region19: #{model_forward.1} parent=0 // pred_check_branch
    %21 = sbr.rel (0) target = $region21
  $region20: #{model_forward.1} parent=0 // pred_region
    _
  $region21: #{model_forward.1} parent=0 // pred_fallthru
    _
  // Predicated region
  $region22: #{model_forward.1} parent=0 // pred_check
    _
  $region23: #{model_forward.1} parent=0 // pred_check_branch
    %23 = sbr.rel (0) target = $region25
  $region24: #{model_forward.1} parent=0 // pred_region
    _
  $region25: #{model_forward.1} parent=0 // pred_fallthru
    _
  // Predicated region
  $region26: #{model_forward.1} parent=0 // pred_check
    _
  $region27: #{model_forward.1} parent=0 // pred_check_branch
    %25 = sbr.rel (0) target = $region29
  $region28: #{model_forward.1} parent=0 // pred_region
    _
  $region29: #{model_forward.1} parent=0 // pred_fallthru
    _
  %v27 = vld [vmem:[%s0] sm:$0xff]
  %v28 = vld [vmem:[%s0 + $0x8] sm:$0xff]
  %v29 = vld [vmem:[%s0 + $0x10] sm:$0xff]
  %v30 = vld [vmem:[%s0 + $0x18] sm:$0xff]
  %v31 = vld [vmem:[%s0 + $0x20] sm:$0xff]
  %v32 = vld [vmem:[%s0 + $0x28] sm:$0xff]
  %v33 = vld [vmem:[%s0 + $0x30] sm:$0xff]
  %v34 = vld [vmem:[%s0 + $0x38] sm:$0xff]
  %v35 = vld [vmem:[%s0 + $0x40] sm:$0xff]
  %v36 = vld [vmem:[%s0 + $0x48] sm:$0xff]
  %v37 = vld [vmem:[%s0 + $0x50] sm:$0xff]
  %v38 = vld [vmem:[%s0 + $0x58] sm:$0xff]
  %v39 = vld [vmem:[%s0 + $0x60] sm:$0xff]
  %v40 = vld [vmem:[%s0 + $0x68] sm:$0xff]
  %v41 = vld [vmem:[%s0 + $0x70] sm:$0xff]
  %v42 = vld [vmem:[%s0 + $0x78] sm:$0xff]
  %v43 = vld [vmem:[%s0 + $0x80] sm:$0xff]
  %v44 = vld [vmem:[%s0 + $0x88] sm:$0xff]
  %v45 = vld [vmem:[%s0 + $0x90] sm:$0xff]
  %v46 = vld [vmem:[%s0 + $0x98] sm:$0xff]
  %v47 = vld [vmem:[%s0 + $0xa0] sm:$0xff]
  %v48 = vld [vmem:[%s0 + $0xa8] sm:$0xff]
  %v49 = vld [vmem:[%s0 + $0xb0] sm:$0xff]
  %v50 = vld [vmem:[%s0 + $0xb8] sm:$0xff]
  %v51 = vld [vmem:[%s0 + $0xc0] sm:$0xf]
  %v52 = vpack.c.bf16 %v28, %v27
  %v53 = vpack.c.bf16 %v30, %v29
  %v54 = vpack.c.bf16 %v32, %v31
  %v55 = vpack.c.bf16 %v34, %v33
  %v56 = vpack.c.bf16 %v36, %v35
  %v57 = vpack.c.bf16 %v38, %v37
  %v58 = vpack.c.bf16 %v40, %v39
  %v59 = vpack.c.bf16 %v42, %v41
  %v60 = vpack.c.bf16 %v44, %v43
  %v61 = vpack.c.bf16 %v46, %v45
  %v62 = vpack.c.bf16 %v48, %v47
  %v63 = vpack.c.bf16 %v50, %v49
  %v64 = vpack.c.bf16 %v51, %v51
  %v65 = vld [vmem:[%s1] sm:$0xff]
  %v66 = vld [vmem:[%s1 + $0x8] sm:$0xff]
  %v67 = vld [vmem:[%s1 + $0x10] sm:$0xff]
  %v68 = vld [vmem:[%s1 + $0x18] sm:$0xff]
  %v69 = vld [vmem:[%s1 + $0x20] sm:$0xff]
  %v70 = vld [vmem:[%s1 + $0x28] sm:$0xff]
  %v71 = vld [vmem:[%s1 + $0x30] sm:$0xff]
  %v72 = vld [vmem:[%s1 + $0x38] sm:$0xff]
  %v73 = vld [vmem:[%s1 + $0x40] sm:$0xff]
  %v74 = vld [vmem:[%s1 + $0x48] sm:$0xff]
  %v75 = vld [vmem:[%s1 + $0x50] sm:$0xff]
  %v76 = vld [vmem:[%s1 + $0x58] sm:$0xff]
  %v77 = vld [vmem:[%s1 + $0x60] sm:$0xff]
  %v78 = vld [vmem:[%s1 + $0x68] sm:$0xff]
  %v79 = vld [vmem:[%s1 + $0x70] sm:$0xff]
  %v80 = vld [vmem:[%s1 + $0x78] sm:$0xff]
  %v81 = vld [vmem:[%s1 + $0x80] sm:$0xff]
  %v82 = vld [vmem:[%s1 + $0x88] sm:$0xff]
  %v83 = vld [vmem:[%s1 + $0x90] sm:$0xff]
  %v84 = vld [vmem:[%s1 + $0x98] sm:$0xff]
  %v85 = vld [vmem:[%s1 + $0xa0] sm:$0xff]
  %v86 = vld [vmem:[%s1 + $0xa8] sm:$0xff]
  %v87 = vld [vmem:[%s1 + $0xb0] sm:$0xff]
  %v88 = vld [vmem:[%s1 + $0xb8] sm:$0xff]
  %v89 = vld [vmem:[%s1 + $0xc0] sm:$0xff]
  %v90 = vld [vmem:[%s1 + $0xc8] sm:$0xff]
  %v91 = vld [vmem:[%s1 + $0xd0] sm:$0xff]
  %v92 = vld [vmem:[%s1 + $0xd8] sm:$0xff]
  %v93 = vld [vmem:[%s1 + $0xe0] sm:$0xff]
  %v94 = vld [vmem:[%s1 + $0xe8] sm:$0xff]
  %v95 = vld [vmem:[%s1 + $0xf0] sm:$0xff]
  %v96 = vld [vmem:[%s1 + $0xf8] sm:$0xff]
  %v97 = vld [vmem:[%s1 + $0x100] sm:$0xff]
  %v98 = vld [vmem:[%s1 + $0x108] sm:$0xff]
  %v99 = vld [vmem:[%s1 + $0x110] sm:$0xff]
  %v100 = vld [vmem:[%s1 + $0x118] sm:$0xff]
  %v101 = vld [vmem:[%s1 + $0x120] sm:$0xff]
  %v102 = vld [vmem:[%s1 + $0x128] sm:$0xff]
  %v103 = vld [vmem:[%s1 + $0x130] sm:$0xff]
  %v104 = vld [vmem:[%s1 + $0x138] sm:$0xff]
  %v105 = vld [vmem:[%s1 + $0x140] sm:$0xff]
  %v106 = vld [vmem:[%s1 + $0x148] sm:$0xff]
  %v107 = vld [vmem:[%s1 + $0x150] sm:$0xff]
  %v108 = vld [vmem:[%s1 + $0x158] sm:$0xff]
  %v153 = vunpack.c.l.b16 %v65
  %v154 = vunpack.c.h.b16 %v65
  %v155 = vunpack.c.l.b16 %v66
  %v156 = vunpack.c.h.b16 %v66
  %v157 = vunpack.c.l.b16 %v67
  %v158 = vunpack.c.h.b16 %v67
  %v159 = vunpack.c.l.b16 %v68
  %v160 = vunpack.c.h.b16 %v68
  %v161 = vunpack.c.l.b16 %v69
  %v162 = vunpack.c.h.b16 %v69
  %v163 = vunpack.c.l.b16 %v70
  %v164 = vunpack.c.h.b16 %v70
  %v165 = vunpack.c.l.b16 %v71
  %v166 = vunpack.c.h.b16 %v71
  %v167 = vunpack.c.l.b16 %v72
  %v168 = vunpack.c.h.b16 %v72
  %v169 = vunpack.c.l.b16 %v73
  %v170 = vunpack.c.h.b16 %v73
  %v171 = vunpack.c.l.b16 %v74
  %v172 = vunpack.c.h.b16 %v74
  %v173 = vunpack.c.l.b16 %v75
  %v174 = vunpack.c.h.b16 %v75
  %v175 = vunpack.c.l.b16 %v76
  %v176 = vunpack.c.h.b16 %v76
  %v177 = vunpack.c.l.b16 %v77
  %v178 = vunpack.c.h.b16 %v77
  %v179 = vunpack.c.l.b16 %v78
  %v180 = vunpack.c.h.b16 %v78
  %v181 = vunpack.c.l.b16 %v79
  %v182 = vunpack.c.h.b16 %v79
  %v183 = vunpack.c.l.b16 %v80
  %v184 = vunpack.c.h.b16 %v80
  %v185 = vunpack.c.l.b16 %v81
  %v186 = vunpack.c.h.b16 %v81
  %v187 = vunpack.c.l.b16 %v82
  %v188 = vunpack.c.h.b16 %v82
  %v189 = vunpack.c.l.b16 %v83
  %v190 = vunpack.c.h.b16 %v83
  %v191 = vunpack.c.l.b16 %v84
  %v192 = vunpack.c.h.b16 %v84
  %v193 = vunpack.c.l.b16 %v85
  %v194 = vunpack.c.h.b16 %v85
  %v195 = vunpack.c.l.b16 %v86
  %v196 = vunpack.c.h.b16 %v86
  %v197 = vunpack.c.l.b16 %v87
  %v198 = vunpack.c.h.b16 %v87
  %v199 = vunpack.c.l.b16 %v88
  %v200 = vunpack.c.h.b16 %v88
  %v201 = vunpack.c.l.b16 %v89
  %v202 = vunpack.c.h.b16 %v89
  %v203 = vunpack.c.l.b16 %v90
  %v204 = vunpack.c.h.b16 %v90
  %v205 = vunpack.c.l.b16 %v91
  %v206 = vunpack.c.h.b16 %v91
  %v207 = vunpack.c.l.b16 %v92
  %v208 = vunpack.c.h.b16 %v92
  %v209 = vunpack.c.l.b16 %v93
  %v210 = vunpack.c.h.b16 %v93
  %v211 = vunpack.c.l.b16 %v94
  %v212 = vunpack.c.h.b16 %v94
  %v213 = vunpack.c.l.b16 %v95
  %v214 = vunpack.c.h.b16 %v95
  %v215 = vunpack.c.l.b16 %v96
  %v216 = vunpack.c.h.b16 %v96
  %v217 = vunpack.c.l.b16 %v97
  %v218 = vunpack.c.h.b16 %v97
  %v219 = vunpack.c.l.b16 %v98
  %v220 = vunpack.c.h.b16 %v98
  %v221 = vunpack.c.l.b16 %v99
  %v222 = vunpack.c.h.b16 %v99
  %v223 = vunpack.c.l.b16 %v100
  %v224 = vunpack.c.h.b16 %v100
  %v225 = vunpack.c.l.b16 %v101
  %v226 = vunpack.c.h.b16 %v101
  %v227 = vunpack.c.l.b16 %v102
  %v228 = vunpack.c.h.b16 %v102
  %v229 = vunpack.c.l.b16 %v103
  %v230 = vunpack.c.h.b16 %v103
  %v231 = vunpack.c.l.b16 %v104
  %v232 = vunpack.c.h.b16 %v104
  %v233 = vunpack.c.l.b16 %v105
  %v234 = vunpack.c.h.b16 %v105
  %v235 = vunpack.c.l.b16 %v106
  %v236 = vunpack.c.h.b16 %v106
  %v237 = vunpack.c.l.b16 %v107
  %v238 = vunpack.c.h.b16 %v107
  %v239 = vunpack.c.l.b16 %v108
  %v240 = vunpack.c.h.b16 %v108
  %v241 = vpack.c.b16 %v155, %v153
  %v242 = vpack.c.b16 %v156, %v154
  %v243 = vpack.c.b16 %v159, %v157
  %v244 = vpack.c.b16 %v160, %v158
  %v245 = vpack.c.b16 %v163, %v161
  %v246 = vpack.c.b16 %v164, %v162
  %v247 = vpack.c.b16 %v167, %v165
  %v248 = vpack.c.b16 %v168, %v166
  %v249 = vpack.c.b16 %v171, %v169
  %v250 = vpack.c.b16 %v172, %v170
  %v251 = vpack.c.b16 %v175, %v173
  %v252 = vpack.c.b16 %v176, %v174
  %v253 = vpack.c.b16 %v179, %v177
  %v254 = vpack.c.b16 %v180, %v178
  %v255 = vpack.c.b16 %v183, %v181
  %v256 = vpack.c.b16 %v184, %v182
  %v257 = vpack.c.b16 %v187, %v185
  %v258 = vpack.c.b16 %v188, %v186
  %v259 = vpack.c.b16 %v191, %v189
  %v260 = vpack.c.b16 %v192, %v190
  %v261 = vpack.c.b16 %v195, %v193
  %v262 = vpack.c.b16 %v196, %v194
  %v263 = vpack.c.b16 %v199, %v197
  %v264 = vpack.c.b16 %v200, %v198
  %v265 = vpack.c.b16 %v203, %v201
  %v266 = vpack.c.b16 %v204, %v202
  %v267 = vpack.c.b16 %v207, %v205
  %v268 = vpack.c.b16 %v208, %v206
  %v269 = vpack.c.b16 %v211, %v209
  %v270 = vpack.c.b16 %v212, %v210
  %v271 = vpack.c.b16 %v215, %v213
  %v272 = vpack.c.b16 %v216, %v214
  %v273 = vpack.c.b16 %v219, %v217
  %v274 = vpack.c.b16 %v220, %v218
  %v275 = vpack.c.b16 %v223, %v221
  %v276 = vpack.c.b16 %v224, %v222
  %v277 = vpack.c.b16 %v227, %v225
  %v278 = vpack.c.b16 %v228, %v226
  %v279 = vpack.c.b16 %v231, %v229
  %v280 = vpack.c.b16 %v232, %v230
  %v281 = vpack.c.b16 %v235, %v233
  %v282 = vpack.c.b16 %v236, %v234
  %v283 = vpack.c.b16 %v239, %v237
  %v284 = vpack.c.b16 %v240, %v238
  %vm307 = vcmask 556032
  %v309 = vsel %vm307, %v242, 0
  %v312 = vsel %vm307, %v244, 0
  %v315 = vsel %vm307, %v246, 0
  %v318 = vsel %vm307, %v248, 0
  %v321 = vsel %vm307, %v250, 0
  %v324 = vsel %vm307, %v252, 0
  %v327 = vsel %vm307, %v254, 0
  %v330 = vsel %vm307, %v256, 0
  %v333 = vsel %vm307, %v258, 0
  %v336 = vsel %vm307, %v260, 0
  %v339 = vsel %vm307, %v262, 0
  %v342 = vsel %vm307, %v264, 0
  %v345 = vsel %vm307, %v266, 0
  %v348 = vsel %vm307, %v268, 0
  %v351 = vsel %vm307, %v270, 0
  %v354 = vsel %vm307, %v272, 0
  %v357 = vsel %vm307, %v274, 0
  %v360 = vsel %vm307, %v276, 0
  %v363 = vsel %vm307, %v278, 0
  %v366 = vsel %vm307, %v280, 0
  %v369 = vsel %vm307, %v282, 0
  %v372 = vsel %vm307, %v284, 0
  %vm374 = vcmask 1041408
  %v376 = vsel %vm374, %v64, 0
  %378 = vmatprep.subr.bf16.mxu0 0
  %379 = vmatpush1.bf16.msra.mxu0 %v52
  %380 = vmatprep.subr.bf16.mxu0 0
  %381 = vmatpush1.bf16.msra.mxu0 %v53
  %382 = vmatprep.subr.bf16.mxu0 0
  %383 = vmatpush1.bf16.msra.mxu0 %v54
  %384 = vmatprep.subr.bf16.mxu0 0
  %385 = vmatpush1.bf16.msra.mxu0 %v55
  %386 = vmatprep.subr.bf16.mxu0 0
  %387 = vmatpush1.bf16.msra.mxu0 %v56
  %388 = vmatprep.subr.bf16.mxu0 0
  %389 = vmatpush1.bf16.msra.mxu0 %v57
  %390 = vmatprep.subr.bf16.mxu0 0
  %391 = vmatpush1.bf16.msra.mxu0 %v58
  %392 = vmatprep.subr.bf16.mxu0 0
  %393 = vmatpush1.bf16.msra.mxu0 %v59
  %394 = vmatprep.subr.bf16.mxu0 0
  %395 = vmatpush1.bf16.msra.mxu0 %v60
  %396 = vmatprep.subr.bf16.mxu0 0
  %397 = vmatpush1.bf16.msra.mxu0 %v61
  %398 = vmatprep.subr.bf16.mxu0 0
  %399 = vmatpush1.bf16.msra.mxu0 %v62
  %400 = vmatprep.subr.bf16.mxu0 0
  %401 = vmatpush1.bf16.msra.mxu0 %v63
  %402 = vmatprep.subr.bf16.mxu0 0
  %403 = vmatpush1.bf16.msra.mxu0 %v376
  %404 = vmatprep.subr.bf16.mxu0 0
  %405 = vmatpush1.bf16.msra.mxu0 0
  %406 = vmatprep.subr.bf16.mxu0 0
  %407 = vmatpush1.bf16.msra.mxu0 0
  %408 = vmatprep.subr.bf16.mxu0 0
  %409 = vmatpush1.bf16.msra.mxu0 0
  %410 = vmatprep.mubr.bf16.mxu0 %v309
  %411 = vmatmul.mubr.bf16.gmra.mrb[0].mxu0 %v241
  %v412 = vpop.f32.mrb[0].mxu0
  %v413 = vadd.f32 0.0, %v412
  %v414 = vpop.f32.mrb[0].mxu0
  %v415 = vpop.f32.mrb[0].mxu0
  %v416 = vadd.f32 0.0, %v415
  %v417 = vpop.f32.mrb[0].mxu0
  %418 = vmatprep.mubr.bf16.mxu0 %v312
  %419 = vmatmul.mubr.bf16.gmra.mrb[0].mxu0 %v243
  %v420 = vpop.f32.mrb[0].mxu0
  %v421 = vadd.f32 0.0, %v420
  %v422 = vpop.f32.mrb[0].mxu0
  %v423 = vpop.f32.mrb[0].mxu0
  %v424 = vadd.f32 0.0, %v423
  %v425 = vpop.f32.mrb[0].mxu0
  %426 = vmatprep.mubr.bf16.mxu0 %v315
  %427 = vmatmul.mubr.bf16.gmra.mrb[0].mxu0 %v245
  %v428 = vpop.f32.mrb[0].mxu0
  %v429 = vadd.f32 0.0, %v428
  %v430 = vpop.f32.mrb[0].mxu0
  %v431 = vpop.f32.mrb[0].mxu0
  %v432 = vadd.f32 0.0, %v431
  %v433 = vpop.f32.mrb[0].mxu0
  %434 = vmatprep.mubr.bf16.mxu0 %v318
  %435 = vmatmul.mubr.bf16.gmra.mrb[0].mxu0 %v247
  %v436 = vpop.f32.mrb[0].mxu0
  %v437 = vadd.f32 0.0, %v436
  %v438 = vpop.f32.mrb[0].mxu0
  %v439 = vpop.f32.mrb[0].mxu0
  %v440 = vadd.f32 0.0, %v439
  %v441 = vpop.f32.mrb[0].mxu0
  %442 = vmatprep.mubr.bf16.mxu0 %v321
  %443 = vmatmul.mubr.bf16.gmra.mrb[0].mxu0 %v249
  %v444 = vpop.f32.mrb[0].mxu0
  %v445 = vadd.f32 0.0, %v444
  %v446 = vpop.f32.mrb[0].mxu0
  %v447 = vpop.f32.mrb[0].mxu0
  %v448 = vadd.f32 0.0, %v447
  %v449 = vpop.f32.mrb[0].mxu0
  %450 = vmatprep.mubr.bf16.mxu0 %v324
  %451 = vmatmul.mubr.bf16.gmra.mrb[0].mxu0 %v251
  %v452 = vpop.f32.mrb[0].mxu0
  %v453 = vadd.f32 0.0, %v452
  %v454 = vpop.f32.mrb[0].mxu0
  %v455 = vpop.f32.mrb[0].mxu0
  %v456 = vadd.f32 0.0, %v455
  %v457 = vpop.f32.mrb[0].mxu0
  %458 = vmatprep.mubr.bf16.mxu0 %v327
  %459 = vmatmul.mubr.bf16.gmra.mrb[0].mxu0 %v253
  %v460 = vpop.f32.mrb[0].mxu0
  %v461 = vadd.f32 0.0, %v460
  %v462 = vpop.f32.mrb[0].mxu0
  %v463 = vpop.f32.mrb[0].mxu0
  %v464 = vadd.f32 0.0, %v463
  %v465 = vpop.f32.mrb[0].mxu0
  %466 = vmatprep.mubr.bf16.mxu0 %v330
  %467 = vmatmul.mubr.bf16.gmra.mrb[0].mxu0 %v255
  %v468 = vpop.f32.mrb[0].mxu0
  %v469 = vadd.f32 0.0, %v468
  %v470 = vpop.f32.mrb[0].mxu0
  %v471 = vpop.f32.mrb[0].mxu0
  %v472 = vadd.f32 0.0, %v471
  %v473 = vpop.f32.mrb[0].mxu0
  %474 = vmatprep.mubr.bf16.mxu0 %v333
  %475 = vmatmul.mubr.bf16.gmra.mrb[0].mxu0 %v257
  %v476 = vpop.f32.mrb[0].mxu0
  %v477 = vadd.f32 0.0, %v476
  %v478 = vpop.f32.mrb[0].mxu0
  %v479 = vpop.f32.mrb[0].mxu0
  %v480 = vadd.f32 0.0, %v479
  %v481 = vpop.f32.mrb[0].mxu0
  %482 = vmatprep.mubr.bf16.mxu0 %v336
  %483 = vmatmul.mubr.bf16.gmra.mrb[0].mxu0 %v259
  %v484 = vpop.f32.mrb[0].mxu0
  %v485 = vadd.f32 0.0, %v484
  %v486 = vpop.f32.mrb[0].mxu0
  %v487 = vpop.f32.mrb[0].mxu0
  %v488 = vadd.f32 0.0, %v487
  %v489 = vpop.f32.mrb[0].mxu0
  %490 = vmatprep.mubr.bf16.mxu0 %v339
  %491 = vmatmul.mubr.bf16.gmra.mrb[0].mxu0 %v261
  %v492 = vpop.f32.mrb[0].mxu0
  %v493 = vadd.f32 0.0, %v492
  %v494 = vpop.f32.mrb[0].mxu0
  %v495 = vpop.f32.mrb[0].mxu0
  %v496 = vadd.f32 0.0, %v495
  %v497 = vpop.f32.mrb[0].mxu0
  %498 = vmatprep.mubr.bf16.mxu0 %v342
  %499 = vmatmul.mubr.bf16.gmra.mrb[0].mxu0 %v263
  %v500 = vpop.f32.mrb[0].mxu0
  %v501 = vadd.f32 0.0, %v500
  %v502 = vpop.f32.mrb[0].mxu0
  %v503 = vpop.f32.mrb[0].mxu0
  %v504 = vadd.f32 0.0, %v503
  %v505 = vpop.f32.mrb[0].mxu0
  %506 = vmatprep.mubr.bf16.mxu0 %v345
  %507 = vmatmul.mubr.bf16.gmra.mrb[0].mxu0 %v265
  %v508 = vpop.f32.mrb[0].mxu0
  %v509 = vadd.f32 0.0, %v508
  %v510 = vpop.f32.mrb[0].mxu0
  %v511 = vpop.f32.mrb[0].mxu0
  %v512 = vadd.f32 0.0, %v511
  %v513 = vpop.f32.mrb[0].mxu0
  %514 = vmatprep.mubr.bf16.mxu0 %v348
  %515 = vmatmul.mubr.bf16.gmra.mrb[0].mxu0 %v267
  %v516 = vpop.f32.mrb[0].mxu0
  %v517 = vadd.f32 0.0, %v516
  %v518 = vpop.f32.mrb[0].mxu0
  %v519 = vpop.f32.mrb[0].mxu0
  %v520 = vadd.f32 0.0, %v519
  %v521 = vpop.f32.mrb[0].mxu0
  %522 = vmatprep.mubr.bf16.mxu0 %v351
  %523 = vmatmul.mubr.bf16.gmra.mrb[0].mxu0 %v269
  %v524 = vpop.f32.mrb[0].mxu0
  %v525 = vadd.f32 0.0, %v524
  %v526 = vpop.f32.mrb[0].mxu0
  %v527 = vpop.f32.mrb[0].mxu0
  %v528 = vadd.f32 0.0, %v527
  %v529 = vpop.f32.mrb[0].mxu0
  %530 = vmatprep.mubr.bf16.mxu0 %v354
  %531 = vmatmul.mubr.bf16.gmra.mrb[0].mxu0 %v271
  %v532 = vpop.f32.mrb[0].mxu0
  %v533 = vadd.f32 0.0, %v532
  %v534 = vpop.f32.mrb[0].mxu0
  %v535 = vpop.f32.mrb[0].mxu0
  %v536 = vadd.f32 0.0, %v535
  %v537 = vpop.f32.mrb[0].mxu0
  %538 = vmatprep.mubr.bf16.mxu0 %v357
  %539 = vmatmul.mubr.bf16.gmra.mrb[0].mxu0 %v273
  %v540 = vpop.f32.mrb[0].mxu0
  %v541 = vadd.f32 0.0, %v540
  %v542 = vpop.f32.mrb[0].mxu0
  %v543 = vpop.f32.mrb[0].mxu0
  %v544 = vadd.f32 0.0, %v543
  %v545 = vpop.f32.mrb[0].mxu0
  %546 = vmatprep.mubr.bf16.mxu0 %v360
  %547 = vmatmul.mubr.bf16.gmra.mrb[0].mxu0 %v275
  %v548 = vpop.f32.mrb[0].mxu0
  %v549 = vadd.f32 0.0, %v548
  %v550 = vpop.f32.mrb[0].mxu0
  %v551 = vpop.f32.mrb[0].mxu0
  %v552 = vadd.f32 0.0, %v551
  %v553 = vpop.f32.mrb[0].mxu0
  %554 = vmatprep.mubr.bf16.mxu0 %v363
  %555 = vmatmul.mubr.bf16.gmra.mrb[0].mxu0 %v277
  %v556 = vpop.f32.mrb[0].mxu0
  %v557 = vadd.f32 0.0, %v556
  %v558 = vpop.f32.mrb[0].mxu0
  %v559 = vpop.f32.mrb[0].mxu0
  %v560 = vadd.f32 0.0, %v559
  %v561 = vpop.f32.mrb[0].mxu0
  %562 = vmatprep.mubr.bf16.mxu0 %v366
  %563 = vmatmul.mubr.bf16.gmra.mrb[0].mxu0 %v279
  %v564 = vpop.f32.mrb[0].mxu0
  %v565 = vadd.f32 0.0, %v564
  %v566 = vpop.f32.mrb[0].mxu0
  %v567 = vpop.f32.mrb[0].mxu0
  %v568 = vadd.f32 0.0, %v567
  %v569 = vpop.f32.mrb[0].mxu0
  %570 = vmatprep.mubr.bf16.mxu0 %v369
  %571 = vmatmul.mubr.bf16.gmra.mrb[0].mxu0 %v281
  %v572 = vpop.f32.mrb[0].mxu0
  %v573 = vadd.f32 0.0, %v572
  %v574 = vpop.f32.mrb[0].mxu0
  %v575 = vpop.f32.mrb[0].mxu0
  %v576 = vadd.f32 0.0, %v575
  %v577 = vpop.f32.mrb[0].mxu0
  %578 = vmatprep.mubr.bf16.mxu0 %v372
  %579 = vmatmul.mubr.bf16.gmra.mrb[0].mxu0 %v283
  %v580 = vpop.f32.mrb[0].mxu0
  %v581 = vadd.f32 0.0, %v580
  %v582 = vpop.f32.mrb[0].mxu0
  %v583 = vpop.f32.mrb[0].mxu0
  %v584 = vadd.f32 0.0, %v583
  %v585 = vpop.f32.mrb[0].mxu0
  %586 = vdwg.mxu0
  %v587 = vpack.c.bf16 %v416, %v413
  %v588 = vpack.c.bf16 %v424, %v421
  %v589 = vpack.c.bf16 %v432, %v429
  %v590 = vpack.c.bf16 %v440, %v437
  %v591 = vpack.c.bf16 %v448, %v445
  %v592 = vpack.c.bf16 %v456, %v453
  %v593 = vpack.c.bf16 %v464, %v461
  %v594 = vpack.c.bf16 %v472, %v469
  %v595 = vpack.c.bf16 %v480, %v477
  %v596 = vpack.c.bf16 %v488, %v485
  %v597 = vpack.c.bf16 %v496, %v493
  %v598 = vpack.c.bf16 %v504, %v501
  %v599 = vpack.c.bf16 %v512, %v509
  %v600 = vpack.c.bf16 %v520, %v517
  %v601 = vpack.c.bf16 %v528, %v525
  %v602 = vpack.c.bf16 %v536, %v533
  %v603 = vpack.c.bf16 %v544, %v541
  %v604 = vpack.c.bf16 %v552, %v549
  %v605 = vpack.c.bf16 %v560, %v557
  %v606 = vpack.c.bf16 %v568, %v565
  %v607 = vpack.c.bf16 %v576, %v573
  %v608 = vpack.c.bf16 %v584, %v581
  %v609 = vld [vmem:[%s3] sm:$0xff]
  %v610 = vld [vmem:[%s3 + $0x8] sm:$0xf]
  %v611 = vld [vmem:[%s3 + $0xc] sm:$0xff]
  %v612 = vld [vmem:[%s3 + $0x14] sm:$0xf]
  %v613 = vld [vmem:[%s3 + $0x18] sm:$0xff]
  %v614 = vld [vmem:[%s3 + $0x20] sm:$0xf]
  %v615 = vld [vmem:[%s3 + $0x24] sm:$0xff]
  %v616 = vld [vmem:[%s3 + $0x2c] sm:$0xf]
  %v617 = vld [vmem:[%s3 + $0x30] sm:$0xff]
  %v618 = vld [vmem:[%s3 + $0x38] sm:$0xf]
  %v619 = vld [vmem:[%s3 + $0x3c] sm:$0xff]
  %v620 = vld [vmem:[%s3 + $0x44] sm:$0xf]
  %v633 = vunpack.c.l.b16 %v609
  %v634 = vunpack.c.h.b16 %v609
  %v635 = vunpack.c.l.b16 %v610
  %v636 = vunpack.c.l.b16 %v611
  %v637 = vunpack.c.h.b16 %v611
  %v638 = vunpack.c.l.b16 %v612
  %v639 = vunpack.c.l.b16 %v613
  %v640 = vunpack.c.h.b16 %v613
  %v641 = vunpack.c.l.b16 %v614
  %v642 = vunpack.c.l.b16 %v615
  %v643 = vunpack.c.h.b16 %v615
  %v644 = vunpack.c.l.b16 %v616
  %v645 = vunpack.c.l.b16 %v617
  %v646 = vunpack.c.h.b16 %v617
  %v647 = vunpack.c.l.b16 %v618
  %v648 = vunpack.c.l.b16 %v619
  %v649 = vunpack.c.h.b16 %v619
  %v650 = vunpack.c.l.b16 %v620
  %v651 = vpack.c.b16 %v636, %v633
  %v652 = vpack.c.b16 %v637, %v634
  %v653 = vpack.c.b16 %v638, %v635
  %v654 = vpack.c.b16 %v642, %v639
  %v655 = vpack.c.b16 %v643, %v640
  %v656 = vpack.c.b16 %v644, %v641
  %v657 = vpack.c.b16 %v648, %v645
  %v658 = vpack.c.b16 %v649, %v646
  %v659 = vpack.c.b16 %v650, %v647
  %vm669 = vcmask 392192
  %v671 = vsel %vm669, %v587, 0
  %v674 = vsel %vm669, %v588, 0
  %v677 = vsel %vm669, %v589, 0
  %v680 = vsel %vm669, %v590, 0
  %v683 = vsel %vm669, %v591, 0
  %v686 = vsel %vm669, %v592, 0
  %v689 = vsel %vm669, %v593, 0
  %v692 = vsel %vm669, %v594, 0
  %v695 = vsel %vm669, %v595, 0
  %v698 = vsel %vm669, %v596, 0
  %v701 = vsel %vm669, %v597, 0
  %v704 = vsel %vm669, %v598, 0
  %v707 = vsel %vm669, %v599, 0
  %v710 = vsel %vm669, %v600, 0
  %v713 = vsel %vm669, %v601, 0
  %v716 = vsel %vm669, %v602, 0
  %v719 = vsel %vm669, %v603, 0
  %v722 = vsel %vm669, %v604, 0
  %v725 = vsel %vm669, %v605, 0
  %v728 = vsel %vm669, %v606, 0
  %v731 = vsel %vm669, %v607, 0
  %v734 = vsel %vm669, %v608, 0
  %736 = vmatprep.subr.bf16.mxu0 %v652
  %737 = vmatpush1.bf16.msra.mxu0 %v651
  %738 = vmatprep.subr.bf16.mxu0 %v655
  %739 = vmatpush1.bf16.msra.mxu0 %v654
  %740 = vmatprep.subr.bf16.mxu0 %v658
  %741 = vmatpush1.bf16.msra.mxu0 %v657
  %742 = vmatprep.subr.bf16.mxu0 0
  %743 = vmatpush1.bf16.msra.mxu0 0
  %744 = vmatprep.subr.bf16.mxu0 0
  %745 = vmatpush1.bf16.msra.mxu0 0
  %746 = vmatprep.subr.bf16.mxu0 0
  %747 = vmatpush1.bf16.msra.mxu0 0
  %748 = vmatprep.subr.bf16.mxu0 0
  %749 = vmatpush1.bf16.msra.mxu0 0
  %750 = vmatprep.subr.bf16.mxu0 0
  %751 = vmatpush1.bf16.msra.mxu0 0
  %752 = vmatprep.subr.bf16.mxu0 0
  %753 = vmatpush1.bf16.msra.mxu0 0
  %754 = vmatprep.subr.bf16.mxu0 0
  %755 = vmatpush1.bf16.msra.mxu0 0
  %756 = vmatprep.subr.bf16.mxu0 0
  %757 = vmatpush1.bf16.msra.mxu0 0
  %758 = vmatprep.subr.bf16.mxu0 0
  %759 = vmatpush1.bf16.msra.mxu0 0
  %760 = vmatprep.subr.bf16.mxu0 0
  %761 = vmatpush1.bf16.msra.mxu0 0
  %762 = vmatprep.subr.bf16.mxu0 0
  %763 = vmatpush1.bf16.msra.mxu0 0
  %764 = vmatprep.subr.bf16.mxu0 0
  %765 = vmatpush1.bf16.msra.mxu0 0
  %766 = vmatprep.subr.bf16.mxu0 0
  %767 = vmatpush1.bf16.msra.mxu0 0
  %768 = vmatprep.mubr.bf16.mxu0 0
  %769 = vmatmul.mubr.bf16.gmra.mrb[0].mxu0 %v671
  %v770 = vpop.f32.mrb[0].mxu0
  %v771 = vadd.f32 0.0, %v770
  %v772 = vpop.f32.mrb[0].mxu0
  %v773 = vadd.f32 0.0, %v772
  %v774 = vpop.f32.mrb[0].mxu0
  %v775 = vadd.f32 0.0, %v774
  %v776 = vpop.f32.mrb[0].mxu0
  %v777 = vadd.f32 0.0, %v776
  %778 = vmatprep.mubr.bf16.mxu0 0
  %779 = vmatmul.mubr.bf16.gmra.mrb[0].mxu0 %v674
  %v780 = vpop.f32.mrb[0].mxu0
  %v781 = vadd.f32 0.0, %v780
  %v782 = vpop.f32.mrb[0].mxu0
  %v783 = vadd.f32 0.0, %v782
  %v784 = vpop.f32.mrb[0].mxu0
  %v785 = vadd.f32 0.0, %v784
  %v786 = vpop.f32.mrb[0].mxu0
  %v787 = vadd.f32 0.0, %v786
  %788 = vmatprep.mubr.bf16.mxu0 0
  %789 = vmatmul.mubr.bf16.gmra.mrb[0].mxu0 %v677
  %v790 = vpop.f32.mrb[0].mxu0
  %v791 = vadd.f32 0.0, %v790
  %v792 = vpop.f32.mrb[0].mxu0
  %v793 = vadd.f32 0.0, %v792
  %v794 = vpop.f32.mrb[0].mxu0
  %v795 = vadd.f32 0.0, %v794
  %v796 = vpop.f32.mrb[0].mxu0
  %v797 = vadd.f32 0.0, %v796
  %798 = vmatprep.mubr.bf16.mxu0 0
  %799 = vmatmul.mubr.bf16.gmra.mrb[0].mxu0 %v680
  %v800 = vpop.f32.mrb[0].mxu0
  %v801 = vadd.f32 0.0, %v800
  %v802 = vpop.f32.mrb[0].mxu0
  %v803 = vadd.f32 0.0, %v802
  %v804 = vpop.f32.mrb[0].mxu0
  %v805 = vadd.f32 0.0, %v804
  %v806 = vpop.f32.mrb[0].mxu0
  %v807 = vadd.f32 0.0, %v806
  %808 = vmatprep.mubr.bf16.mxu0 0
  %809 = vmatmul.mubr.bf16.gmra.mrb[0].mxu0 %v683
  %v810 = vpop.f32.mrb[0].mxu0
  %v811 = vadd.f32 0.0, %v810
  %v812 = vpop.f32.mrb[0].mxu0
  %v813 = vadd.f32 0.0, %v812
  %v814 = vpop.f32.mrb[0].mxu0
  %v815 = vadd.f32 0.0, %v814
  %v816 = vpop.f32.mrb[0].mxu0
  %v817 = vadd.f32 0.0, %v816
  %818 = vmatprep.mubr.bf16.mxu0 0
  %819 = vmatmul.mubr.bf16.gmra.mrb[0].mxu0 %v686
  %v820 = vpop.f32.mrb[0].mxu0
  %v821 = vadd.f32 0.0, %v820
  %v822 = vpop.f32.mrb[0].mxu0
  %v823 = vadd.f32 0.0, %v822
  %v824 = vpop.f32.mrb[0].mxu0
  %v825 = vadd.f32 0.0, %v824
  %v826 = vpop.f32.mrb[0].mxu0
  %v827 = vadd.f32 0.0, %v826
  %828 = vmatprep.mubr.bf16.mxu0 0
  %829 = vmatmul.mubr.bf16.gmra.mrb[0].mxu0 %v689
  %v830 = vpop.f32.mrb[0].mxu0
  %v831 = vadd.f32 0.0, %v830
  %v832 = vpop.f32.mrb[0].mxu0
  %v833 = vadd.f32 0.0, %v832
  %v834 = vpop.f32.mrb[0].mxu0
  %v835 = vadd.f32 0.0, %v834
  %v836 = vpop.f32.mrb[0].mxu0
  %v837 = vadd.f32 0.0, %v836
  %838 = vmatprep.mubr.bf16.mxu0 0
  %839 = vmatmul.mubr.bf16.gmra.mrb[0].mxu0 %v692
  %v840 = vpop.f32.mrb[0].mxu0
  %v841 = vadd.f32 0.0, %v840
  %v842 = vpop.f32.mrb[0].mxu0
  %v843 = vadd.f32 0.0, %v842
  %v844 = vpop.f32.mrb[0].mxu0
  %v845 = vadd.f32 0.0, %v844
  %v846 = vpop.f32.mrb[0].mxu0
  %v847 = vadd.f32 0.0, %v846
  %848 = vmatprep.mubr.bf16.mxu0 0
  %849 = vmatmul.mubr.bf16.gmra.mrb[0].mxu0 %v695
  %v850 = vpop.f32.mrb[0].mxu0
  %v851 = vadd.f32 0.0, %v850
  %v852 = vpop.f32.mrb[0].mxu0
  %v853 = vadd.f32 0.0, %v852
  %v854 = vpop.f32.mrb[0].mxu0
  %v855 = vadd.f32 0.0, %v854
  %v856 = vpop.f32.mrb[0].mxu0
  %v857 = vadd.f32 0.0, %v856
  %858 = vmatprep.mubr.bf16.mxu0 0
  %859 = vmatmul.mubr.bf16.gmra.mrb[0].mxu0 %v698
  %v860 = vpop.f32.mrb[0].mxu0
  %v861 = vadd.f32 0.0, %v860
  %v862 = vpop.f32.mrb[0].mxu0
  %v863 = vadd.f32 0.0, %v862
  %v864 = vpop.f32.mrb[0].mxu0
  %v865 = vadd.f32 0.0, %v864
  %v866 = vpop.f32.mrb[0].mxu0
  %v867 = vadd.f32 0.0, %v866
  %868 = vmatprep.mubr.bf16.mxu0 0
  %869 = vmatmul.mubr.bf16.gmra.mrb[0].mxu0 %v701
  %v870 = vpop.f32.mrb[0].mxu0
  %v871 = vadd.f32 0.0, %v870
  %v872 = vpop.f32.mrb[0].mxu0
  %v873 = vadd.f32 0.0, %v872
  %v874 = vpop.f32.mrb[0].mxu0
  %v875 = vadd.f32 0.0, %v874
  %v876 = vpop.f32.mrb[0].mxu0
  %v877 = vadd.f32 0.0, %v876
  %878 = vmatprep.mubr.bf16.mxu0 0
  %879 = vmatmul.mubr.bf16.gmra.mrb[0].mxu0 %v704
  %v880 = vpop.f32.mrb[0].mxu0
  %v881 = vadd.f32 0.0, %v880
  %v882 = vpop.f32.mrb[0].mxu0
  %v883 = vadd.f32 0.0, %v882
  %v884 = vpop.f32.mrb[0].mxu0
  %v885 = vadd.f32 0.0, %v884
  %v886 = vpop.f32.mrb[0].mxu0
  %v887 = vadd.f32 0.0, %v886
  %888 = vmatprep.mubr.bf16.mxu0 0
  %889 = vmatmul.mubr.bf16.gmra.mrb[0].mxu0 %v707
  %v890 = vpop.f32.mrb[0].mxu0
  %v891 = vadd.f32 0.0, %v890
  %v892 = vpop.f32.mrb[0].mxu0
  %v893 = vadd.f32 0.0, %v892
  %v894 = vpop.f32.mrb[0].mxu0
  %v895 = vadd.f32 0.0, %v894
  %v896 = vpop.f32.mrb[0].mxu0
  %v897 = vadd.f32 0.0, %v896
  %898 = vmatprep.mubr.bf16.mxu0 0
  %899 = vmatmul.mubr.bf16.gmra.mrb[0].mxu0 %v710
  %v900 = vpop.f32.mrb[0].mxu0
  %v901 = vadd.f32 0.0, %v900
  %v902 = vpop.f32.mrb[0].mxu0
  %v903 = vadd.f32 0.0, %v902
  %v904 = vpop.f32.mrb[0].mxu0
  %v905 = vadd.f32 0.0, %v904
  %v906 = vpop.f32.mrb[0].mxu0
  %v907 = vadd.f32 0.0, %v906
  %908 = vmatprep.mubr.bf16.mxu0 0
  %909 = vmatmul.mubr.bf16.gmra.mrb[0].mxu0 %v713
  %v910 = vpop.f32.mrb[0].mxu0
  %v911 = vadd.f32 0.0, %v910
  %v912 = vpop.f32.mrb[0].mxu0
  %v913 = vadd.f32 0.0, %v912
  %v914 = vpop.f32.mrb[0].mxu0
  %v915 = vadd.f32 0.0, %v914
  %v916 = vpop.f32.mrb[0].mxu0
  %v917 = vadd.f32 0.0, %v916
  %918 = vmatprep.mubr.bf16.mxu0 0
  %919 = vmatmul.mubr.bf16.gmra.mrb[0].mxu0 %v716
  %v920 = vpop.f32.mrb[0].mxu0
  %v921 = vadd.f32 0.0, %v920
  %v922 = vpop.f32.mrb[0].mxu0
  %v923 = vadd.f32 0.0, %v922
  %v924 = vpop.f32.mrb[0].mxu0
  %v925 = vadd.f32 0.0, %v924
  %v926 = vpop.f32.mrb[0].mxu0
  %v927 = vadd.f32 0.0, %v926
  %928 = vmatprep.mubr.bf16.mxu0 0
  %929 = vmatmul.mubr.bf16.gmra.mrb[0].mxu0 %v719
  %v930 = vpop.f32.mrb[0].mxu0
  %v931 = vadd.f32 0.0, %v930
  %v932 = vpop.f32.mrb[0].mxu0
  %v933 = vadd.f32 0.0, %v932
  %v934 = vpop.f32.mrb[0].mxu0
  %v935 = vadd.f32 0.0, %v934
  %v936 = vpop.f32.mrb[0].mxu0
  %v937 = vadd.f32 0.0, %v936
  %938 = vmatprep.mubr.bf16.mxu0 0
  %939 = vmatmul.mubr.bf16.gmra.mrb[0].mxu0 %v722
  %v940 = vpop.f32.mrb[0].mxu0
  %v941 = vadd.f32 0.0, %v940
  %v942 = vpop.f32.mrb[0].mxu0
  %v943 = vadd.f32 0.0, %v942
  %v944 = vpop.f32.mrb[0].mxu0
  %v945 = vadd.f32 0.0, %v944
  %v946 = vpop.f32.mrb[0].mxu0
  %v947 = vadd.f32 0.0, %v946
  %948 = vmatprep.mubr.bf16.mxu0 0
  %949 = vmatmul.mubr.bf16.gmra.mrb[0].mxu0 %v725
  %v950 = vpop.f32.mrb[0].mxu0
  %v951 = vadd.f32 0.0, %v950
  %v952 = vpop.f32.mrb[0].mxu0
  %v953 = vadd.f32 0.0, %v952
  %v954 = vpop.f32.mrb[0].mxu0
  %v955 = vadd.f32 0.0, %v954
  %v956 = vpop.f32.mrb[0].mxu0
  %v957 = vadd.f32 0.0, %v956
  %958 = vmatprep.mubr.bf16.mxu0 0
  %959 = vmatmul.mubr.bf16.gmra.mrb[0].mxu0 %v728
  %v960 = vpop.f32.mrb[0].mxu0
  %v961 = vadd.f32 0.0, %v960
  %v962 = vpop.f32.mrb[0].mxu0
  %v963 = vadd.f32 0.0, %v962
  %v964 = vpop.f32.mrb[0].mxu0
  %v965 = vadd.f32 0.0, %v964
  %v966 = vpop.f32.mrb[0].mxu0
  %v967 = vadd.f32 0.0, %v966
  %968 = vmatprep.mubr.bf16.mxu0 0
  %969 = vmatmul.mubr.bf16.gmra.mrb[0].mxu0 %v731
  %v970 = vpop.f32.mrb[0].mxu0
  %v971 = vadd.f32 0.0, %v970
  %v972 = vpop.f32.mrb[0].mxu0
  %v973 = vadd.f32 0.0, %v972
  %v974 = vpop.f32.mrb[0].mxu0
  %v975 = vadd.f32 0.0, %v974
  %v976 = vpop.f32.mrb[0].mxu0
  %v977 = vadd.f32 0.0, %v976
  %978 = vmatprep.mubr.bf16.mxu0 0
  %979 = vmatmul.mubr.bf16.gmra.mrb[0].mxu0 %v734
  %v980 = vpop.f32.mrb[0].mxu0
  %v981 = vadd.f32 0.0, %v980
  %v982 = vpop.f32.mrb[0].mxu0
  %v983 = vadd.f32 0.0, %v982
  %v984 = vpop.f32.mrb[0].mxu0
  %v985 = vadd.f32 0.0, %v984
  %v986 = vpop.f32.mrb[0].mxu0
  %v987 = vadd.f32 0.0, %v986
  %988 = vdwg.mxu0
  %989 = vmatprep.subr.bf16.mxu0 0
  %990 = vmatpush1.bf16.msra.mxu0 %v653
  %991 = vmatprep.subr.bf16.mxu0 0
  %992 = vmatpush1.bf16.msra.mxu0 %v656
  %993 = vmatprep.subr.bf16.mxu0 0
  %994 = vmatpush1.bf16.msra.mxu0 %v659
  %995 = vmatprep.subr.bf16.mxu0 0
  %996 = vmatpush1.bf16.msra.mxu0 0
  %997 = vmatprep.subr.bf16.mxu0 0
  %998 = vmatpush1.bf16.msra.mxu0 0
  %999 = vmatprep.subr.bf16.mxu0 0
  %1000 = vmatpush1.bf16.msra.mxu0 0
  %1001 = vmatprep.subr.bf16.mxu0 0
  %1002 = vmatpush1.bf16.msra.mxu0 0
  %1003 = vmatprep.subr.bf16.mxu0 0
  %1004 = vmatpush1.bf16.msra.mxu0 0
  %1005 = vmatprep.subr.bf16.mxu0 0
  %1006 = vmatpush1.bf16.msra.mxu0 0
  %1007 = vmatprep.subr.bf16.mxu0 0
  %1008 = vmatpush1.bf16.msra.mxu0 0
  %1009 = vmatprep.subr.bf16.mxu0 0
  %1010 = vmatpush1.bf16.msra.mxu0 0
  %1011 = vmatprep.subr.bf16.mxu0 0
  %1012 = vmatpush1.bf16.msra.mxu0 0
  %1013 = vmatprep.subr.bf16.mxu0 0
  %1014 = vmatpush1.bf16.msra.mxu0 0
  %1015 = vmatprep.subr.bf16.mxu0 0
  %1016 = vmatpush1.bf16.msra.mxu0 0
  %1017 = vmatprep.subr.bf16.mxu0 0
  %1018 = vmatpush1.bf16.msra.mxu0 0
  %1019 = vmatprep.subr.bf16.mxu0 0
  %1020 = vmatpush1.bf16.msra.mxu0 0
  %1021 = vmatprep.mubr.bf16.mxu0 0
  %1022 = vmatmul.mubr.bf16.gmra.mrb[0].mxu0 %v671
  %v1023 = vpop.f32.mrb[0].mxu0
  %v1024 = vadd.f32 0.0, %v1023
  %v1025 = vpop.f32.mrb[0].mxu0
  %v1026 = vpop.f32.mrb[0].mxu0
  %v1027 = vadd.f32 0.0, %v1026
  %v1028 = vpop.f32.mrb[0].mxu0
  %1029 = vmatprep.mubr.bf16.mxu0 0
  %1030 = vmatmul.mubr.bf16.gmra.mrb[0].mxu0 %v674
  %v1031 = vpop.f32.mrb[0].mxu0
  %v1032 = vadd.f32 0.0, %v1031
  %v1033 = vpop.f32.mrb[0].mxu0
  %v1034 = vpop.f32.mrb[0].mxu0
  %v1035 = vadd.f32 0.0, %v1034
  %v1036 = vpop.f32.mrb[0].mxu0
  %1037 = vmatprep.mubr.bf16.mxu0 0
  %1038 = vmatmul.mubr.bf16.gmra.mrb[0].mxu0 %v677
  %v1039 = vpop.f32.mrb[0].mxu0
  %v1040 = vadd.f32 0.0, %v1039
  %v1041 = vpop.f32.mrb[0].mxu0
  %v1042 = vpop.f32.mrb[0].mxu0
  %v1043 = vadd.f32 0.0, %v1042
  %v1044 = vpop.f32.mrb[0].mxu0
  %1045 = vmatprep.mubr.bf16.mxu0 0
  %1046 = vmatmul.mubr.bf16.gmra.mrb[0].mxu0 %v680
  %v1047 = vpop.f32.mrb[0].mxu0
  %v1048 = vadd.f32 0.0, %v1047
  %v1049 = vpop.f32.mrb[0].mxu0
  %v1050 = vpop.f32.mrb[0].mxu0
  %v1051 = vadd.f32 0.0, %v1050
  %v1052 = vpop.f32.mrb[0].mxu0
  %1053 = vmatprep.mubr.bf16.mxu0 0
  %1054 = vmatmul.mubr.bf16.gmra.mrb[0].mxu0 %v683
  %v1055 = vpop.f32.mrb[0].mxu0
  %v1056 = vadd.f32 0.0, %v1055
  %v1057 = vpop.f32.mrb[0].mxu0
  %v1058 = vpop.f32.mrb[0].mxu0
  %v1059 = vadd.f32 0.0, %v1058
  %v1060 = vpop.f32.mrb[0].mxu0
  %1061 = vmatprep.mubr.bf16.mxu0 0
  %1062 = vmatmul.mubr.bf16.gmra.mrb[0].mxu0 %v686
  %v1063 = vpop.f32.mrb[0].mxu0
  %v1064 = vadd.f32 0.0, %v1063
  %v1065 = vpop.f32.mrb[0].mxu0
  %v1066 = vpop.f32.mrb[0].mxu0
  %v1067 = vadd.f32 0.0, %v1066
  %v1068 = vpop.f32.mrb[0].mxu0
  %1069 = vmatprep.mubr.bf16.mxu0 0
  %1070 = vmatmul.mubr.bf16.gmra.mrb[0].mxu0 %v689
  %v1071 = vpop.f32.mrb[0].mxu0
  %v1072 = vadd.f32 0.0, %v1071
  %v1073 = vpop.f32.mrb[0].mxu0
  %v1074 = vpop.f32.mrb[0].mxu0
  %v1075 = vadd.f32 0.0, %v1074
  %v1076 = vpop.f32.mrb[0].mxu0
  %1077 = vmatprep.mubr.bf16.mxu0 0
  %1078 = vmatmul.mubr.bf16.gmra.mrb[0].mxu0 %v692
  %v1079 = vpop.f32.mrb[0].mxu0
  %v1080 = vadd.f32 0.0, %v1079
  %v1081 = vpop.f32.mrb[0].mxu0
  %v1082 = vpop.f32.mrb[0].mxu0
  %v1083 = vadd.f32 0.0, %v1082
  %v1084 = vpop.f32.mrb[0].mxu0
  %1085 = vmatprep.mubr.bf16.mxu0 0
  %1086 = vmatmul.mubr.bf16.gmra.mrb[0].mxu0 %v695
  %v1087 = vpop.f32.mrb[0].mxu0
  %v1088 = vadd.f32 0.0, %v1087
  %v1089 = vpop.f32.mrb[0].mxu0
  %v1090 = vpop.f32.mrb[0].mxu0
  %v1091 = vadd.f32 0.0, %v1090
  %v1092 = vpop.f32.mrb[0].mxu0
  %1093 = vmatprep.mubr.bf16.mxu0 0
  %1094 = vmatmul.mubr.bf16.gmra.mrb[0].mxu0 %v698
  %v1095 = vpop.f32.mrb[0].mxu0
  %v1096 = vadd.f32 0.0, %v1095
  %v1097 = vpop.f32.mrb[0].mxu0
  %v1098 = vpop.f32.mrb[0].mxu0
  %v1099 = vadd.f32 0.0, %v1098
  %v1100 = vpop.f32.mrb[0].mxu0
  %1101 = vmatprep.mubr.bf16.mxu0 0
  %1102 = vmatmul.mubr.bf16.gmra.mrb[0].mxu0 %v701
  %v1103 = vpop.f32.mrb[0].mxu0
  %v1104 = vadd.f32 0.0, %v1103
  %v1105 = vpop.f32.mrb[0].mxu0
  %v1106 = vpop.f32.mrb[0].mxu0
  %v1107 = vadd.f32 0.0, %v1106
  %v1108 = vpop.f32.mrb[0].mxu0
  %1109 = vmatprep.mubr.bf16.mxu0 0
  %1110 = vmatmul.mubr.bf16.gmra.mrb[0].mxu0 %v704
  %v1111 = vpop.f32.mrb[0].mxu0
  %v1112 = vadd.f32 0.0, %v1111
  %v1113 = vpop.f32.mrb[0].mxu0
  %v1114 = vpop.f32.mrb[0].mxu0
  %v1115 = vadd.f32 0.0, %v1114
  %v1116 = vpop.f32.mrb[0].mxu0
  %1117 = vmatprep.mubr.bf16.mxu0 0
  %1118 = vmatmul.mubr.bf16.gmra.mrb[0].mxu0 %v707
  %v1119 = vpop.f32.mrb[0].mxu0
  %v1120 = vadd.f32 0.0, %v1119
  %v1121 = vpop.f32.mrb[0].mxu0
  %v1122 = vpop.f32.mrb[0].mxu0
  %v1123 = vadd.f32 0.0, %v1122
  %v1124 = vpop.f32.mrb[0].mxu0
  %1125 = vmatprep.mubr.bf16.mxu0 0
  %1126 = vmatmul.mubr.bf16.gmra.mrb[0].mxu0 %v710
  %v1127 = vpop.f32.mrb[0].mxu0
  %v1128 = vadd.f32 0.0, %v1127
  %v1129 = vpop.f32.mrb[0].mxu0
  %v1130 = vpop.f32.mrb[0].mxu0
  %v1131 = vadd.f32 0.0, %v1130
  %v1132 = vpop.f32.mrb[0].mxu0
  %1133 = vmatprep.mubr.bf16.mxu0 0
  %1134 = vmatmul.mubr.bf16.gmra.mrb[0].mxu0 %v713
  %v1135 = vpop.f32.mrb[0].mxu0
  %v1136 = vadd.f32 0.0, %v1135
  %v1137 = vpop.f32.mrb[0].mxu0
  %v1138 = vpop.f32.mrb[0].mxu0
  %v1139 = vadd.f32 0.0, %v1138
  %v1140 = vpop.f32.mrb[0].mxu0
  %1141 = vmatprep.mubr.bf16.mxu0 0
  %1142 = vmatmul.mubr.bf16.gmra.mrb[0].mxu0 %v716
  %v1143 = vpop.f32.mrb[0].mxu0
  %v1144 = vadd.f32 0.0, %v1143
  %v1145 = vpop.f32.mrb[0].mxu0
  %v1146 = vpop.f32.mrb[0].mxu0
  %v1147 = vadd.f32 0.0, %v1146
  %v1148 = vpop.f32.mrb[0].mxu0
  %1149 = vmatprep.mubr.bf16.mxu0 0
  %1150 = vmatmul.mubr.bf16.gmra.mrb[0].mxu0 %v719
  %v1151 = vpop.f32.mrb[0].mxu0
  %v1152 = vadd.f32 0.0, %v1151
  %v1153 = vpop.f32.mrb[0].mxu0
  %v1154 = vpop.f32.mrb[0].mxu0
  %v1155 = vadd.f32 0.0, %v1154
  %v1156 = vpop.f32.mrb[0].mxu0
  %1157 = vmatprep.mubr.bf16.mxu0 0
  %1158 = vmatmul.mubr.bf16.gmra.mrb[0].mxu0 %v722
  %v1159 = vpop.f32.mrb[0].mxu0
  %v1160 = vadd.f32 0.0, %v1159
  %v1161 = vpop.f32.mrb[0].mxu0
  %v1162 = vpop.f32.mrb[0].mxu0
  %v1163 = vadd.f32 0.0, %v1162
  %v1164 = vpop.f32.mrb[0].mxu0
  %1165 = vmatprep.mubr.bf16.mxu0 0
  %1166 = vmatmul.mubr.bf16.gmra.mrb[0].mxu0 %v725
  %v1167 = vpop.f32.mrb[0].mxu0
  %v1168 = vadd.f32 0.0, %v1167
  %v1169 = vpop.f32.mrb[0].mxu0
  %v1170 = vpop.f32.mrb[0].mxu0
  %v1171 = vadd.f32 0.0, %v1170
  %v1172 = vpop.f32.mrb[0].mxu0
  %1173 = vmatprep.mubr.bf16.mxu0 0
  %1174 = vmatmul.mubr.bf16.gmra.mrb[0].mxu0 %v728
  %v1175 = vpop.f32.mrb[0].mxu0
  %v1176 = vadd.f32 0.0, %v1175
  %v1177 = vpop.f32.mrb[0].mxu0
  %v1178 = vpop.f32.mrb[0].mxu0
  %v1179 = vadd.f32 0.0, %v1178
  %v1180 = vpop.f32.mrb[0].mxu0
  %1181 = vmatprep.mubr.bf16.mxu0 0
  %1182 = vmatmul.mubr.bf16.gmra.mrb[0].mxu0 %v731
  %v1183 = vpop.f32.mrb[0].mxu0
  %v1184 = vadd.f32 0.0, %v1183
  %v1185 = vpop.f32.mrb[0].mxu0
  %v1186 = vpop.f32.mrb[0].mxu0
  %v1187 = vadd.f32 0.0, %v1186
  %v1188 = vpop.f32.mrb[0].mxu0
  %1189 = vmatprep.mubr.bf16.mxu0 0
  %1190 = vmatmul.mubr.bf16.gmra.mrb[0].mxu0 %v734
  %v1191 = vpop.f32.mrb[0].mxu0
  %v1192 = vadd.f32 0.0, %v1191
  %v1193 = vpop.f32.mrb[0].mxu0
  %v1194 = vpop.f32.mrb[0].mxu0
  %v1195 = vadd.f32 0.0, %v1194
  %v1196 = vpop.f32.mrb[0].mxu0
  %1197 = vdwg.mxu0
  %v1198 = vadd.f32 %v771, %v775
  %v1199 = vadd.f32 %v1198, %v781
  %v1200 = vadd.f32 %v1199, %v785
  %v1201 = vadd.f32 %v1200, %v791
  %v1202 = vadd.f32 %v1201, %v795
  %v1203 = vadd.f32 %v1202, %v801
  %v1204 = vadd.f32 %v1203, %v805
  %v1205 = vadd.f32 %v1204, %v811
  %v1206 = vadd.f32 %v1205, %v815
  %v1207 = vadd.f32 %v1206, %v821
  %v1208 = vadd.f32 %v1207, %v825
  %v1209 = vadd.f32 %v1208, %v831
  %v1210 = vadd.f32 %v1209, %v835
  %v1211 = vadd.f32 %v1210, %v841
  %v1212 = vadd.f32 %v1211, %v845
  %v1213 = vadd.f32 %v1212, %v851
  %v1214 = vadd.f32 %v1213, %v855
  %v1215 = vadd.f32 %v1214, %v861
  %v1216 = vadd.f32 %v1215, %v865
  %v1217 = vadd.f32 %v1216, %v871
  %v1218 = vadd.f32 %v1217, %v875
  %v1219 = vadd.f32 %v1218, %v881
  %v1220 = vadd.f32 %v1219, %v885
  %v1221 = vadd.f32 %v1220, %v891
  %v1222 = vadd.f32 %v1221, %v895
  %v1223 = vadd.f32 %v1222, %v901
  %v1224 = vadd.f32 %v1223, %v905
  %v1225 = vadd.f32 %v1224, %v911
  %v1226 = vadd.f32 %v1225, %v915
  %v1227 = vadd.f32 %v1226, %v921
  %v1228 = vadd.f32 %v1227, %v925
  %v1229 = vadd.f32 %v1228, %v931
  %v1230 = vadd.f32 %v1229, %v935
  %v1231 = vadd.f32 %v1230, %v941
  %v1232 = vadd.f32 %v1231, %v945
  %v1233 = vadd.f32 %v1232, %v951
  %v1234 = vadd.f32 %v1233, %v955
  %v1235 = vadd.f32 %v1234, %v961
  %v1236 = vadd.f32 %v1235, %v965
  %v1237 = vadd.f32 %v1236, %v971
  %v1238 = vadd.f32 %v1237, %v975
  %v1239 = vadd.f32 %v1238, %v981
  %v1240 = vadd.f32 %v1239, %v985
  %v1241 = vrot.slane %v1240, 4
  %v1242 = vadd.f32 %v1240, %v1241
  %v1243 = vrot.slane %v1242, 2
  %v1244 = vadd.f32 %v1242, %v1243
  %v1245 = vrot.slane %v1244, 1
  %v1246 = vadd.f32 %v1244, %v1245
  %v1247 = vadd.f32 %v773, %v777
  %v1248 = vadd.f32 %v1247, %v783
  %v1249 = vadd.f32 %v1248, %v787
  %v1250 = vadd.f32 %v1249, %v793
  %v1251 = vadd.f32 %v1250, %v797
  %v1252 = vadd.f32 %v1251, %v803
  %v1253 = vadd.f32 %v1252, %v807
  %v1254 = vadd.f32 %v1253, %v813
  %v1255 = vadd.f32 %v1254, %v817
  %v1256 = vadd.f32 %v1255, %v823
  %v1257 = vadd.f32 %v1256, %v827
  %v1258 = vadd.f32 %v1257, %v833
  %v1259 = vadd.f32 %v1258, %v837
  %v1260 = vadd.f32 %v1259, %v843
  %v1261 = vadd.f32 %v1260, %v847
  %v1262 = vadd.f32 %v1261, %v853
  %v1263 = vadd.f32 %v1262, %v857
  %v1264 = vadd.f32 %v1263, %v863
  %v1265 = vadd.f32 %v1264, %v867
  %v1266 = vadd.f32 %v1265, %v873
  %v1267 = vadd.f32 %v1266, %v877
  %v1268 = vadd.f32 %v1267, %v883
  %v1269 = vadd.f32 %v1268, %v887
  %v1270 = vadd.f32 %v1269, %v893
  %v1271 = vadd.f32 %v1270, %v897
  %v1272 = vadd.f32 %v1271, %v903
  %v1273 = vadd.f32 %v1272, %v907
  %v1274 = vadd.f32 %v1273, %v913
  %v1275 = vadd.f32 %v1274, %v917
  %v1276 = vadd.f32 %v1275, %v923
  %v1277 = vadd.f32 %v1276, %v927
  %v1278 = vadd.f32 %v1277, %v933
  %v1279 = vadd.f32 %v1278, %v937
  %v1280 = vadd.f32 %v1279, %v943
  %v1281 = vadd.f32 %v1280, %v947
  %v1282 = vadd.f32 %v1281, %v953
  %v1283 = vadd.f32 %v1282, %v957
  %v1284 = vadd.f32 %v1283, %v963
  %v1285 = vadd.f32 %v1284, %v967
  %v1286 = vadd.f32 %v1285, %v973
  %v1287 = vadd.f32 %v1286, %v977
  %v1288 = vadd.f32 %v1287, %v983
  %v1289 = vadd.f32 %v1288, %v987
  %v1290 = vrot.slane %v1289, 4
  %v1291 = vadd.f32 %v1289, %v1290
  %v1292 = vrot.slane %v1291, 2
  %v1293 = vadd.f32 %v1291, %v1292
  %v1294 = vrot.slane %v1293, 1
  %v1295 = vadd.f32 %v1293, %v1294
  %vm1296 = vcmask 261120
  %v1297 = vsel %vm1296, %v1024, 0.0
  %v1298 = vsel %vm1296, %v1027, 0.0
  %v1299 = vadd.f32 %v1297, %v1298
  %v1300 = vsel %vm1296, %v1032, 0.0
  %v1301 = vadd.f32 %v1299, %v1300
  %v1302 = vsel %vm1296, %v1035, 0.0
  %v1303 = vadd.f32 %v1301, %v1302
  %v1304 = vsel %vm1296, %v1040, 0.0
  %v1305 = vadd.f32 %v1303, %v1304
  %v1306 = vsel %vm1296, %v1043, 0.0
  %v1307 = vadd.f32 %v1305, %v1306
  %v1308 = vsel %vm1296, %v1048, 0.0
  %v1309 = vadd.f32 %v1307, %v1308
  %v1310 = vsel %vm1296, %v1051, 0.0
  %v1311 = vadd.f32 %v1309, %v1310
  %v1312 = vsel %vm1296, %v1056, 0.0
  %v1313 = vadd.f32 %v1311, %v1312
  %v1314 = vsel %vm1296, %v1059, 0.0
  %v1315 = vadd.f32 %v1313, %v1314
  %v1316 = vsel %vm1296, %v1064, 0.0
  %v1317 = vadd.f32 %v1315, %v1316
  %v1318 = vsel %vm1296, %v1067, 0.0
  %v1319 = vadd.f32 %v1317, %v1318
  %v1320 = vsel %vm1296, %v1072, 0.0
  %v1321 = vadd.f32 %v1319, %v1320
  %v1322 = vsel %vm1296, %v1075, 0.0
  %v1323 = vadd.f32 %v1321, %v1322
  %v1324 = vsel %vm1296, %v1080, 0.0
  %v1325 = vadd.f32 %v1323, %v1324
  %v1326 = vsel %vm1296, %v1083, 0.0
  %v1327 = vadd.f32 %v1325, %v1326
  %v1328 = vsel %vm1296, %v1088, 0.0
  %v1329 = vadd.f32 %v1327, %v1328
  %v1330 = vsel %vm1296, %v1091, 0.0
  %v1331 = vadd.f32 %v1329, %v1330
  %v1332 = vsel %vm1296, %v1096, 0.0
  %v1333 = vadd.f32 %v1331, %v1332
  %v1334 = vsel %vm1296, %v1099, 0.0
  %v1335 = vadd.f32 %v1333, %v1334
  %v1336 = vsel %vm1296, %v1104, 0.0
  %v1337 = vadd.f32 %v1335, %v1336
  %v1338 = vsel %vm1296, %v1107, 0.0
  %v1339 = vadd.f32 %v1337, %v1338
  %v1340 = vsel %vm1296, %v1112, 0.0
  %v1341 = vadd.f32 %v1339, %v1340
  %v1342 = vsel %vm1296, %v1115, 0.0
  %v1343 = vadd.f32 %v1341, %v1342
  %v1344 = vsel %vm1296, %v1120, 0.0
  %v1345 = vadd.f32 %v1343, %v1344
  %v1346 = vsel %vm1296, %v1123, 0.0
  %v1347 = vadd.f32 %v1345, %v1346
  %v1348 = vsel %vm1296, %v1128, 0.0
  %v1349 = vadd.f32 %v1347, %v1348
  %v1350 = vsel %vm1296, %v1131, 0.0
  %v1351 = vadd.f32 %v1349, %v1350
  %v1352 = vsel %vm1296, %v1136, 0.0
  %v1353 = vadd.f32 %v1351, %v1352
  %v1354 = vsel %vm1296, %v1139, 0.0
  %v1355 = vadd.f32 %v1353, %v1354
  %v1356 = vsel %vm1296, %v1144, 0.0
  %v1357 = vadd.f32 %v1355, %v1356
  %v1358 = vsel %vm1296, %v1147, 0.0
  %v1359 = vadd.f32 %v1357, %v1358
  %v1360 = vsel %vm1296, %v1152, 0.0
  %v1361 = vadd.f32 %v1359, %v1360
  %v1362 = vsel %vm1296, %v1155, 0.0
  %v1363 = vadd.f32 %v1361, %v1362
  %v1364 = vsel %vm1296, %v1160, 0.0
  %v1365 = vadd.f32 %v1363, %v1364
  %v1366 = vsel %vm1296, %v1163, 0.0
  %v1367 = vadd.f32 %v1365, %v1366
  %v1368 = vsel %vm1296, %v1168, 0.0
  %v1369 = vadd.f32 %v1367, %v1368
  %v1370 = vsel %vm1296, %v1171, 0.0
  %v1371 = vadd.f32 %v1369, %v1370
  %v1372 = vsel %vm1296, %v1176, 0.0
  %v1373 = vadd.f32 %v1371, %v1372
  %v1374 = vsel %vm1296, %v1179, 0.0
  %v1375 = vadd.f32 %v1373, %v1374
  %v1376 = vsel %vm1296, %v1184, 0.0
  %v1377 = vadd.f32 %v1375, %v1376
  %v1378 = vsel %vm1296, %v1187, 0.0
  %v1379 = vadd.f32 %v1377, %v1378
  %v1380 = vsel %vm1296, %v1192, 0.0
  %v1381 = vadd.f32 %v1379, %v1380
  %v1382 = vsel %vm1296, %v1195, 0.0
  %v1383 = vadd.f32 %v1381, %v1382
  %v1384 = vrot.slane %v1383, 4
  %v1385 = vadd.f32 %v1383, %v1384
  %v1386 = vrot.slane %v1385, 2
  %v1387 = vadd.f32 %v1385, %v1386
  %v1388 = vrot.slane %v1387, 1
  %v1389 = vadd.f32 %v1387, %v1388
  %v1390 = vmul.f32 %v1246, 0.0051020407
  %v1391 = vmul.f32 %v1295, 0.0051020407
  %v1392 = vmul.f32 %v1389, 0.0051020407
  %v1393 = vmul.f32 %v771, %v771
  %v1394 = vmul.f32 %v773, %v773
  %v1395 = vmul.f32 %v1024, %v1024
  %v1396 = vmul.f32 %v775, %v775
  %v1397 = vmul.f32 %v777, %v777
  %v1398 = vmul.f32 %v1027, %v1027
  %v1399 = vmul.f32 %v781, %v781
  %v1400 = vmul.f32 %v783, %v783
  %v1401 = vmul.f32 %v1032, %v1032
  %v1402 = vmul.f32 %v785, %v785
  %v1403 = vmul.f32 %v787, %v787
  %v1404 = vmul.f32 %v1035, %v1035
  %v1405 = vmul.f32 %v791, %v791
  %v1406 = vmul.f32 %v793, %v793
  %v1407 = vmul.f32 %v1040, %v1040
  %v1408 = vmul.f32 %v795, %v795
  %v1409 = vmul.f32 %v797, %v797
  %v1410 = vmul.f32 %v1043, %v1043
  %v1411 = vmul.f32 %v801, %v801
  %v1412 = vmul.f32 %v803, %v803
  %v1413 = vmul.f32 %v1048, %v1048
  %v1414 = vmul.f32 %v805, %v805
  %v1415 = vmul.f32 %v807, %v807
  %v1416 = vmul.f32 %v1051, %v1051
  %v1417 = vmul.f32 %v811, %v811
  %v1418 = vmul.f32 %v813, %v813
  %v1419 = vmul.f32 %v1056, %v1056
  %v1420 = vmul.f32 %v815, %v815
  %v1421 = vmul.f32 %v817, %v817
  %v1422 = vmul.f32 %v1059, %v1059
  %v1423 = vmul.f32 %v821, %v821
  %v1424 = vmul.f32 %v823, %v823
  %v1425 = vmul.f32 %v1064, %v1064
  %v1426 = vmul.f32 %v825, %v825
  %v1427 = vmul.f32 %v827, %v827
  %v1428 = vmul.f32 %v1067, %v1067
  %v1429 = vmul.f32 %v831, %v831
  %v1430 = vmul.f32 %v833, %v833
  %v1431 = vmul.f32 %v1072, %v1072
  %v1432 = vmul.f32 %v835, %v835
  %v1433 = vmul.f32 %v837, %v837
  %v1434 = vmul.f32 %v1075, %v1075
  %v1435 = vmul.f32 %v841, %v841
  %v1436 = vmul.f32 %v843, %v843
  %v1437 = vmul.f32 %v1080, %v1080
  %v1438 = vmul.f32 %v845, %v845
  %v1439 = vmul.f32 %v847, %v847
  %v1440 = vmul.f32 %v1083, %v1083
  %v1441 = vmul.f32 %v851, %v851
  %v1442 = vmul.f32 %v853, %v853
  %v1443 = vmul.f32 %v1088, %v1088
  %v1444 = vmul.f32 %v855, %v855
  %v1445 = vmul.f32 %v857, %v857
  %v1446 = vmul.f32 %v1091, %v1091
  %v1447 = vmul.f32 %v861, %v861
  %v1448 = vmul.f32 %v863, %v863
  %v1449 = vmul.f32 %v1096, %v1096
  %v1450 = vmul.f32 %v865, %v865
  %v1451 = vmul.f32 %v867, %v867
  %v1452 = vmul.f32 %v1099, %v1099
  %v1453 = vmul.f32 %v871, %v871
  %v1454 = vmul.f32 %v873, %v873
  %v1455 = vmul.f32 %v1104, %v1104
  %v1456 = vmul.f32 %v875, %v875
  %v1457 = vmul.f32 %v877, %v877
  %v1458 = vmul.f32 %v1107, %v1107
  %v1459 = vmul.f32 %v881, %v881
  %v1460 = vmul.f32 %v883, %v883
  %v1461 = vmul.f32 %v1112, %v1112
  %v1462 = vmul.f32 %v885, %v885
  %v1463 = vmul.f32 %v887, %v887
  %v1464 = vmul.f32 %v1115, %v1115
  %v1465 = vmul.f32 %v891, %v891
  %v1466 = vmul.f32 %v893, %v893
  %v1467 = vmul.f32 %v1120, %v1120
  %v1468 = vmul.f32 %v895, %v895
  %v1469 = vmul.f32 %v897, %v897
  %v1470 = vmul.f32 %v1123, %v1123
  %v1471 = vmul.f32 %v901, %v901
  %v1472 = vmul.f32 %v903, %v903
  %v1473 = vmul.f32 %v1128, %v1128
  %v1474 = vmul.f32 %v905, %v905
  %v1475 = vmul.f32 %v907, %v907
  %v1476 = vmul.f32 %v1131, %v1131
  %v1477 = vmul.f32 %v911, %v911
  %v1478 = vmul.f32 %v913, %v913
  %v1479 = vmul.f32 %v1136, %v1136
  %v1480 = vmul.f32 %v915, %v915
  %v1481 = vmul.f32 %v917, %v917
  %v1482 = vmul.f32 %v1139, %v1139
  %v1483 = vmul.f32 %v921, %v921
  %v1484 = vmul.f32 %v923, %v923
  %v1485 = vmul.f32 %v1144, %v1144
  %v1486 = vmul.f32 %v925, %v925
  %v1487 = vmul.f32 %v927, %v927
  %v1488 = vmul.f32 %v1147, %v1147
  %v1489 = vmul.f32 %v931, %v931
  %v1490 = vmul.f32 %v933, %v933
  %v1491 = vmul.f32 %v1152, %v1152
  %v1492 = vmul.f32 %v935, %v935
  %v1493 = vmul.f32 %v937, %v937
  %v1494 = vmul.f32 %v1155, %v1155
  %v1495 = vmul.f32 %v941, %v941
  %v1496 = vmul.f32 %v943, %v943
  %v1497 = vmul.f32 %v1160, %v1160
  %v1498 = vmul.f32 %v945, %v945
  %v1499 = vmul.f32 %v947, %v947
  %v1500 = vmul.f32 %v1163, %v1163
  %v1501 = vmul.f32 %v951, %v951
  %v1502 = vmul.f32 %v953, %v953
  %v1503 = vmul.f32 %v1168, %v1168
  %v1504 = vmul.f32 %v955, %v955
  %v1505 = vmul.f32 %v957, %v957
  %v1506 = vmul.f32 %v1171, %v1171
  %v1507 = vmul.f32 %v961, %v961
  %v1508 = vmul.f32 %v963, %v963
  %v1509 = vmul.f32 %v1176, %v1176
  %v1510 = vmul.f32 %v965, %v965
  %v1511 = vmul.f32 %v967, %v967
  %v1512 = vmul.f32 %v1179, %v1179
  %v1513 = vmul.f32 %v971, %v971
  %v1514 = vmul.f32 %v973, %v973
  %v1515 = vmul.f32 %v1184, %v1184
  %v1516 = vmul.f32 %v975, %v975
  %v1517 = vmul.f32 %v977, %v977
  %v1518 = vmul.f32 %v1187, %v1187
  %v1519 = vmul.f32 %v981, %v981
  %v1520 = vmul.f32 %v983, %v983
  %v1521 = vmul.f32 %v1192, %v1192
  %v1522 = vmul.f32 %v985, %v985
  %v1523 = vmul.f32 %v987, %v987
  %v1524 = vmul.f32 %v1195, %v1195
  %v1525 = vadd.f32 %v1393, %v1396
  %v1526 = vadd.f32 %v1525, %v1399
  %v1527 = vadd.f32 %v1526, %v1402
  %v1528 = vadd.f32 %v1527, %v1405
  %v1529 = vadd.f32 %v1528, %v1408
  %v1530 = vadd.f32 %v1529, %v1411
  %v1531 = vadd.f32 %v1530, %v1414
  %v1532 = vadd.f32 %v1531, %v1417
  %v1533 = vadd.f32 %v1532, %v1420
  %v1534 = vadd.f32 %v1533, %v1423
  %v1535 = vadd.f32 %v1534, %v1426
  %v1536 = vadd.f32 %v1535, %v1429
  %v1537 = vadd.f32 %v1536, %v1432
  %v1538 = vadd.f32 %v1537, %v1435
  %v1539 = vadd.f32 %v1538, %v1438
  %v1540 = vadd.f32 %v1539, %v1441
  %v1541 = vadd.f32 %v1540, %v1444
  %v1542 = vadd.f32 %v1541, %v1447
  %v1543 = vadd.f32 %v1542, %v1450
  %v1544 = vadd.f32 %v1543, %v1453
  %v1545 = vadd.f32 %v1544, %v1456
  %v1546 = vadd.f32 %v1545, %v1459
  %v1547 = vadd.f32 %v1546, %v1462
  %v1548 = vadd.f32 %v1547, %v1465
  %v1549 = vadd.f32 %v1548, %v1468
  %v1550 = vadd.f32 %v1549, %v1471
  %v1551 = vadd.f32 %v1550, %v1474
  %v1552 = vadd.f32 %v1551, %v1477
  %v1553 = vadd.f32 %v1552, %v1480
  %v1554 = vadd.f32 %v1553, %v1483
  %v1555 = vadd.f32 %v1554, %v1486
  %v1556 = vadd.f32 %v1555, %v1489
  %v1557 = vadd.f32 %v1556, %v1492
  %v1558 = vadd.f32 %v1557, %v1495
  %v1559 = vadd.f32 %v1558, %v1498
  %v1560 = vadd.f32 %v1559, %v1501
  %v1561 = vadd.f32 %v1560, %v1504
  %v1562 = vadd.f32 %v1561, %v1507
  %v1563 = vadd.f32 %v1562, %v1510
  %v1564 = vadd.f32 %v1563, %v1513
  %v1565 = vadd.f32 %v1564, %v1516
  %v1566 = vadd.f32 %v1565, %v1519
  %v1567 = vadd.f32 %v1566, %v1522
  %v1568 = vrot.slane %v1567, 4
  %v1569 = vadd.f32 %v1567, %v1568
  %v1570 = vrot.slane %v1569, 2
  %v1571 = vadd.f32 %v1569, %v1570
  %v1572 = vrot.slane %v1571, 1
  %v1573 = vadd.f32 %v1571, %v1572
  %v1574 = vadd.f32 %v1394, %v1397
  %v1575 = vadd.f32 %v1574, %v1400
  %v1576 = vadd.f32 %v1575, %v1403
  %v1577 = vadd.f32 %v1576, %v1406
  %v1578 = vadd.f32 %v1577, %v1409
  %v1579 = vadd.f32 %v1578, %v1412
  %v1580 = vadd.f32 %v1579, %v1415
  %v1581 = vadd.f32 %v1580, %v1418
  %v1582 = vadd.f32 %v1581, %v1421
  %v1583 = vadd.f32 %v1582, %v1424
  %v1584 = vadd.f32 %v1583, %v1427
  %v1585 = vadd.f32 %v1584, %v1430
  %v1586 = vadd.f32 %v1585, %v1433
  %v1587 = vadd.f32 %v1586, %v1436
  %v1588 = vadd.f32 %v1587, %v1439
  %v1589 = vadd.f32 %v1588, %v1442
  %v1590 = vadd.f32 %v1589, %v1445
  %v1591 = vadd.f32 %v1590, %v1448
  %v1592 = vadd.f32 %v1591, %v1451
  %v1593 = vadd.f32 %v1592, %v1454
  %v1594 = vadd.f32 %v1593, %v1457
  %v1595 = vadd.f32 %v1594, %v1460
  %v1596 = vadd.f32 %v1595, %v1463
  %v1597 = vadd.f32 %v1596, %v1466
  %v1598 = vadd.f32 %v1597, %v1469
  %v1599 = vadd.f32 %v1598, %v1472
  %v1600 = vadd.f32 %v1599, %v1475
  %v1601 = vadd.f32 %v1600, %v1478
  %v1602 = vadd.f32 %v1601, %v1481
  %v1603 = vadd.f32 %v1602, %v1484
  %v1604 = vadd.f32 %v1603, %v1487
  %v1605 = vadd.f32 %v1604, %v1490
  %v1606 = vadd.f32 %v1605, %v1493
  %v1607 = vadd.f32 %v1606, %v1496
  %v1608 = vadd.f32 %v1607, %v1499
  %v1609 = vadd.f32 %v1608, %v1502
  %v1610 = vadd.f32 %v1609, %v1505
  %v1611 = vadd.f32 %v1610, %v1508
  %v1612 = vadd.f32 %v1611, %v1511
  %v1613 = vadd.f32 %v1612, %v1514
  %v1614 = vadd.f32 %v1613, %v1517
  %v1615 = vadd.f32 %v1614, %v1520
  %v1616 = vadd.f32 %v1615, %v1523
  %v1617 = vrot.slane %v1616, 4
  %v1618 = vadd.f32 %v1616, %v1617
  %v1619 = vrot.slane %v1618, 2
  %v1620 = vadd.f32 %v1618, %v1619
  %v1621 = vrot.slane %v1620, 1
  %v1622 = vadd.f32 %v1620, %v1621
  %v1623 = vsel %vm1296, %v1395, 0.0
  %v1624 = vsel %vm1296, %v1398, 0.0
  %v1625 = vadd.f32 %v1623, %v1624
  %v1626 = vsel %vm1296, %v1401, 0.0
  %v1627 = vadd.f32 %v1625, %v1626
  %v1628 = vsel %vm1296, %v1404, 0.0
  %v1629 = vadd.f32 %v1627, %v1628
  %v1630 = vsel %vm1296, %v1407, 0.0
  %v1631 = vadd.f32 %v1629, %v1630
  %v1632 = vsel %vm1296, %v1410, 0.0
  %v1633 = vadd.f32 %v1631, %v1632
  %v1634 = vsel %vm1296, %v1413, 0.0
  %v1635 = vadd.f32 %v1633, %v1634
  %v1636 = vsel %vm1296, %v1416, 0.0
  %v1637 = vadd.f32 %v1635, %v1636
  %v1638 = vsel %vm1296, %v1419, 0.0
  %v1639 = vadd.f32 %v1637, %v1638
  %v1640 = vsel %vm1296, %v1422, 0.0
  %v1641 = vadd.f32 %v1639, %v1640
  %v1642 = vsel %vm1296, %v1425, 0.0
  %v1643 = vadd.f32 %v1641, %v1642
  %v1644 = vsel %vm1296, %v1428, 0.0
  %v1645 = vadd.f32 %v1643, %v1644
  %v1646 = vsel %vm1296, %v1431, 0.0
  %v1647 = vadd.f32 %v1645, %v1646
  %v1648 = vsel %vm1296, %v1434, 0.0
  %v1649 = vadd.f32 %v1647, %v1648
  %v1650 = vsel %vm1296, %v1437, 0.0
  %v1651 = vadd.f32 %v1649, %v1650
  %v1652 = vsel %vm1296, %v1440, 0.0
  %v1653 = vadd.f32 %v1651, %v1652
  %v1654 = vsel %vm1296, %v1443, 0.0
  %v1655 = vadd.f32 %v1653, %v1654
  %v1656 = vsel %vm1296, %v1446, 0.0
  %v1657 = vadd.f32 %v1655, %v1656
  %v1658 = vsel %vm1296, %v1449, 0.0
  %v1659 = vadd.f32 %v1657, %v1658
  %v1660 = vsel %vm1296, %v1452, 0.0
  %v1661 = vadd.f32 %v1659, %v1660
  %v1662 = vsel %vm1296, %v1455, 0.0
  %v1663 = vadd.f32 %v1661, %v1662
  %v1664 = vsel %vm1296, %v1458, 0.0
  %v1665 = vadd.f32 %v1663, %v1664
  %v1666 = vsel %vm1296, %v1461, 0.0
  %v1667 = vadd.f32 %v1665, %v1666
  %v1668 = vsel %vm1296, %v1464, 0.0
  %v1669 = vadd.f32 %v1667, %v1668
  %v1670 = vsel %vm1296, %v1467, 0.0
  %v1671 = vadd.f32 %v1669, %v1670
  %v1672 = vsel %vm1296, %v1470, 0.0
  %v1673 = vadd.f32 %v1671, %v1672
  %v1674 = vsel %vm1296, %v1473, 0.0
  %v1675 = vadd.f32 %v1673, %v1674
  %v1676 = vsel %vm1296, %v1476, 0.0
  %v1677 = vadd.f32 %v1675, %v1676
  %v1678 = vsel %vm1296, %v1479, 0.0
  %v1679 = vadd.f32 %v1677, %v1678
  %v1680 = vsel %vm1296, %v1482, 0.0
  %v1681 = vadd.f32 %v1679, %v1680
  %v1682 = vsel %vm1296, %v1485, 0.0
  %v1683 = vadd.f32 %v1681, %v1682
  %v1684 = vsel %vm1296, %v1488, 0.0
  %v1685 = vadd.f32 %v1683, %v1684
  %v1686 = vsel %vm1296, %v1491, 0.0
  %v1687 = vadd.f32 %v1685, %v1686
  %v1688 = vsel %vm1296, %v1494, 0.0
  %v1689 = vadd.f32 %v1687, %v1688
  %v1690 = vsel %vm1296, %v1497, 0.0
  %v1691 = vadd.f32 %v1689, %v1690
  %v1692 = vsel %vm1296, %v1500, 0.0
  %v1693 = vadd.f32 %v1691, %v1692
  %v1694 = vsel %vm1296, %v1503, 0.0
  %v1695 = vadd.f32 %v1693, %v1694
  %v1696 = vsel %vm1296, %v1506, 0.0
  %v1697 = vadd.f32 %v1695, %v1696
  %v1698 = vsel %vm1296, %v1509, 0.0
  %v1699 = vadd.f32 %v1697, %v1698
  %v1700 = vsel %vm1296, %v1512, 0.0
  %v1701 = vadd.f32 %v1699, %v1700
  %v1702 = vsel %vm1296, %v1515, 0.0
  %v1703 = vadd.f32 %v1701, %v1702
  %v1704 = vsel %vm1296, %v1518, 0.0
  %v1705 = vadd.f32 %v1703, %v1704
  %v1706 = vsel %vm1296, %v1521, 0.0
  %v1707 = vadd.f32 %v1705, %v1706
  %v1708 = vsel %vm1296, %v1524, 0.0
  %v1709 = vadd.f32 %v1707, %v1708
  %v1710 = vrot.slane %v1709, 4
  %v1711 = vadd.f32 %v1709, %v1710
  %v1712 = vrot.slane %v1711, 2
  %v1713 = vadd.f32 %v1711, %v1712
  %v1714 = vrot.slane %v1713, 1
  %v1715 = vadd.f32 %v1713, %v1714
  %v1716 = vmul.f32 %v1573, 0.0051020407
  %v1717 = vmul.f32 %v1622, 0.0051020407
  %v1718 = vmul.f32 %v1715, 0.0051020407
  %v1719 = vmul.f32 %v1390, %v1390
  %v1720 = vmul.f32 %v1391, %v1391
  %v1721 = vmul.f32 %v1392, %v1392
  %v1722 = vsub.f32 %v1716, %v1719
  %v1723 = vsub.f32 %v1717, %v1720
  %v1724 = vsub.f32 %v1718, %v1721
  %v1725 = vmax.f32 %v1722, 0.0
  %v1726 = vmax.f32 %v1723, 0.0
  %v1727 = vmax.f32 %v1724, 0.0
  %v1728 = vld [vmem:[%s4] sm:$0x7]
  %v1729 = vadd.f32 %v1725, 1e-05
  %v1730 = vadd.f32 %v1726, 1e-05
  %v1731 = vadd.f32 %v1727, 1e-05
  %v1732 = vrsqrt.pop %v1729
  %v1733 = vrsqrt.pop %v1730
  %v1734 = vrsqrt.pop %v1731
  %v1738 = vcombine.low %v1732, %v1733
  %v1740 = vunpack.c.l.s4 1966171168
  %v1741 = vunpack.c.0.s8 %v1740
  %v1742 = vlaneseq
  %v1743 = vshrl.u32 %v1742, 7
  %v1744 = vsub.s32 %v1741, %v1743
  %v1745 = vrot.slane %v1738, %v1744
  %v1747 = vunpack.c.l.s4 1966171168
  %v1748 = vunpack.c.0.s8 %v1747
  %v1749 = vlaneseq
  %v1750 = vshrl.u32 %v1749, 7
  %v1751 = vsub.s32 %v1748, %v1750
  %v1752 = vrot.slane %v1734, %v1751
  %v1753 = vcombine.low %v1745, %v1752
  %v1755 = vunpack.c.l.s4 1966171168
  %v1756 = vunpack.c.0.s8 %v1755
  %v1757 = vlaneseq
  %v1758 = vshrl.u32 %v1757, 7
  %v1759 = vsub.s32 %v1756, %v1758
  %v1760 = vrot.slane %v1753, %v1759
  %v1762 = vmul.f32 %v1728, %v1760
  %v1763 = vld [vmem:[%s5] sm:$0x7]
  %v1765 = vlaneseq
  %v1766 = vshrl.u32 %v1765, 7
  %v1767 = vsub.s32 0, %v1766
  %v1768 = vrot.slane %v1762, %v1767
  %v1769 = vlaneseq
  %v1770 = vshrl.u32 %v1769, 7
  %v1771 = vsub.s32 1, %v1770
  %v1772 = vrot.slane %v1762, %v1771
  %v1773 = vlaneseq
  %v1774 = vshrl.u32 %v1773, 7
  %v1775 = vsub.s32 2, %v1774
  %v1776 = vrot.slane %v1762, %v1775
  %v1780 = vmul.f32 %v1390, %v1768
  %v1781 = vmul.f32 %v1391, %v1772
  %v1782 = vmul.f32 %v1392, %v1776
  %v1786 = vcombine.low %v1780, %v1781
  %v1788 = vunpack.c.l.s4 1966171168
  %v1789 = vunpack.c.0.s8 %v1788
  %v1790 = vlaneseq
  %v1791 = vshrl.u32 %v1790, 7
  %v1792 = vsub.s32 %v1789, %v1791
  %v1793 = vrot.slane %v1786, %v1792
  %v1795 = vunpack.c.l.s4 1966171168
  %v1796 = vunpack.c.0.s8 %v1795
  %v1797 = vlaneseq
  %v1798 = vshrl.u32 %v1797, 7
  %v1799 = vsub.s32 %v1796, %v1798
  %v1800 = vrot.slane %v1782, %v1799
  %v1801 = vcombine.low %v1793, %v1800
  %v1803 = vunpack.c.l.s4 1966171168
  %v1804 = vunpack.c.0.s8 %v1803
  %v1805 = vlaneseq
  %v1806 = vshrl.u32 %v1805, 7
  %v1807 = vsub.s32 %v1804, %v1806
  %v1808 = vrot.slane %v1801, %v1807
  %v1810 = vsub.f32 %v1763, %v1808
  %v1811 = vmul.f32 %v771, %v1768
  %v1812 = vmul.f32 %v773, %v1772
  %v1813 = vmul.f32 %v1024, %v1776
  %v1814 = vmul.f32 %v775, %v1768
  %v1815 = vmul.f32 %v777, %v1772
  %v1816 = vmul.f32 %v1027, %v1776
  %v1817 = vmul.f32 %v781, %v1768
  %v1818 = vmul.f32 %v783, %v1772
  %v1819 = vmul.f32 %v1032, %v1776
  %v1820 = vmul.f32 %v785, %v1768
  %v1821 = vmul.f32 %v787, %v1772
  %v1822 = vmul.f32 %v1035, %v1776
  %v1823 = vmul.f32 %v791, %v1768
  %v1824 = vmul.f32 %v793, %v1772
  %v1825 = vmul.f32 %v1040, %v1776
  %v1826 = vmul.f32 %v795, %v1768
  %v1827 = vmul.f32 %v797, %v1772
  %v1828 = vmul.f32 %v1043, %v1776
  %v1829 = vmul.f32 %v801, %v1768
  %v1830 = vmul.f32 %v803, %v1772
  %v1831 = vmul.f32 %v1048, %v1776
  %v1832 = vmul.f32 %v805, %v1768
  %v1833 = vmul.f32 %v807, %v1772
  %v1834 = vmul.f32 %v1051, %v1776
  %v1835 = vmul.f32 %v811, %v1768
  %v1836 = vmul.f32 %v813, %v1772
  %v1837 = vmul.f32 %v1056, %v1776
  %v1838 = vmul.f32 %v815, %v1768
  %v1839 = vmul.f32 %v817, %v1772
  %v1840 = vmul.f32 %v1059, %v1776
  %v1841 = vmul.f32 %v821, %v1768
  %v1842 = vmul.f32 %v823, %v1772
  %v1843 = vmul.f32 %v1064, %v1776
  %v1844 = vmul.f32 %v825, %v1768
  %v1845 = vmul.f32 %v827, %v1772
  %v1846 = vmul.f32 %v1067, %v1776
  %v1847 = vmul.f32 %v831, %v1768
  %v1848 = vmul.f32 %v833, %v1772
  %v1849 = vmul.f32 %v1072, %v1776
  %v1850 = vmul.f32 %v835, %v1768
  %v1851 = vmul.f32 %v837, %v1772
  %v1852 = vmul.f32 %v1075, %v1776
  %v1853 = vmul.f32 %v841, %v1768
  %v1854 = vmul.f32 %v843, %v1772
  %v1855 = vmul.f32 %v1080, %v1776
  %v1856 = vmul.f32 %v845, %v1768
  %v1857 = vmul.f32 %v847, %v1772
  %v1858 = vmul.f32 %v1083, %v1776
  %v1859 = vmul.f32 %v851, %v1768
  %v1860 = vmul.f32 %v853, %v1772
  %v1861 = vmul.f32 %v1088, %v1776
  %v1862 = vmul.f32 %v855, %v1768
  %v1863 = vmul.f32 %v857, %v1772
  %v1864 = vmul.f32 %v1091, %v1776
  %v1865 = vmul.f32 %v861, %v1768
  %v1866 = vmul.f32 %v863, %v1772
  %v1867 = vmul.f32 %v1096, %v1776
  %v1868 = vmul.f32 %v865, %v1768
  %v1869 = vmul.f32 %v867, %v1772
  %v1870 = vmul.f32 %v1099, %v1776
  %v1871 = vmul.f32 %v871, %v1768
  %v1872 = vmul.f32 %v873, %v1772
  %v1873 = vmul.f32 %v1104, %v1776
  %v1874 = vmul.f32 %v875, %v1768
  %v1875 = vmul.f32 %v877, %v1772
  %v1876 = vmul.f32 %v1107, %v1776
  %v1877 = vmul.f32 %v881, %v1768
  %v1878 = vmul.f32 %v883, %v1772
  %v1879 = vmul.f32 %v1112, %v1776
  %v1880 = vmul.f32 %v885, %v1768
  %v1881 = vmul.f32 %v887, %v1772
  %v1882 = vmul.f32 %v1115, %v1776
  %v1883 = vmul.f32 %v891, %v1768
  %v1884 = vmul.f32 %v893, %v1772
  %v1885 = vmul.f32 %v1120, %v1776
  %v1886 = vmul.f32 %v895, %v1768
  %v1887 = vmul.f32 %v897, %v1772
  %v1888 = vmul.f32 %v1123, %v1776
  %v1889 = vmul.f32 %v901, %v1768
  %v1890 = vmul.f32 %v903, %v1772
  %v1891 = vmul.f32 %v1128, %v1776
  %v1892 = vmul.f32 %v905, %v1768
  %v1893 = vmul.f32 %v907, %v1772
  %v1894 = vmul.f32 %v1131, %v1776
  %v1895 = vmul.f32 %v911, %v1768
  %v1896 = vmul.f32 %v913, %v1772
  %v1897 = vmul.f32 %v1136, %v1776
  %v1898 = vmul.f32 %v915, %v1768
  %v1899 = vmul.f32 %v917, %v1772
  %v1900 = vmul.f32 %v1139, %v1776
  %v1901 = vmul.f32 %v921, %v1768
  %v1902 = vmul.f32 %v923, %v1772
  %v1903 = vmul.f32 %v1144, %v1776
  %v1904 = vmul.f32 %v925, %v1768
  %v1905 = vmul.f32 %v927, %v1772
  %v1906 = vmul.f32 %v1147, %v1776
  %v1907 = vmul.f32 %v931, %v1768
  %v1908 = vmul.f32 %v933, %v1772
  %v1909 = vmul.f32 %v1152, %v1776
  %v1910 = vmul.f32 %v935, %v1768
  %v1911 = vmul.f32 %v937, %v1772
  %v1912 = vmul.f32 %v1155, %v1776
  %v1913 = vmul.f32 %v941, %v1768
  %v1914 = vmul.f32 %v943, %v1772
  %v1915 = vmul.f32 %v1160, %v1776
  %v1916 = vmul.f32 %v945, %v1768
  %v1917 = vmul.f32 %v947, %v1772
  %v1918 = vmul.f32 %v1163, %v1776
  %v1919 = vmul.f32 %v951, %v1768
  %v1920 = vmul.f32 %v953, %v1772
  %v1921 = vmul.f32 %v1168, %v1776
  %v1922 = vmul.f32 %v955, %v1768
  %v1923 = vmul.f32 %v957, %v1772
  %v1924 = vmul.f32 %v1171, %v1776
  %v1925 = vmul.f32 %v961, %v1768
  %v1926 = vmul.f32 %v963, %v1772
  %v1927 = vmul.f32 %v1176, %v1776
  %v1928 = vmul.f32 %v965, %v1768
  %v1929 = vmul.f32 %v967, %v1772
  %v1930 = vmul.f32 %v1179, %v1776
  %v1931 = vmul.f32 %v971, %v1768
  %v1932 = vmul.f32 %v973, %v1772
  %v1933 = vmul.f32 %v1184, %v1776
  %v1934 = vmul.f32 %v975, %v1768
  %v1935 = vmul.f32 %v977, %v1772
  %v1936 = vmul.f32 %v1187, %v1776
  %v1937 = vmul.f32 %v981, %v1768
  %v1938 = vmul.f32 %v983, %v1772
  %v1939 = vmul.f32 %v1192, %v1776
  %v1940 = vmul.f32 %v985, %v1768
  %v1941 = vmul.f32 %v987, %v1772
  %v1942 = vmul.f32 %v1195, %v1776
  %v1944 = vlaneseq
  %v1945 = vshrl.u32 %v1944, 7
  %v1946 = vsub.s32 0, %v1945
  %v1947 = vrot.slane %v1810, %v1946
  %v1948 = vlaneseq
  %v1949 = vshrl.u32 %v1948, 7
  %v1950 = vsub.s32 1, %v1949
  %v1951 = vrot.slane %v1810, %v1950
  %v1952 = vlaneseq
  %v1953 = vshrl.u32 %v1952, 7
  %v1954 = vsub.s32 2, %v1953
  %v1955 = vrot.slane %v1810, %v1954
  %v1959 = vadd.f32 %v1811, %v1947
  %v1960 = vadd.f32 %v1812, %v1951
  %v1961 = vadd.f32 %v1813, %v1955
  %v1962 = vadd.f32 %v1814, %v1947
  %v1963 = vadd.f32 %v1815, %v1951
  %v1964 = vadd.f32 %v1816, %v1955
  %v1965 = vadd.f32 %v1817, %v1947
  %v1966 = vadd.f32 %v1818, %v1951
  %v1967 = vadd.f32 %v1819, %v1955
  %v1968 = vadd.f32 %v1820, %v1947
  %v1969 = vadd.f32 %v1821, %v1951
  %v1970 = vadd.f32 %v1822, %v1955
  %v1971 = vadd.f32 %v1823, %v1947
  %v1972 = vadd.f32 %v1824, %v1951
  %v1973 = vadd.f32 %v1825, %v1955
  %v1974 = vadd.f32 %v1826, %v1947
  %v1975 = vadd.f32 %v1827, %v1951
  %v1976 = vadd.f32 %v1828, %v1955
  %v1977 = vadd.f32 %v1829, %v1947
  %v1978 = vadd.f32 %v1830, %v1951
  %v1979 = vadd.f32 %v1831, %v1955
  %v1980 = vadd.f32 %v1832, %v1947
  %v1981 = vadd.f32 %v1833, %v1951
  %v1982 = vadd.f32 %v1834, %v1955
  %v1983 = vadd.f32 %v1835, %v1947
  %v1984 = vadd.f32 %v1836, %v1951
  %v1985 = vadd.f32 %v1837, %v1955
  %v1986 = vadd.f32 %v1838, %v1947
  %v1987 = vadd.f32 %v1839, %v1951
  %v1988 = vadd.f32 %v1840, %v1955
  %v1989 = vadd.f32 %v1841, %v1947
  %v1990 = vadd.f32 %v1842, %v1951
  %v1991 = vadd.f32 %v1843, %v1955
  %v1992 = vadd.f32 %v1844, %v1947
  %v1993 = vadd.f32 %v1845, %v1951
  %v1994 = vadd.f32 %v1846, %v1955
  %v1995 = vadd.f32 %v1847, %v1947
  %v1996 = vadd.f32 %v1848, %v1951
  %v1997 = vadd.f32 %v1849, %v1955
  %v1998 = vadd.f32 %v1850, %v1947
  %v1999 = vadd.f32 %v1851, %v1951
  %v2000 = vadd.f32 %v1852, %v1955
  %v2001 = vadd.f32 %v1853, %v1947
  %v2002 = vadd.f32 %v1854, %v1951
  %v2003 = vadd.f32 %v1855, %v1955
  %v2004 = vadd.f32 %v1856, %v1947
  %v2005 = vadd.f32 %v1857, %v1951
  %v2006 = vadd.f32 %v1858, %v1955
  %v2007 = vadd.f32 %v1859, %v1947
  %v2008 = vadd.f32 %v1860, %v1951
  %v2009 = vadd.f32 %v1861, %v1955
  %v2010 = vadd.f32 %v1862, %v1947
  %v2011 = vadd.f32 %v1863, %v1951
  %v2012 = vadd.f32 %v1864, %v1955
  %v2013 = vadd.f32 %v1865, %v1947
  %v2014 = vadd.f32 %v1866, %v1951
  %v2015 = vadd.f32 %v1867, %v1955
  %v2016 = vadd.f32 %v1868, %v1947
  %v2017 = vadd.f32 %v1869, %v1951
  %v2018 = vadd.f32 %v1870, %v1955
  %v2019 = vadd.f32 %v1871, %v1947
  %v2020 = vadd.f32 %v1872, %v1951
  %v2021 = vadd.f32 %v1873, %v1955
  %v2022 = vadd.f32 %v1874, %v1947
  %v2023 = vadd.f32 %v1875, %v1951
  %v2024 = vadd.f32 %v1876, %v1955
  %v2025 = vadd.f32 %v1877, %v1947
  %v2026 = vadd.f32 %v1878, %v1951
  %v2027 = vadd.f32 %v1879, %v1955
  %v2028 = vadd.f32 %v1880, %v1947
  %v2029 = vadd.f32 %v1881, %v1951
  %v2030 = vadd.f32 %v1882, %v1955
  %v2031 = vadd.f32 %v1883, %v1947
  %v2032 = vadd.f32 %v1884, %v1951
  %v2033 = vadd.f32 %v1885, %v1955
  %v2034 = vadd.f32 %v1886, %v1947
  %v2035 = vadd.f32 %v1887, %v1951
  %v2036 = vadd.f32 %v1888, %v1955
  %v2037 = vadd.f32 %v1889, %v1947
  %v2038 = vadd.f32 %v1890, %v1951
  %v2039 = vadd.f32 %v1891, %v1955
  %v2040 = vadd.f32 %v1892, %v1947
  %v2041 = vadd.f32 %v1893, %v1951
  %v2042 = vadd.f32 %v1894, %v1955
  %v2043 = vadd.f32 %v1895, %v1947
  %v2044 = vadd.f32 %v1896, %v1951
  %v2045 = vadd.f32 %v1897, %v1955
  %v2046 = vadd.f32 %v1898, %v1947
  %v2047 = vadd.f32 %v1899, %v1951
  %v2048 = vadd.f32 %v1900, %v1955
  %v2049 = vadd.f32 %v1901, %v1947
  %v2050 = vadd.f32 %v1902, %v1951
  %v2051 = vadd.f32 %v1903, %v1955
  %v2052 = vadd.f32 %v1904, %v1947
  %v2053 = vadd.f32 %v1905, %v1951
  %v2054 = vadd.f32 %v1906, %v1955
  %v2055 = vadd.f32 %v1907, %v1947
  %v2056 = vadd.f32 %v1908, %v1951
  %v2057 = vadd.f32 %v1909, %v1955
  %v2058 = vadd.f32 %v1910, %v1947
  %v2059 = vadd.f32 %v1911, %v1951
  %v2060 = vadd.f32 %v1912, %v1955
  %v2061 = vadd.f32 %v1913, %v1947
  %v2062 = vadd.f32 %v1914, %v1951
  %v2063 = vadd.f32 %v1915, %v1955
  %v2064 = vadd.f32 %v1916, %v1947
  %v2065 = vadd.f32 %v1917, %v1951
  %v2066 = vadd.f32 %v1918, %v1955
  %v2067 = vadd.f32 %v1919, %v1947
  %v2068 = vadd.f32 %v1920, %v1951
  %v2069 = vadd.f32 %v1921, %v1955
  %v2070 = vadd.f32 %v1922, %v1947
  %v2071 = vadd.f32 %v1923, %v1951
  %v2072 = vadd.f32 %v1924, %v1955
  %v2073 = vadd.f32 %v1925, %v1947
  %v2074 = vadd.f32 %v1926, %v1951
  %v2075 = vadd.f32 %v1927, %v1955
  %v2076 = vadd.f32 %v1928, %v1947
  %v2077 = vadd.f32 %v1929, %v1951
  %v2078 = vadd.f32 %v1930, %v1955
  %v2079 = vadd.f32 %v1931, %v1947
  %v2080 = vadd.f32 %v1932, %v1951
  %v2081 = vadd.f32 %v1933, %v1955
  %v2082 = vadd.f32 %v1934, %v1947
  %v2083 = vadd.f32 %v1935, %v1951
  %v2084 = vadd.f32 %v1936, %v1955
  %v2085 = vadd.f32 %v1937, %v1947
  %v2086 = vadd.f32 %v1938, %v1951
  %v2087 = vadd.f32 %v1939, %v1955
  %v2088 = vadd.f32 %v1940, %v1947
  %v2089 = vadd.f32 %v1941, %v1951
  %v2090 = vadd.f32 %v1942, %v1955
  %v2091 = vmax.f32 %v1959, 0.0
  %v2092 = vmax.f32 %v1960, 0.0
  %v2093 = vmax.f32 %v1961, 0.0
  %v2094 = vmax.f32 %v1962, 0.0
  %v2095 = vmax.f32 %v1963, 0.0
  %v2096 = vmax.f32 %v1964, 0.0
  %v2097 = vmax.f32 %v1965, 0.0
  %v2098 = vmax.f32 %v1966, 0.0
  %v2099 = vmax.f32 %v1967, 0.0
  %v2100 = vmax.f32 %v1968, 0.0
  %v2101 = vmax.f32 %v1969, 0.0
  %v2102 = vmax.f32 %v1970, 0.0
  %v2103 = vmax.f32 %v1971, 0.0
  %v2104 = vmax.f32 %v1972, 0.0
  %v2105 = vmax.f32 %v1973, 0.0
  %v2106 = vmax.f32 %v1974, 0.0
  %v2107 = vmax.f32 %v1975, 0.0
  %v2108 = vmax.f32 %v1976, 0.0
  %v2109 = vmax.f32 %v1977, 0.0
  %v2110 = vmax.f32 %v1978, 0.0
  %v2111 = vmax.f32 %v1979, 0.0
  %v2112 = vmax.f32 %v1980, 0.0
  %v2113 = vmax.f32 %v1981, 0.0
  %v2114 = vmax.f32 %v1982, 0.0
  %v2115 = vmax.f32 %v1983, 0.0
  %v2116 = vmax.f32 %v1984, 0.0
  %v2117 = vmax.f32 %v1985, 0.0
  %v2118 = vmax.f32 %v1986, 0.0
  %v2119 = vmax.f32 %v1987, 0.0
  %v2120 = vmax.f32 %v1988, 0.0
  %v2121 = vmax.f32 %v1989, 0.0
  %v2122 = vmax.f32 %v1990, 0.0
  %v2123 = vmax.f32 %v1991, 0.0
  %v2124 = vmax.f32 %v1992, 0.0
  %v2125 = vmax.f32 %v1993, 0.0
  %v2126 = vmax.f32 %v1994, 0.0
  %v2127 = vmax.f32 %v1995, 0.0
  %v2128 = vmax.f32 %v1996, 0.0
  %v2129 = vmax.f32 %v1997, 0.0
  %v2130 = vmax.f32 %v1998, 0.0
  %v2131 = vmax.f32 %v1999, 0.0
  %v2132 = vmax.f32 %v2000, 0.0
  %v2133 = vmax.f32 %v2001, 0.0
  %v2134 = vmax.f32 %v2002, 0.0
  %v2135 = vmax.f32 %v2003, 0.0
  %v2136 = vmax.f32 %v2004, 0.0
  %v2137 = vmax.f32 %v2005, 0.0
  %v2138 = vmax.f32 %v2006, 0.0
  %v2139 = vmax.f32 %v2007, 0.0
  %v2140 = vmax.f32 %v2008, 0.0
  %v2141 = vmax.f32 %v2009, 0.0
  %v2142 = vmax.f32 %v2010, 0.0
  %v2143 = vmax.f32 %v2011, 0.0
  %v2144 = vmax.f32 %v2012, 0.0
  %v2145 = vmax.f32 %v2013, 0.0
  %v2146 = vmax.f32 %v2014, 0.0
  %v2147 = vmax.f32 %v2015, 0.0
  %v2148 = vmax.f32 %v2016, 0.0
  %v2149 = vmax.f32 %v2017, 0.0
  %v2150 = vmax.f32 %v2018, 0.0
  %v2151 = vmax.f32 %v2019, 0.0
  %v2152 = vmax.f32 %v2020, 0.0
  %v2153 = vmax.f32 %v2021, 0.0
  %v2154 = vmax.f32 %v2022, 0.0
  %v2155 = vmax.f32 %v2023, 0.0
  %v2156 = vmax.f32 %v2024, 0.0
  %v2157 = vmax.f32 %v2025, 0.0
  %v2158 = vmax.f32 %v2026, 0.0
  %v2159 = vmax.f32 %v2027, 0.0
  %v2160 = vmax.f32 %v2028, 0.0
  %v2161 = vmax.f32 %v2029, 0.0
  %v2162 = vmax.f32 %v2030, 0.0
  %v2163 = vmax.f32 %v2031, 0.0
  %v2164 = vmax.f32 %v2032, 0.0
  %v2165 = vmax.f32 %v2033, 0.0
  %v2166 = vmax.f32 %v2034, 0.0
  %v2167 = vmax.f32 %v2035, 0.0
  %v2168 = vmax.f32 %v2036, 0.0
  %v2169 = vmax.f32 %v2037, 0.0
  %v2170 = vmax.f32 %v2038, 0.0
  %v2171 = vmax.f32 %v2039, 0.0
  %v2172 = vmax.f32 %v2040, 0.0
  %v2173 = vmax.f32 %v2041, 0.0
  %v2174 = vmax.f32 %v2042, 0.0
  %v2175 = vmax.f32 %v2043, 0.0
  %v2176 = vmax.f32 %v2044, 0.0
  %v2177 = vmax.f32 %v2045, 0.0
  %v2178 = vmax.f32 %v2046, 0.0
  %v2179 = vmax.f32 %v2047, 0.0
  %v2180 = vmax.f32 %v2048, 0.0
  %v2181 = vmax.f32 %v2049, 0.0
  %v2182 = vmax.f32 %v2050, 0.0
  %v2183 = vmax.f32 %v2051, 0.0
  %v2184 = vmax.f32 %v2052, 0.0
  %v2185 = vmax.f32 %v2053, 0.0
  %v2186 = vmax.f32 %v2054, 0.0
  %v2187 = vmax.f32 %v2055, 0.0
  %v2188 = vmax.f32 %v2056, 0.0
  %v2189 = vmax.f32 %v2057, 0.0
  %v2190 = vmax.f32 %v2058, 0.0
  %v2191 = vmax.f32 %v2059, 0.0
  %v2192 = vmax.f32 %v2060, 0.0
  %v2193 = vmax.f32 %v2061, 0.0
  %v2194 = vmax.f32 %v2062, 0.0
  %v2195 = vmax.f32 %v2063, 0.0
  %v2196 = vmax.f32 %v2064, 0.0
  %v2197 = vmax.f32 %v2065, 0.0
  %v2198 = vmax.f32 %v2066, 0.0
  %v2199 = vmax.f32 %v2067, 0.0
  %v2200 = vmax.f32 %v2068, 0.0
  %v2201 = vmax.f32 %v2069, 0.0
  %v2202 = vmax.f32 %v2070, 0.0
  %v2203 = vmax.f32 %v2071, 0.0
  %v2204 = vmax.f32 %v2072, 0.0
  %v2205 = vmax.f32 %v2073, 0.0
  %v2206 = vmax.f32 %v2074, 0.0
  %v2207 = vmax.f32 %v2075, 0.0
  %v2208 = vmax.f32 %v2076, 0.0
  %v2209 = vmax.f32 %v2077, 0.0
  %v2210 = vmax.f32 %v2078, 0.0
  %v2211 = vmax.f32 %v2079, 0.0
  %v2212 = vmax.f32 %v2080, 0.0
  %v2213 = vmax.f32 %v2081, 0.0
  %v2214 = vmax.f32 %v2082, 0.0
  %v2215 = vmax.f32 %v2083, 0.0
  %v2216 = vmax.f32 %v2084, 0.0
  %v2217 = vmax.f32 %v2085, 0.0
  %v2218 = vmax.f32 %v2086, 0.0
  %v2219 = vmax.f32 %v2087, 0.0
  %v2220 = vmax.f32 %v2088, 0.0
  %v2221 = vmax.f32 %v2089, 0.0
  %v2222 = vmax.f32 %v2090, 0.0
  %v2223 = vld [vmem:[%s2] sm:$0xff]
  %v2224 = vld [vmem:[%s2 + $0x8] sm:$0xff]
  %v2225 = vld [vmem:[%s2 + $0x10] sm:$0xff]
  %v2226 = vld [vmem:[%s2 + $0x18] sm:$0xff]
  %v2227 = vld [vmem:[%s2 + $0x20] sm:$0xff]
  %v2228 = vld [vmem:[%s2 + $0x28] sm:$0xff]
  %v2229 = vld [vmem:[%s2 + $0x30] sm:$0xff]
  %v2230 = vld [vmem:[%s2 + $0x38] sm:$0xff]
  %v2231 = vld [vmem:[%s2 + $0x40] sm:$0xff]
  %v2232 = vld [vmem:[%s2 + $0x48] sm:$0xff]
  %v2233 = vld [vmem:[%s2 + $0x50] sm:$0xff]
  %v2234 = vld [vmem:[%s2 + $0x58] sm:$0xff]
  %v2235 = vld [vmem:[%s2 + $0x60] sm:$0xff]
  %v2236 = vld [vmem:[%s2 + $0x68] sm:$0xff]
  %v2237 = vld [vmem:[%s2 + $0x70] sm:$0xff]
  %v2238 = vld [vmem:[%s2 + $0x78] sm:$0xff]
  %v2239 = vld [vmem:[%s2 + $0x80] sm:$0xff]
  %v2240 = vld [vmem:[%s2 + $0x88] sm:$0xff]
  %v2241 = vld [vmem:[%s2 + $0x90] sm:$0xff]
  %v2242 = vld [vmem:[%s2 + $0x98] sm:$0xff]
  %v2243 = vld [vmem:[%s2 + $0xa0] sm:$0xff]
  %v2244 = vld [vmem:[%s2 + $0xa8] sm:$0xff]
  %v2245 = vld [vmem:[%s2 + $0xb0] sm:$0xff]
  %v2246 = vld [vmem:[%s2 + $0xb8] sm:$0xff]
  %v2247 = vld [vmem:[%s2 + $0xc0] sm:$0xff]
  %v2248 = vld [vmem:[%s2 + $0xc8] sm:$0xff]
  %v2249 = vld [vmem:[%s2 + $0xd0] sm:$0xff]
  %v2250 = vld [vmem:[%s2 + $0xd8] sm:$0xff]
  %v2251 = vld [vmem:[%s2 + $0xe0] sm:$0xff]
  %v2252 = vld [vmem:[%s2 + $0xe8] sm:$0xff]
  %v2253 = vld [vmem:[%s2 + $0xf0] sm:$0xff]
  %v2254 = vld [vmem:[%s2 + $0xf8] sm:$0xff]
  %v2255 = vld [vmem:[%s2 + $0x100] sm:$0xff]
  %v2256 = vld [vmem:[%s2 + $0x108] sm:$0xff]
  %v2257 = vld [vmem:[%s2 + $0x110] sm:$0xff]
  %v2258 = vld [vmem:[%s2 + $0x118] sm:$0xff]
  %v2259 = vld [vmem:[%s2 + $0x120] sm:$0xff]
  %v2260 = vld [vmem:[%s2 + $0x128] sm:$0xff]
  %v2261 = vld [vmem:[%s2 + $0x130] sm:$0xff]
  %v2262 = vld [vmem:[%s2 + $0x138] sm:$0xff]
  %v2263 = vld [vmem:[%s2 + $0x140] sm:$0xff]
  %v2264 = vld [vmem:[%s2 + $0x148] sm:$0xff]
  %v2265 = vld [vmem:[%s2 + $0x150] sm:$0xff]
  %v2266 = vld [vmem:[%s2 + $0x158] sm:$0xff]
  %2268 = vset.pattern.permute.xlu0 0
  %2269 = vperm.xlu0 %2268, %v2223
  %v2270 = vpop.permute.xlu0 %2269
  %2273 = vset.pattern.permute.xlu0 0
  %2274 = vperm.xlu0 %2273, %v2224
  %v2275 = vpop.permute.xlu0 %2274
  %2278 = vset.pattern.permute.xlu0 0
  %2279 = vperm.xlu0 %2278, %v2225
  %v2280 = vpop.permute.xlu0 %2279
  %2283 = vset.pattern.permute.xlu0 0
  %2284 = vperm.xlu0 %2283, %v2226
  %v2285 = vpop.permute.xlu0 %2284
  %2288 = vset.pattern.permute.xlu0 0
  %2289 = vperm.xlu0 %2288, %v2227
  %v2290 = vpop.permute.xlu0 %2289
  %2293 = vset.pattern.permute.xlu0 0
  %2294 = vperm.xlu0 %2293, %v2228
  %v2295 = vpop.permute.xlu0 %2294
  %2298 = vset.pattern.permute.xlu0 0
  %2299 = vperm.xlu0 %2298, %v2229
  %v2300 = vpop.permute.xlu0 %2299
  %2303 = vset.pattern.permute.xlu0 0
  %2304 = vperm.xlu0 %2303, %v2230
  %v2305 = vpop.permute.xlu0 %2304
  %2308 = vset.pattern.permute.xlu0 0
  %2309 = vperm.xlu0 %2308, %v2231
  %v2310 = vpop.permute.xlu0 %2309
  %2313 = vset.pattern.permute.xlu0 0
  %2314 = vperm.xlu0 %2313, %v2232
  %v2315 = vpop.permute.xlu0 %2314
  %2318 = vset.pattern.permute.xlu0 0
  %2319 = vperm.xlu0 %2318, %v2233
  %v2320 = vpop.permute.xlu0 %2319
  %2323 = vset.pattern.permute.xlu0 0
  %2324 = vperm.xlu0 %2323, %v2234
  %v2325 = vpop.permute.xlu0 %2324
  %2328 = vset.pattern.permute.xlu0 0
  %2329 = vperm.xlu0 %2328, %v2235
  %v2330 = vpop.permute.xlu0 %2329
  %2333 = vset.pattern.permute.xlu0 0
  %2334 = vperm.xlu0 %2333, %v2236
  %v2335 = vpop.permute.xlu0 %2334
  %2338 = vset.pattern.permute.xlu0 0
  %2339 = vperm.xlu0 %2338, %v2237
  %v2340 = vpop.permute.xlu0 %2339
  %2343 = vset.pattern.permute.xlu0 0
  %2344 = vperm.xlu0 %2343, %v2238
  %v2345 = vpop.permute.xlu0 %2344
  %2348 = vset.pattern.permute.xlu0 0
  %2349 = vperm.xlu0 %2348, %v2239
  %v2350 = vpop.permute.xlu0 %2349
  %2353 = vset.pattern.permute.xlu0 0
  %2354 = vperm.xlu0 %2353, %v2240
  %v2355 = vpop.permute.xlu0 %2354
  %2358 = vset.pattern.permute.xlu0 0
  %2359 = vperm.xlu0 %2358, %v2241
  %v2360 = vpop.permute.xlu0 %2359
  %2363 = vset.pattern.permute.xlu0 0
  %2364 = vperm.xlu0 %2363, %v2242
  %v2365 = vpop.permute.xlu0 %2364
  %2368 = vset.pattern.permute.xlu0 0
  %2369 = vperm.xlu0 %2368, %v2243
  %v2370 = vpop.permute.xlu0 %2369
  %2373 = vset.pattern.permute.xlu0 0
  %2374 = vperm.xlu0 %2373, %v2244
  %v2375 = vpop.permute.xlu0 %2374
  %2378 = vset.pattern.permute.xlu0 0
  %2379 = vperm.xlu0 %2378, %v2245
  %v2380 = vpop.permute.xlu0 %2379
  %2383 = vset.pattern.permute.xlu0 0
  %2384 = vperm.xlu0 %2383, %v2246
  %v2385 = vpop.permute.xlu0 %2384
  %2388 = vset.pattern.permute.xlu0 0
  %2389 = vperm.xlu0 %2388, %v2247
  %v2390 = vpop.permute.xlu0 %2389
  %2393 = vset.pattern.permute.xlu0 0
  %2394 = vperm.xlu0 %2393, %v2248
  %v2395 = vpop.permute.xlu0 %2394
  %2398 = vset.pattern.permute.xlu0 0
  %2399 = vperm.xlu0 %2398, %v2249
  %v2400 = vpop.permute.xlu0 %2399
  %2403 = vset.pattern.permute.xlu0 0
  %2404 = vperm.xlu0 %2403, %v2250
  %v2405 = vpop.permute.xlu0 %2404
  %2408 = vset.pattern.permute.xlu0 0
  %2409 = vperm.xlu0 %2408, %v2251
  %v2410 = vpop.permute.xlu0 %2409
  %2413 = vset.pattern.permute.xlu0 0
  %2414 = vperm.xlu0 %2413, %v2252
  %v2415 = vpop.permute.xlu0 %2414
  %2418 = vset.pattern.permute.xlu0 0
  %2419 = vperm.xlu0 %2418, %v2253
  %v2420 = vpop.permute.xlu0 %2419
  %2423 = vset.pattern.permute.xlu0 0
  %2424 = vperm.xlu0 %2423, %v2254
  %v2425 = vpop.permute.xlu0 %2424
  %2428 = vset.pattern.permute.xlu0 0
  %2429 = vperm.xlu0 %2428, %v2255
  %v2430 = vpop.permute.xlu0 %2429
  %2433 = vset.pattern.permute.xlu0 0
  %2434 = vperm.xlu0 %2433, %v2256
  %v2435 = vpop.permute.xlu0 %2434
  %2438 = vset.pattern.permute.xlu0 0
  %2439 = vperm.xlu0 %2438, %v2257
  %v2440 = vpop.permute.xlu0 %2439
  %2443 = vset.pattern.permute.xlu0 0
  %2444 = vperm.xlu0 %2443, %v2258
  %v2445 = vpop.permute.xlu0 %2444
  %2448 = vset.pattern.permute.xlu0 0
  %2449 = vperm.xlu0 %2448, %v2259
  %v2450 = vpop.permute.xlu0 %2449
  %2453 = vset.pattern.permute.xlu0 0
  %2454 = vperm.xlu0 %2453, %v2260
  %v2455 = vpop.permute.xlu0 %2454
  %2458 = vset.pattern.permute.xlu0 0
  %2459 = vperm.xlu0 %2458, %v2261
  %v2460 = vpop.permute.xlu0 %2459
  %2463 = vset.pattern.permute.xlu0 0
  %2464 = vperm.xlu0 %2463, %v2262
  %v2465 = vpop.permute.xlu0 %2464
  %2468 = vset.pattern.permute.xlu0 0
  %2469 = vperm.xlu0 %2468, %v2263
  %v2470 = vpop.permute.xlu0 %2469
  %2473 = vset.pattern.permute.xlu0 0
  %2474 = vperm.xlu0 %2473, %v2264
  %v2475 = vpop.permute.xlu0 %2474
  %2478 = vset.pattern.permute.xlu0 0
  %2479 = vperm.xlu0 %2478, %v2265
  %v2480 = vpop.permute.xlu0 %2479
  %2483 = vset.pattern.permute.xlu0 0
  %2484 = vperm.xlu0 %2483, %v2266
  %v2485 = vpop.permute.xlu0 %2484
  %v2487 = vmul.f32 %v2091, %v2270
  %v2488 = vmul.f32 %v2092, %v2270
  %v2489 = vmul.f32 %v2093, %v2270
  %v2490 = vmul.f32 %v2094, %v2275
  %v2491 = vmul.f32 %v2095, %v2275
  %v2492 = vmul.f32 %v2096, %v2275
  %v2493 = vmul.f32 %v2097, %v2280
  %v2494 = vmul.f32 %v2098, %v2280
  %v2495 = vmul.f32 %v2099, %v2280
  %v2496 = vmul.f32 %v2100, %v2285
  %v2497 = vmul.f32 %v2101, %v2285
  %v2498 = vmul.f32 %v2102, %v2285
  %v2499 = vmul.f32 %v2103, %v2290
  %v2500 = vmul.f32 %v2104, %v2290
  %v2501 = vmul.f32 %v2105, %v2290
  %v2502 = vmul.f32 %v2106, %v2295
  %v2503 = vmul.f32 %v2107, %v2295
  %v2504 = vmul.f32 %v2108, %v2295
  %v2505 = vmul.f32 %v2109, %v2300
  %v2506 = vmul.f32 %v2110, %v2300
  %v2507 = vmul.f32 %v2111, %v2300
  %v2508 = vmul.f32 %v2112, %v2305
  %v2509 = vmul.f32 %v2113, %v2305
  %v2510 = vmul.f32 %v2114, %v2305
  %v2511 = vmul.f32 %v2115, %v2310
  %v2512 = vmul.f32 %v2116, %v2310
  %v2513 = vmul.f32 %v2117, %v2310
  %v2514 = vmul.f32 %v2118, %v2315
  %v2515 = vmul.f32 %v2119, %v2315
  %v2516 = vmul.f32 %v2120, %v2315
  %v2517 = vmul.f32 %v2121, %v2320
  %v2518 = vmul.f32 %v2122, %v2320
  %v2519 = vmul.f32 %v2123, %v2320
  %v2520 = vmul.f32 %v2124, %v2325
  %v2521 = vmul.f32 %v2125, %v2325
  %v2522 = vmul.f32 %v2126, %v2325
  %v2523 = vmul.f32 %v2127, %v2330
  %v2524 = vmul.f32 %v2128, %v2330
  %v2525 = vmul.f32 %v2129, %v2330
  %v2526 = vmul.f32 %v2130, %v2335
  %v2527 = vmul.f32 %v2131, %v2335
  %v2528 = vmul.f32 %v2132, %v2335
  %v2529 = vmul.f32 %v2133, %v2340
  %v2530 = vmul.f32 %v2134, %v2340
  %v2531 = vmul.f32 %v2135, %v2340
  %v2532 = vmul.f32 %v2136, %v2345
  %v2533 = vmul.f32 %v2137, %v2345
  %v2534 = vmul.f32 %v2138, %v2345
  %v2535 = vmul.f32 %v2139, %v2350
  %v2536 = vmul.f32 %v2140, %v2350
  %v2537 = vmul.f32 %v2141, %v2350
  %v2538 = vmul.f32 %v2142, %v2355
  %v2539 = vmul.f32 %v2143, %v2355
  %v2540 = vmul.f32 %v2144, %v2355
  %v2541 = vmul.f32 %v2145, %v2360
  %v2542 = vmul.f32 %v2146, %v2360
  %v2543 = vmul.f32 %v2147, %v2360
  %v2544 = vmul.f32 %v2148, %v2365
  %v2545 = vmul.f32 %v2149, %v2365
  %v2546 = vmul.f32 %v2150, %v2365
  %v2547 = vmul.f32 %v2151, %v2370
  %v2548 = vmul.f32 %v2152, %v2370
  %v2549 = vmul.f32 %v2153, %v2370
  %v2550 = vmul.f32 %v2154, %v2375
  %v2551 = vmul.f32 %v2155, %v2375
  %v2552 = vmul.f32 %v2156, %v2375
  %v2553 = vmul.f32 %v2157, %v2380
  %v2554 = vmul.f32 %v2158, %v2380
  %v2555 = vmul.f32 %v2159, %v2380
  %v2556 = vmul.f32 %v2160, %v2385
  %v2557 = vmul.f32 %v2161, %v2385
  %v2558 = vmul.f32 %v2162, %v2385
  %v2559 = vmul.f32 %v2163, %v2390
  %v2560 = vmul.f32 %v2164, %v2390
  %v2561 = vmul.f32 %v2165, %v2390
  %v2562 = vmul.f32 %v2166, %v2395
  %v2563 = vmul.f32 %v2167, %v2395
  %v2564 = vmul.f32 %v2168, %v2395
  %v2565 = vmul.f32 %v2169, %v2400
  %v2566 = vmul.f32 %v2170, %v2400
  %v2567 = vmul.f32 %v2171, %v2400
  %v2568 = vmul.f32 %v2172, %v2405
  %v2569 = vmul.f32 %v2173, %v2405
  %v2570 = vmul.f32 %v2174, %v2405
  %v2571 = vmul.f32 %v2175, %v2410
  %v2572 = vmul.f32 %v2176, %v2410
  %v2573 = vmul.f32 %v2177, %v2410
  %v2574 = vmul.f32 %v2178, %v2415
  %v2575 = vmul.f32 %v2179, %v2415
  %v2576 = vmul.f32 %v2180, %v2415
  %v2577 = vmul.f32 %v2181, %v2420
  %v2578 = vmul.f32 %v2182, %v2420
  %v2579 = vmul.f32 %v2183, %v2420
  %v2580 = vmul.f32 %v2184, %v2425
  %v2581 = vmul.f32 %v2185, %v2425
  %v2582 = vmul.f32 %v2186, %v2425
  %v2583 = vmul.f32 %v2187, %v2430
  %v2584 = vmul.f32 %v2188, %v2430
  %v2585 = vmul.f32 %v2189, %v2430
  %v2586 = vmul.f32 %v2190, %v2435
  %v2587 = vmul.f32 %v2191, %v2435
  %v2588 = vmul.f32 %v2192, %v2435
  %v2589 = vmul.f32 %v2193, %v2440
  %v2590 = vmul.f32 %v2194, %v2440
  %v2591 = vmul.f32 %v2195, %v2440
  %v2592 = vmul.f32 %v2196, %v2445
  %v2593 = vmul.f32 %v2197, %v2445
  %v2594 = vmul.f32 %v2198, %v2445
  %v2595 = vmul.f32 %v2199, %v2450
  %v2596 = vmul.f32 %v2200, %v2450
  %v2597 = vmul.f32 %v2201, %v2450
  %v2598 = vmul.f32 %v2202, %v2455
  %v2599 = vmul.f32 %v2203, %v2455
  %v2600 = vmul.f32 %v2204, %v2455
  %v2601 = vmul.f32 %v2205, %v2460
  %v2602 = vmul.f32 %v2206, %v2460
  %v2603 = vmul.f32 %v2207, %v2460
  %v2604 = vmul.f32 %v2208, %v2465
  %v2605 = vmul.f32 %v2209, %v2465
  %v2606 = vmul.f32 %v2210, %v2465
  %v2607 = vmul.f32 %v2211, %v2470
  %v2608 = vmul.f32 %v2212, %v2470
  %v2609 = vmul.f32 %v2213, %v2470
  %v2610 = vmul.f32 %v2214, %v2475
  %v2611 = vmul.f32 %v2215, %v2475
  %v2612 = vmul.f32 %v2216, %v2475
  %v2613 = vmul.f32 %v2217, %v2480
  %v2614 = vmul.f32 %v2218, %v2480
  %v2615 = vmul.f32 %v2219, %v2480
  %v2616 = vmul.f32 %v2220, %v2485
  %v2617 = vmul.f32 %v2221, %v2485
  %v2618 = vmul.f32 %v2222, %v2485
  %2619 = vst [vmem:[#allocation2] sm:$0xff] %v2487
  %2620 = vst [vmem:[#allocation2 + $0x8] sm:$0xff] %v2488
  %2621 = vst.msk [vmem:[#allocation2 + $0x10] sm:$0xff] %vm1296, %v2489
  %2622 = vst [vmem:[#allocation2 + $0x18] sm:$0xff] %v2490
  %2623 = vst [vmem:[#allocation2 + $0x20] sm:$0xff] %v2491
  %2624 = vst.msk [vmem:[#allocation2 + $0x28] sm:$0xff] %vm1296, %v2492
  %2625 = vst [vmem:[#allocation2 + $0x30] sm:$0xff] %v2493
  %2626 = vst [vmem:[#allocation2 + $0x38] sm:$0xff] %v2494
  %2627 = vst.msk [vmem:[#allocation2 + $0x40] sm:$0xff] %vm1296, %v2495
  %2628 = vst [vmem:[#allocation2 + $0x48] sm:$0xff] %v2496
  %2629 = vst [vmem:[#allocation2 + $0x50] sm:$0xff] %v2497
  %2630 = vst.msk [vmem:[#allocation2 + $0x58] sm:$0xff] %vm1296, %v2498
  %2631 = vst [vmem:[#allocation2 + $0x60] sm:$0xff] %v2499
  %2632 = vst [vmem:[#allocation2 + $0x68] sm:$0xff] %v2500
  %2633 = vst.msk [vmem:[#allocation2 + $0x70] sm:$0xff] %vm1296, %v2501
  %2634 = vst [vmem:[#allocation2 + $0x78] sm:$0xff] %v2502
  %2635 = vst [vmem:[#allocation2 + $0x80] sm:$0xff] %v2503
  %2636 = vst.msk [vmem:[#allocation2 + $0x88] sm:$0xff] %vm1296, %v2504
  %2637 = vst [vmem:[#allocation2 + $0x90] sm:$0xff] %v2505
  %2638 = vst [vmem:[#allocation2 + $0x98] sm:$0xff] %v2506
  %2639 = vst.msk [vmem:[#allocation2 + $0xa0] sm:$0xff] %vm1296, %v2507
  %2640 = vst [vmem:[#allocation2 + $0xa8] sm:$0xff] %v2508
  %2641 = vst [vmem:[#allocation2 + $0xb0] sm:$0xff] %v2509
  %2642 = vst.msk [vmem:[#allocation2 + $0xb8] sm:$0xff] %vm1296, %v2510
  %2643 = vst [vmem:[#allocation2 + $0xc0] sm:$0xff] %v2511
  %2644 = vst [vmem:[#allocation2 + $0xc8] sm:$0xff] %v2512
  %2645 = vst.msk [vmem:[#allocation2 + $0xd0] sm:$0xff] %vm1296, %v2513
  %2646 = vst [vmem:[#allocation2 + $0xd8] sm:$0xff] %v2514
  %2647 = vst [vmem:[#allocation2 + $0xe0] sm:$0xff] %v2515
  %2648 = vst.msk [vmem:[#allocation2 + $0xe8] sm:$0xff] %vm1296, %v2516
  %2649 = vst [vmem:[#allocation2 + $0xf0] sm:$0xff] %v2517
  %2650 = vst [vmem:[#allocation2 + $0xf8] sm:$0xff] %v2518
  %2651 = vst.msk [vmem:[#allocation2 + $0x100] sm:$0xff] %vm1296, %v2519
  %2652 = vst [vmem:[#allocation2 + $0x108] sm:$0xff] %v2520
  %2653 = vst [vmem:[#allocation2 + $0x110] sm:$0xff] %v2521
  %2654 = vst.msk [vmem:[#allocation2 + $0x118] sm:$0xff] %vm1296, %v2522
  %2655 = vst [vmem:[#allocation2 + $0x120] sm:$0xff] %v2523
  %2656 = vst [vmem:[#allocation2 + $0x128] sm:$0xff] %v2524
  %2657 = vst.msk [vmem:[#allocation2 + $0x130] sm:$0xff] %vm1296, %v2525
  %2658 = vst [vmem:[#allocation2 + $0x138] sm:$0xff] %v2526
  %2659 = vst [vmem:[#allocation2 + $0x140] sm:$0xff] %v2527
  %2660 = vst.msk [vmem:[#allocation2 + $0x148] sm:$0xff] %vm1296, %v2528
  %2661 = vst [vmem:[#allocation2 + $0x150] sm:$0xff] %v2529
  %2662 = vst [vmem:[#allocation2 + $0x158] sm:$0xff] %v2530
  %2663 = vst.msk [vmem:[#allocation2 + $0x160] sm:$0xff] %vm1296, %v2531
  %2664 = vst [vmem:[#allocation2 + $0x168] sm:$0xff] %v2532
  %2665 = vst [vmem:[#allocation2 + $0x170] sm:$0xff] %v2533
  %2666 = vst.msk [vmem:[#allocation2 + $0x178] sm:$0xff] %vm1296, %v2534
  %2667 = vst [vmem:[#allocation2 + $0x180] sm:$0xff] %v2535
  %2668 = vst [vmem:[#allocation2 + $0x188] sm:$0xff] %v2536
  %2669 = vst.msk [vmem:[#allocation2 + $0x190] sm:$0xff] %vm1296, %v2537
  %2670 = vst [vmem:[#allocation2 + $0x198] sm:$0xff] %v2538
  %2671 = vst [vmem:[#allocation2 + $0x1a0] sm:$0xff] %v2539
  %2672 = vst.msk [vmem:[#allocation2 + $0x1a8] sm:$0xff] %vm1296, %v2540
  %2673 = vst [vmem:[#allocation2 + $0x1b0] sm:$0xff] %v2541
  %2674 = vst [vmem:[#allocation2 + $0x1b8] sm:$0xff] %v2542
  %2675 = vst.msk [vmem:[#allocation2 + $0x1c0] sm:$0xff] %vm1296, %v2543
  %2676 = vst [vmem:[#allocation2 + $0x1c8] sm:$0xff] %v2544
  %2677 = vst [vmem:[#allocation2 + $0x1d0] sm:$0xff] %v2545
  %2678 = vst.msk [vmem:[#allocation2 + $0x1d8] sm:$0xff] %vm1296, %v2546
  %2679 = vst [vmem:[#allocation2 + $0x1e0] sm:$0xff] %v2547
  %2680 = vst [vmem:[#allocation2 + $0x1e8] sm:$0xff] %v2548
  %2681 = vst.msk [vmem:[#allocation2 + $0x1f0] sm:$0xff] %vm1296, %v2549
  %2682 = vst [vmem:[#allocation2 + $0x1f8] sm:$0xff] %v2550
  %2683 = vst [vmem:[#allocation2 + $0x200] sm:$0xff] %v2551
  %2684 = vst.msk [vmem:[#allocation2 + $0x208] sm:$0xff] %vm1296, %v2552
  %2685 = vst [vmem:[#allocation2 + $0x210] sm:$0xff] %v2553
  %2686 = vst [vmem:[#allocation2 + $0x218] sm:$0xff] %v2554
  %2687 = vst.msk [vmem:[#allocation2 + $0x220] sm:$0xff] %vm1296, %v2555
  %2688 = vst [vmem:[#allocation2 + $0x228] sm:$0xff] %v2556
  %2689 = vst [vmem:[#allocation2 + $0x230] sm:$0xff] %v2557
  %2690 = vst.msk [vmem:[#allocation2 + $0x238] sm:$0xff] %vm1296, %v2558
  %2691 = vst [vmem:[#allocation2 + $0x240] sm:$0xff] %v2559
  %2692 = vst [vmem:[#allocation2 + $0x248] sm:$0xff] %v2560
  %2693 = vst.msk [vmem:[#allocation2 + $0x250] sm:$0xff] %vm1296, %v2561
  %2694 = vst [vmem:[#allocation2 + $0x258] sm:$0xff] %v2562
  %2695 = vst [vmem:[#allocation2 + $0x260] sm:$0xff] %v2563
  %2696 = vst.msk [vmem:[#allocation2 + $0x268] sm:$0xff] %vm1296, %v2564
  %2697 = vst [vmem:[#allocation2 + $0x270] sm:$0xff] %v2565
  %2698 = vst [vmem:[#allocation2 + $0x278] sm:$0xff] %v2566
  %2699 = vst.msk [vmem:[#allocation2 + $0x280] sm:$0xff] %vm1296, %v2567
  %2700 = vst [vmem:[#allocation2 + $0x288] sm:$0xff] %v2568
  %2701 = vst [vmem:[#allocation2 + $0x290] sm:$0xff] %v2569
  %2702 = vst.msk [vmem:[#allocation2 + $0x298] sm:$0xff] %vm1296, %v2570
  %2703 = vst [vmem:[#allocation2 + $0x2a0] sm:$0xff] %v2571
  %2704 = vst [vmem:[#allocation2 + $0x2a8] sm:$0xff] %v2572
  %2705 = vst.msk [vmem:[#allocation2 + $0x2b0] sm:$0xff] %vm1296, %v2573
  %2706 = vst [vmem:[#allocation2 + $0x2b8] sm:$0xff] %v2574
  %2707 = vst [vmem:[#allocation2 + $0x2c0] sm:$0xff] %v2575
  %2708 = vst.msk [vmem:[#allocation2 + $0x2c8] sm:$0xff] %vm1296, %v2576
  %2709 = vst [vmem:[#allocation2 + $0x2d0] sm:$0xff] %v2577
  %2710 = vst [vmem:[#allocation2 + $0x2d8] sm:$0xff] %v2578
  %2711 = vst.msk [vmem:[#allocation2 + $0x2e0] sm:$0xff] %vm1296, %v2579
  %2712 = vst [vmem:[#allocation2 + $0x2e8] sm:$0xff] %v2580
  %2713 = vst [vmem:[#allocation2 + $0x2f0] sm:$0xff] %v2581
  %2714 = vst.msk [vmem:[#allocation2 + $0x2f8] sm:$0xff] %vm1296, %v2582
  %2715 = vst [vmem:[#allocation2 + $0x300] sm:$0xff] %v2583
  %2716 = vst [vmem:[#allocation2 + $0x308] sm:$0xff] %v2584
  %2717 = vst.msk [vmem:[#allocation2 + $0x310] sm:$0xff] %vm1296, %v2585
  %2718 = vst [vmem:[#allocation2 + $0x318] sm:$0xff] %v2586
  %2719 = vst [vmem:[#allocation2 + $0x320] sm:$0xff] %v2587
  %2720 = vst.msk [vmem:[#allocation2 + $0x328] sm:$0xff] %vm1296, %v2588
  %2721 = vst [vmem:[#allocation2 + $0x330] sm:$0xff] %v2589
  %2722 = vst [vmem:[#allocation2 + $0x338] sm:$0xff] %v2590
  %2723 = vst.msk [vmem:[#allocation2 + $0x340] sm:$0xff] %vm1296, %v2591
  %2724 = vst [vmem:[#allocation2 + $0x348] sm:$0xff] %v2592
  %2725 = vst [vmem:[#allocation2 + $0x350] sm:$0xff] %v2593
  %2726 = vst.msk [vmem:[#allocation2 + $0x358] sm:$0xff] %vm1296, %v2594
  %2727 = vst [vmem:[#allocation2 + $0x360] sm:$0xff] %v2595
  %2728 = vst [vmem:[#allocation2 + $0x368] sm:$0xff] %v2596
  %2729 = vst.msk [vmem:[#allocation2 + $0x370] sm:$0xff] %vm1296, %v2597
  %2730 = vst [vmem:[#allocation2 + $0x378] sm:$0xff] %v2598
  %2731 = vst [vmem:[#allocation2 + $0x380] sm:$0xff] %v2599
  %2732 = vst.msk [vmem:[#allocation2 + $0x388] sm:$0xff] %vm1296, %v2600
  %2733 = vst [vmem:[#allocation2 + $0x390] sm:$0xff] %v2601
  %2734 = vst [vmem:[#allocation2 + $0x398] sm:$0xff] %v2602
  %2735 = vst.msk [vmem:[#allocation2 + $0x3a0] sm:$0xff] %vm1296, %v2603
  %2736 = vst [vmem:[#allocation2 + $0x3a8] sm:$0xff] %v2604
  %2737 = vst [vmem:[#allocation2 + $0x3b0] sm:$0xff] %v2605
  %2738 = vst.msk [vmem:[#allocation2 + $0x3b8] sm:$0xff] %vm1296, %v2606
  %2739 = vst [vmem:[#allocation2 + $0x3c0] sm:$0xff] %v2607
  %2740 = vst [vmem:[#allocation2 + $0x3c8] sm:$0xff] %v2608
  %2741 = vst.msk [vmem:[#allocation2 + $0x3d0] sm:$0xff] %vm1296, %v2609
  %2742 = vst [vmem:[#allocation2 + $0x3d8] sm:$0xff] %v2610
  %2743 = vst [vmem:[#allocation2 + $0x3e0] sm:$0xff] %v2611
  %2744 = vst.msk [vmem:[#allocation2 + $0x3e8] sm:$0xff] %vm1296, %v2612
  %2745 = vst [vmem:[#allocation2 + $0x3f0] sm:$0xff] %v2613
  %2746 = vst [vmem:[#allocation2 + $0x3f8] sm:$0xff] %v2614
  %2747 = vst.msk [vmem:[#allocation2 + $0x400] sm:$0xff] %vm1296, %v2615
  %2748 = vst [vmem:[#allocation2 + $0x408] sm:$0xff] %v2616
  %2749 = vst [vmem:[#allocation2 + $0x410] sm:$0xff] %v2617
  %2750 = vst.msk [vmem:[#allocation2 + $0x418] sm:$0xff] %vm1296, %v2618
  %v2751 = vld [vmem:[#allocation2] sm:$0xff]
  %v2752 = vld [vmem:[#allocation2 + $0x8] sm:$0xff]
  %v2753 = vld [vmem:[#allocation2 + $0x10] sm:$0xff]
  %v2754 = vld [vmem:[#allocation2 + $0x18] sm:$0xff]
  %v2755 = vld [vmem:[#allocation2 + $0x20] sm:$0xff]
  %v2756 = vld [vmem:[#allocation2 + $0x28] sm:$0xff]
  %v2757 = vld [vmem:[#allocation2 + $0x30] sm:$0xff]
  %v2758 = vld [vmem:[#allocation2 + $0x38] sm:$0xff]
  %v2759 = vld [vmem:[#allocation2 + $0x40] sm:$0xff]
  %v2760 = vld [vmem:[#allocation2 + $0x48] sm:$0xff]
  %v2761 = vld [vmem:[#allocation2 + $0x50] sm:$0xff]
  %v2762 = vld [vmem:[#allocation2 + $0x58] sm:$0xff]
  %v2763 = vld [vmem:[#allocation2 + $0x60] sm:$0xff]
  %v2764 = vld [vmem:[#allocation2 + $0x68] sm:$0xff]
  %v2765 = vld [vmem:[#allocation2 + $0x70] sm:$0xff]
  %v2766 = vld [vmem:[#allocation2 + $0x78] sm:$0xff]
  %v2767 = vld [vmem:[#allocation2 + $0x80] sm:$0xff]
  %v2768 = vld [vmem:[#allocation2 + $0x88] sm:$0xff]
  %v2769 = vld [vmem:[#allocation2 + $0x90] sm:$0xff]
  %v2770 = vld [vmem:[#allocation2 + $0x98] sm:$0xff]
  %v2771 = vld [vmem:[#allocation2 + $0xa0] sm:$0xff]
  %v2772 = vld [vmem:[#allocation2 + $0xa8] sm:$0xff]
  %v2773 = vld [vmem:[#allocation2 + $0xb0] sm:$0xff]
  %v2774 = vld [vmem:[#allocation2 + $0xb8] sm:$0xff]
  %v2775 = vld [vmem:[%s6] ss:$8 sm:$0x7]
  %v2777 = vlaneseq
  %v2778 = vshrl.u32 %v2777, 7
  %v2779 = vsub.s32 0, %v2778
  %v2780 = vrot.slane %v2775, %v2779
  %v2781 = vlaneseq
  %v2782 = vshrl.u32 %v2781, 7
  %v2783 = vsub.s32 1, %v2782
  %v2784 = vrot.slane %v2775, %v2783
  %v2785 = vlaneseq
  %v2786 = vshrl.u32 %v2785, 7
  %v2787 = vsub.s32 2, %v2786
  %v2788 = vrot.slane %v2775, %v2787
  %v2792 = vmul.f32 %v2751, %v2780
  %v2793 = vmul.f32 %v2752, %v2784
  %v2794 = vmul.f32 %v2753, %v2788
  %v2795 = vmul.f32 %v2754, %v2780
  %v2796 = vmul.f32 %v2755, %v2784
  %v2797 = vmul.f32 %v2756, %v2788
  %v2798 = vmul.f32 %v2757, %v2780
  %v2799 = vmul.f32 %v2758, %v2784
  %v2800 = vmul.f32 %v2759, %v2788
  %v2801 = vmul.f32 %v2760, %v2780
  %v2802 = vmul.f32 %v2761, %v2784
  %v2803 = vmul.f32 %v2762, %v2788
  %v2804 = vmul.f32 %v2763, %v2780
  %v2805 = vmul.f32 %v2764, %v2784
  %v2806 = vmul.f32 %v2765, %v2788
  %v2807 = vmul.f32 %v2766, %v2780
  %v2808 = vmul.f32 %v2767, %v2784
  %v2809 = vmul.f32 %v2768, %v2788
  %v2810 = vmul.f32 %v2769, %v2780
  %v2811 = vmul.f32 %v2770, %v2784
  %v2812 = vmul.f32 %v2771, %v2788
  %v2813 = vmul.f32 %v2772, %v2780
  %v2814 = vmul.f32 %v2773, %v2784
  %v2815 = vmul.f32 %v2774, %v2788
  %v2816 = vadd.f32 %v2792, 0.0
  %v2817 = vadd.f32 %v2793, 0.0
  %v2818 = vadd.f32 %v2794, 0.0
  %v2819 = vadd.f32 %v2795, 0.0
  %v2820 = vadd.f32 %v2796, 0.0
  %v2821 = vadd.f32 %v2797, 0.0
  %v2822 = vadd.f32 %v2798, 0.0
  %v2823 = vadd.f32 %v2799, 0.0
  %v2824 = vadd.f32 %v2800, 0.0
  %v2825 = vadd.f32 %v2801, 0.0
  %v2826 = vadd.f32 %v2802, 0.0
  %v2827 = vadd.f32 %v2803, 0.0
  %v2828 = vadd.f32 %v2804, 0.0
  %v2829 = vadd.f32 %v2805, 0.0
  %v2830 = vadd.f32 %v2806, 0.0
  %v2831 = vadd.f32 %v2807, 0.0
  %v2832 = vadd.f32 %v2808, 0.0
  %v2833 = vadd.f32 %v2809, 0.0
  %v2834 = vadd.f32 %v2810, 0.0
  %v2835 = vadd.f32 %v2811, 0.0
  %v2836 = vadd.f32 %v2812, 0.0
  %v2837 = vadd.f32 %v2813, 0.0
  %v2838 = vadd.f32 %v2814, 0.0
  %v2839 = vadd.f32 %v2815, 0.0
  %v2840 = vld [vmem:[#allocation2 + $0x108] sm:$0xff]
  %v2841 = vld [vmem:[#allocation2 + $0x110] sm:$0xff]
  %v2842 = vld [vmem:[#allocation2 + $0x118] sm:$0xff]
  %v2843 = vld [vmem:[#allocation2 + $0x120] sm:$0xff]
  %v2844 = vld [vmem:[#allocation2 + $0x128] sm:$0xff]
  %v2845 = vld [vmem:[#allocation2 + $0x130] sm:$0xff]
  %v2846 = vld [vmem:[#allocation2 + $0x138] sm:$0xff]
  %v2847 = vld [vmem:[#allocation2 + $0x140] sm:$0xff]
  %v2848 = vld [vmem:[#allocation2 + $0x148] sm:$0xff]
  %v2849 = vld [vmem:[#allocation2 + $0x150] sm:$0xff]
  %v2850 = vld [vmem:[#allocation2 + $0x158] sm:$0xff]
  %v2851 = vld [vmem:[#allocation2 + $0x160] sm:$0xff]
  %v2852 = vld [vmem:[#allocation2 + $0x168] sm:$0xff]
  %v2853 = vld [vmem:[#allocation2 + $0x170] sm:$0xff]
  %v2854 = vld [vmem:[#allocation2 + $0x178] sm:$0xff]
  %v2855 = vld [vmem:[#allocation2 + $0x180] sm:$0xff]
  %v2856 = vld [vmem:[#allocation2 + $0x188] sm:$0xff]
  %v2857 = vld [vmem:[#allocation2 + $0x190] sm:$0xff]
  %v2858 = vld [vmem:[#allocation2 + $0x198] sm:$0xff]
  %v2859 = vld [vmem:[#allocation2 + $0x1a0] sm:$0xff]
  %v2860 = vld [vmem:[#allocation2 + $0x1a8] sm:$0xff]
  %v2861 = vld [vmem:[#allocation2 + $0x1b0] sm:$0xff]
  %v2862 = vld [vmem:[#allocation2 + $0x1b8] sm:$0xff]
  %v2863 = vld [vmem:[#allocation2 + $0x1c0] sm:$0xff]
  %s2864 = scalar_lea.vmem %s6, 1
  %v2865 = vld [vmem:[%s2864] ss:$8 sm:$0x7]
  %v2867 = vlaneseq
  %v2868 = vshrl.u32 %v2867, 7
  %v2869 = vsub.s32 0, %v2868
  %v2870 = vrot.slane %v2865, %v2869
  %v2871 = vlaneseq
  %v2872 = vshrl.u32 %v2871, 7
  %v2873 = vsub.s32 1, %v2872
  %v2874 = vrot.slane %v2865, %v2873
  %v2875 = vlaneseq
  %v2876 = vshrl.u32 %v2875, 7
  %v2877 = vsub.s32 2, %v2876
  %v2878 = vrot.slane %v2865, %v2877
  %v2882 = vmul.f32 %v2840, %v2870
  %v2883 = vmul.f32 %v2841, %v2874
  %v2884 = vmul.f32 %v2842, %v2878
  %v2885 = vmul.f32 %v2843, %v2870
  %v2886 = vmul.f32 %v2844, %v2874
  %v2887 = vmul.f32 %v2845, %v2878
  %v2888 = vmul.f32 %v2846, %v2870
  %v2889 = vmul.f32 %v2847, %v2874
  %v2890 = vmul.f32 %v2848, %v2878
  %v2891 = vmul.f32 %v2849, %v2870
  %v2892 = vmul.f32 %v2850, %v2874
  %v2893 = vmul.f32 %v2851, %v2878
  %v2894 = vmul.f32 %v2852, %v2870
  %v2895 = vmul.f32 %v2853, %v2874
  %v2896 = vmul.f32 %v2854, %v2878
  %v2897 = vmul.f32 %v2855, %v2870
  %v2898 = vmul.f32 %v2856, %v2874
  %v2899 = vmul.f32 %v2857, %v2878
  %v2900 = vmul.f32 %v2858, %v2870
  %v2901 = vmul.f32 %v2859, %v2874
  %v2902 = vmul.f32 %v2860, %v2878
  %v2903 = vmul.f32 %v2861, %v2870
  %v2904 = vmul.f32 %v2862, %v2874
  %v2905 = vmul.f32 %v2863, %v2878
  %v2906 = vadd.f32 %v2816, %v2882
  %v2907 = vadd.f32 %v2817, %v2883
  %v2908 = vadd.f32 %v2818, %v2884
  %v2909 = vadd.f32 %v2819, %v2885
  %v2910 = vadd.f32 %v2820, %v2886
  %v2911 = vadd.f32 %v2821, %v2887
  %v2912 = vadd.f32 %v2822, %v2888
  %v2913 = vadd.f32 %v2823, %v2889
  %v2914 = vadd.f32 %v2824, %v2890
  %v2915 = vadd.f32 %v2825, %v2891
  %v2916 = vadd.f32 %v2826, %v2892
  %v2917 = vadd.f32 %v2827, %v2893
  %v2918 = vadd.f32 %v2828, %v2894
  %v2919 = vadd.f32 %v2829, %v2895
  %v2920 = vadd.f32 %v2830, %v2896
  %v2921 = vadd.f32 %v2831, %v2897
  %v2922 = vadd.f32 %v2832, %v2898
  %v2923 = vadd.f32 %v2833, %v2899
  %v2924 = vadd.f32 %v2834, %v2900
  %v2925 = vadd.f32 %v2835, %v2901
  %v2926 = vadd.f32 %v2836, %v2902
  %v2927 = vadd.f32 %v2837, %v2903
  %v2928 = vadd.f32 %v2838, %v2904
  %v2929 = vadd.f32 %v2839, %v2905
  %v2930 = vld [vmem:[#allocation2] sm:$0xfe]
  %v2931 = vld [vmem:[#allocation2 + $0x8] sm:$0xfe]
  %v2932 = vld [vmem:[#allocation2 + $0x10] sm:$0xfe]
  %v2933 = vld [vmem:[#allocation2 + $0xc0] sm:$0x1]
  %v2934 = vld [vmem:[#allocation2 + $0xc8] sm:$0x1]
  %v2935 = vld [vmem:[#allocation2 + $0xd0] sm:$0x1]
  %s2936 = scalar_lea.vmem %s6, 2
  %v2937 = vld [vmem:[%s2936] ss:$8 sm:$0x7]
  %v2939 = vlaneseq
  %v2940 = vshrl.u32 %v2939, 7
  %v2941 = vsub.s32 0, %v2940
  %v2942 = vrot.slane %v2937, %v2941
  %v2943 = vlaneseq
  %v2944 = vshrl.u32 %v2943, 7
  %v2945 = vsub.s32 1, %v2944
  %v2946 = vrot.slane %v2937, %v2945
  %v2947 = vlaneseq
  %v2948 = vshrl.u32 %v2947, 7
  %v2949 = vsub.s32 2, %v2948
  %v2950 = vrot.slane %v2937, %v2949
  %v2954 = vmul.f32 %v2930, %v2942
  %v2955 = vmul.f32 %v2931, %v2946
  %v2956 = vmul.f32 %v2932, %v2950
  %v2957 = vmul.f32 %v2754, %v2942
  %v2958 = vmul.f32 %v2755, %v2946
  %v2959 = vmul.f32 %v2756, %v2950
  %v2960 = vmul.f32 %v2757, %v2942
  %v2961 = vmul.f32 %v2758, %v2946
  %v2962 = vmul.f32 %v2759, %v2950
  %v2963 = vmul.f32 %v2760, %v2942
  %v2964 = vmul.f32 %v2761, %v2946
  %v2965 = vmul.f32 %v2762, %v2950
  %v2966 = vmul.f32 %v2763, %v2942
  %v2967 = vmul.f32 %v2764, %v2946
  %v2968 = vmul.f32 %v2765, %v2950
  %v2969 = vmul.f32 %v2766, %v2942
  %v2970 = vmul.f32 %v2767, %v2946
  %v2971 = vmul.f32 %v2768, %v2950
  %v2972 = vmul.f32 %v2769, %v2942
  %v2973 = vmul.f32 %v2770, %v2946
  %v2974 = vmul.f32 %v2771, %v2950
  %v2975 = vmul.f32 %v2772, %v2942
  %v2976 = vmul.f32 %v2773, %v2946
  %v2977 = vmul.f32 %v2774, %v2950
  %v2978 = vmul.f32 %v2933, %v2942
  %v2979 = vmul.f32 %v2934, %v2946
  %v2980 = vmul.f32 %v2935, %v2950
  %vm3008 = vcmask 1046528
  %v3009 = vrot.slane %v2954, 1
  %v3010 = vrot.slane %v2957, 1
  %v3011 = vsel %vm3008, %v3009, %v3010
  %v3012 = vrot.slane %v2955, 1
  %v3013 = vrot.slane %v2958, 1
  %v3014 = vsel %vm3008, %v3012, %v3013
  %v3015 = vrot.slane %v2956, 1
  %v3016 = vrot.slane %v2959, 1
  %v3017 = vsel %vm3008, %v3015, %v3016
  %v3018 = vrot.slane %v2960, 1
  %v3019 = vsel %vm3008, %v3010, %v3018
  %v3020 = vrot.slane %v2961, 1
  %v3021 = vsel %vm3008, %v3013, %v3020
  %v3022 = vrot.slane %v2962, 1
  %v3023 = vsel %vm3008, %v3016, %v3022
  %v3024 = vrot.slane %v2963, 1
  %v3025 = vsel %vm3008, %v3018, %v3024
  %v3026 = vrot.slane %v2964, 1
  %v3027 = vsel %vm3008, %v3020, %v3026
  %v3028 = vrot.slane %v2965, 1
  %v3029 = vsel %vm3008, %v3022, %v3028
  %v3030 = vrot.slane %v2966, 1
  %v3031 = vsel %vm3008, %v3024, %v3030
  %v3032 = vrot.slane %v2967, 1
  %v3033 = vsel %vm3008, %v3026, %v3032
  %v3034 = vrot.slane %v2968, 1
  %v3035 = vsel %vm3008, %v3028, %v3034
  %v3036 = vrot.slane %v2969, 1
  %v3037 = vsel %vm3008, %v3030, %v3036
  %v3038 = vrot.slane %v2970, 1
  %v3039 = vsel %vm3008, %v3032, %v3038
  %v3040 = vrot.slane %v2971, 1
  %v3041 = vsel %vm3008, %v3034, %v3040
  %v3042 = vrot.slane %v2972, 1
  %v3043 = vsel %vm3008, %v3036, %v3042
  %v3044 = vrot.slane %v2973, 1
  %v3045 = vsel %vm3008, %v3038, %v3044
  %v3046 = vrot.slane %v2974, 1
  %v3047 = vsel %vm3008, %v3040, %v3046
  %v3048 = vrot.slane %v2975, 1
  %v3049 = vsel %vm3008, %v3042, %v3048
  %v3050 = vrot.slane %v2976, 1
  %v3051 = vsel %vm3008, %v3044, %v3050
  %v3052 = vrot.slane %v2977, 1
  %v3053 = vsel %vm3008, %v3046, %v3052
  %v3054 = vrot.slane %v2978, 1
  %v3055 = vsel %vm3008, %v3048, %v3054
  %v3056 = vrot.slane %v2979, 1
  %v3057 = vsel %vm3008, %v3050, %v3056
  %v3058 = vrot.slane %v2980, 1
  %v3059 = vsel %vm3008, %v3052, %v3058
  %v3084 = vadd.f32 %v2906, %v3011
  %v3085 = vadd.f32 %v2907, %v3014
  %v3086 = vadd.f32 %v2908, %v3017
  %v3087 = vadd.f32 %v2909, %v3019
  %v3088 = vadd.f32 %v2910, %v3021
  %v3089 = vadd.f32 %v2911, %v3023
  %v3090 = vadd.f32 %v2912, %v3025
  %v3091 = vadd.f32 %v2913, %v3027
  %v3092 = vadd.f32 %v2914, %v3029
  %v3093 = vadd.f32 %v2915, %v3031
  %v3094 = vadd.f32 %v2916, %v3033
  %v3095 = vadd.f32 %v2917, %v3035
  %v3096 = vadd.f32 %v2918, %v3037
  %v3097 = vadd.f32 %v2919, %v3039
  %v3098 = vadd.f32 %v2920, %v3041
  %v3099 = vadd.f32 %v2921, %v3043
  %v3100 = vadd.f32 %v2922, %v3045
  %v3101 = vadd.f32 %v2923, %v3047
  %v3102 = vadd.f32 %v2924, %v3049
  %v3103 = vadd.f32 %v2925, %v3051
  %v3104 = vadd.f32 %v2926, %v3053
  %v3105 = vadd.f32 %v2927, %v3055
  %v3106 = vadd.f32 %v2928, %v3057
  %v3107 = vadd.f32 %v2929, %v3059
  %v3108 = vld [vmem:[#allocation2 + $0x108] sm:$0xfe]
  %v3109 = vld [vmem:[#allocation2 + $0x110] sm:$0xfe]
  %v3110 = vld [vmem:[#allocation2 + $0x118] sm:$0xfe]
  %v3111 = vld [vmem:[#allocation2 + $0x1c8] sm:$0x1]
  %v3112 = vld [vmem:[#allocation2 + $0x1d0] sm:$0x1]
  %v3113 = vld [vmem:[#allocation2 + $0x1d8] sm:$0x1]
  %s3114 = scalar_lea.vmem %s6, 3
  %v3115 = vld [vmem:[%s3114] ss:$8 sm:$0x7]
  %v3117 = vlaneseq
  %v3118 = vshrl.u32 %v3117, 7
  %v3119 = vsub.s32 0, %v3118
  %v3120 = vrot.slane %v3115, %v3119
  %v3121 = vlaneseq
  %v3122 = vshrl.u32 %v3121, 7
  %v3123 = vsub.s32 1, %v3122
  %v3124 = vrot.slane %v3115, %v3123
  %v3125 = vlaneseq
  %v3126 = vshrl.u32 %v3125, 7
  %v3127 = vsub.s32 2, %v3126
  %v3128 = vrot.slane %v3115, %v3127
  %v3132 = vmul.f32 %v3108, %v3120
  %v3133 = vmul.f32 %v3109, %v3124
  %v3134 = vmul.f32 %v3110, %v3128
  %v3135 = vmul.f32 %v2843, %v3120
  %v3136 = vmul.f32 %v2844, %v3124
  %v3137 = vmul.f32 %v2845, %v3128
  %v3138 = vmul.f32 %v2846, %v3120
  %v3139 = vmul.f32 %v2847, %v3124
  %v3140 = vmul.f32 %v2848, %v3128
  %v3141 = vmul.f32 %v2849, %v3120
  %v3142 = vmul.f32 %v2850, %v3124
  %v3143 = vmul.f32 %v2851, %v3128
  %v3144 = vmul.f32 %v2852, %v3120
  %v3145 = vmul.f32 %v2853, %v3124
  %v3146 = vmul.f32 %v2854, %v3128
  %v3147 = vmul.f32 %v2855, %v3120
  %v3148 = vmul.f32 %v2856, %v3124
  %v3149 = vmul.f32 %v2857, %v3128
  %v3150 = vmul.f32 %v2858, %v3120
  %v3151 = vmul.f32 %v2859, %v3124
  %v3152 = vmul.f32 %v2860, %v3128
  %v3153 = vmul.f32 %v2861, %v3120
  %v3154 = vmul.f32 %v2862, %v3124
  %v3155 = vmul.f32 %v2863, %v3128
  %v3156 = vmul.f32 %v3111, %v3120
  %v3157 = vmul.f32 %v3112, %v3124
  %v3158 = vmul.f32 %v3113, %v3128
  %v3186 = vrot.slane %v3132, 1
  %v3187 = vrot.slane %v3135, 1
  %v3188 = vsel %vm3008, %v3186, %v3187
  %v3189 = vrot.slane %v3133, 1
  %v3190 = vrot.slane %v3136, 1
  %v3191 = vsel %vm3008, %v3189, %v3190
  %v3192 = vrot.slane %v3134, 1
  %v3193 = vrot.slane %v3137, 1
  %v3194 = vsel %vm3008, %v3192, %v3193
  %v3195 = vrot.slane %v3138, 1
  %v3196 = vsel %vm3008, %v3187, %v3195
  %v3197 = vrot.slane %v3139, 1
  %v3198 = vsel %vm3008, %v3190, %v3197
  %v3199 = vrot.slane %v3140, 1
  %v3200 = vsel %vm3008, %v3193, %v3199
  %v3201 = vrot.slane %v3141, 1
  %v3202 = vsel %vm3008, %v3195, %v3201
  %v3203 = vrot.slane %v3142, 1
  %v3204 = vsel %vm3008, %v3197, %v3203
  %v3205 = vrot.slane %v3143, 1
  %v3206 = vsel %vm3008, %v3199, %v3205
  %v3207 = vrot.slane %v3144, 1
  %v3208 = vsel %vm3008, %v3201, %v3207
  %v3209 = vrot.slane %v3145, 1
  %v3210 = vsel %vm3008, %v3203, %v3209
  %v3211 = vrot.slane %v3146, 1
  %v3212 = vsel %vm3008, %v3205, %v3211
  %v3213 = vrot.slane %v3147, 1
  %v3214 = vsel %vm3008, %v3207, %v3213
  %v3215 = vrot.slane %v3148, 1
  %v3216 = vsel %vm3008, %v3209, %v3215
  %v3217 = vrot.slane %v3149, 1
  %v3218 = vsel %vm3008, %v3211, %v3217
  %v3219 = vrot.slane %v3150, 1
  %v3220 = vsel %vm3008, %v3213, %v3219
  %v3221 = vrot.slane %v3151, 1
  %v3222 = vsel %vm3008, %v3215, %v3221
  %v3223 = vrot.slane %v3152, 1
  %v3224 = vsel %vm3008, %v3217, %v3223
  %v3225 = vrot.slane %v3153, 1
  %v3226 = vsel %vm3008, %v3219, %v3225
  %v3227 = vrot.slane %v3154, 1
  %v3228 = vsel %vm3008, %v3221, %v3227
  %v3229 = vrot.slane %v3155, 1
  %v3230 = vsel %vm3008, %v3223, %v3229
  %v3231 = vrot.slane %v3156, 1
  %v3232 = vsel %vm3008, %v3225, %v3231
  %v3233 = vrot.slane %v3157, 1
  %v3234 = vsel %vm3008, %v3227, %v3233
  %v3235 = vrot.slane %v3158, 1
  %v3236 = vsel %vm3008, %v3229, %v3235
  %v3261 = vadd.f32 %v3084, %v3188
  %v3262 = vadd.f32 %v3085, %v3191
  %v3263 = vadd.f32 %v3086, %v3194
  %v3264 = vadd.f32 %v3087, %v3196
  %v3265 = vadd.f32 %v3088, %v3198
  %v3266 = vadd.f32 %v3089, %v3200
  %v3267 = vadd.f32 %v3090, %v3202
  %v3268 = vadd.f32 %v3091, %v3204
  %v3269 = vadd.f32 %v3092, %v3206
  %v3270 = vadd.f32 %v3093, %v3208
  %v3271 = vadd.f32 %v3094, %v3210
  %v3272 = vadd.f32 %v3095, %v3212
  %v3273 = vadd.f32 %v3096, %v3214
  %v3274 = vadd.f32 %v3097, %v3216
  %v3275 = vadd.f32 %v3098, %v3218
  %v3276 = vadd.f32 %v3099, %v3220
  %v3277 = vadd.f32 %v3100, %v3222
  %v3278 = vadd.f32 %v3101, %v3224
  %v3279 = vadd.f32 %v3102, %v3226
  %v3280 = vadd.f32 %v3103, %v3228
  %v3281 = vadd.f32 %v3104, %v3230
  %v3282 = vadd.f32 %v3105, %v3232
  %v3283 = vadd.f32 %v3106, %v3234
  %v3284 = vadd.f32 %v3107, %v3236
  %v3285 = vld [vmem:[#allocation2] sm:$0xfc]
  %v3286 = vld [vmem:[#allocation2 + $0x8] sm:$0xfc]
  %v3287 = vld [vmem:[#allocation2 + $0x10] sm:$0xfc]
  %v3288 = vld [vmem:[#allocation2 + $0xc0] sm:$0x3]
  %v3289 = vld [vmem:[#allocation2 + $0xc8] sm:$0x3]
  %v3290 = vld [vmem:[#allocation2 + $0xd0] sm:$0x3]
  %s3291 = scalar_lea.vmem %s6, 4
  %v3292 = vld [vmem:[%s3291] ss:$8 sm:$0x7]
  %v3294 = vlaneseq
  %v3295 = vshrl.u32 %v3294, 7
  %v3296 = vsub.s32 0, %v3295
  %v3297 = vrot.slane %v3292, %v3296
  %v3298 = vlaneseq
  %v3299 = vshrl.u32 %v3298, 7
  %v3300 = vsub.s32 1, %v3299
  %v3301 = vrot.slane %v3292, %v3300
  %v3302 = vlaneseq
  %v3303 = vshrl.u32 %v3302, 7
  %v3304 = vsub.s32 2, %v3303
  %v3305 = vrot.slane %v3292, %v3304
  %v3309 = vmul.f32 %v3285, %v3297
  %v3310 = vmul.f32 %v3286, %v3301
  %v3311 = vmul.f32 %v3287, %v3305
  %v3312 = vmul.f32 %v2754, %v3297
  %v3313 = vmul.f32 %v2755, %v3301
  %v3314 = vmul.f32 %v2756, %v3305
  %v3315 = vmul.f32 %v2757, %v3297
  %v3316 = vmul.f32 %v2758, %v3301
  %v3317 = vmul.f32 %v2759, %v3305
  %v3318 = vmul.f32 %v2760, %v3297
  %v3319 = vmul.f32 %v2761, %v3301
  %v3320 = vmul.f32 %v2762, %v3305
  %v3321 = vmul.f32 %v2763, %v3297
  %v3322 = vmul.f32 %v2764, %v3301
  %v3323 = vmul.f32 %v2765, %v3305
  %v3324 = vmul.f32 %v2766, %v3297
  %v3325 = vmul.f32 %v2767, %v3301
  %v3326 = vmul.f32 %v2768, %v3305
  %v3327 = vmul.f32 %v2769, %v3297
  %v3328 = vmul.f32 %v2770, %v3301
  %v3329 = vmul.f32 %v2771, %v3305
  %v3330 = vmul.f32 %v2772, %v3297
  %v3331 = vmul.f32 %v2773, %v3301
  %v3332 = vmul.f32 %v2774, %v3305
  %v3333 = vmul.f32 %v3288, %v3297
  %v3334 = vmul.f32 %v3289, %v3301
  %v3335 = vmul.f32 %v3290, %v3305
  %vm3363 = vcmask 1045504
  %v3364 = vrot.slane %v3309, 2
  %v3365 = vrot.slane %v3312, 2
  %v3366 = vsel %vm3363, %v3364, %v3365
  %v3367 = vrot.slane %v3310, 2
  %v3368 = vrot.slane %v3313, 2
  %v3369 = vsel %vm3363, %v3367, %v3368
  %v3370 = vrot.slane %v3311, 2
  %v3371 = vrot.slane %v3314, 2
  %v3372 = vsel %vm3363, %v3370, %v3371
  %v3373 = vrot.slane %v3315, 2
  %v3374 = vsel %vm3363, %v3365, %v3373
  %v3375 = vrot.slane %v3316, 2
  %v3376 = vsel %vm3363, %v3368, %v3375
  %v3377 = vrot.slane %v3317, 2
  %v3378 = vsel %vm3363, %v3371, %v3377
  %v3379 = vrot.slane %v3318, 2
  %v3380 = vsel %vm3363, %v3373, %v3379
  %v3381 = vrot.slane %v3319, 2
  %v3382 = vsel %vm3363, %v3375, %v3381
  %v3383 = vrot.slane %v3320, 2
  %v3384 = vsel %vm3363, %v3377, %v3383
  %v3385 = vrot.slane %v3321, 2
  %v3386 = vsel %vm3363, %v3379, %v3385
  %v3387 = vrot.slane %v3322, 2
  %v3388 = vsel %vm3363, %v3381, %v3387
  %v3389 = vrot.slane %v3323, 2
  %v3390 = vsel %vm3363, %v3383, %v3389
  %v3391 = vrot.slane %v3324, 2
  %v3392 = vsel %vm3363, %v3385, %v3391
  %v3393 = vrot.slane %v3325, 2
  %v3394 = vsel %vm3363, %v3387, %v3393
  %v3395 = vrot.slane %v3326, 2
  %v3396 = vsel %vm3363, %v3389, %v3395
  %v3397 = vrot.slane %v3327, 2
  %v3398 = vsel %vm3363, %v3391, %v3397
  %v3399 = vrot.slane %v3328, 2
  %v3400 = vsel %vm3363, %v3393, %v3399
  %v3401 = vrot.slane %v3329, 2
  %v3402 = vsel %vm3363, %v3395, %v3401
  %v3403 = vrot.slane %v3330, 2
  %v3404 = vsel %vm3363, %v3397, %v3403
  %v3405 = vrot.slane %v3331, 2
  %v3406 = vsel %vm3363, %v3399, %v3405
  %v3407 = vrot.slane %v3332, 2
  %v3408 = vsel %vm3363, %v3401, %v3407
  %v3409 = vrot.slane %v3333, 2
  %v3410 = vsel %vm3363, %v3403, %v3409
  %v3411 = vrot.slane %v3334, 2
  %v3412 = vsel %vm3363, %v3405, %v3411
  %v3413 = vrot.slane %v3335, 2
  %v3414 = vsel %vm3363, %v3407, %v3413
  %v3439 = vadd.f32 %v3261, %v3366
  %v3440 = vadd.f32 %v3262, %v3369
  %v3441 = vadd.f32 %v3263, %v3372
  %v3442 = vadd.f32 %v3264, %v3374
  %v3443 = vadd.f32 %v3265, %v3376
  %v3444 = vadd.f32 %v3266, %v3378
  %v3445 = vadd.f32 %v3267, %v3380
  %v3446 = vadd.f32 %v3268, %v3382
  %v3447 = vadd.f32 %v3269, %v3384
  %v3448 = vadd.f32 %v3270, %v3386
  %v3449 = vadd.f32 %v3271, %v3388
  %v3450 = vadd.f32 %v3272, %v3390
  %v3451 = vadd.f32 %v3273, %v3392
  %v3452 = vadd.f32 %v3274, %v3394
  %v3453 = vadd.f32 %v3275, %v3396
  %v3454 = vadd.f32 %v3276, %v3398
  %v3455 = vadd.f32 %v3277, %v3400
  %v3456 = vadd.f32 %v3278, %v3402
  %v3457 = vadd.f32 %v3279, %v3404
  %v3458 = vadd.f32 %v3280, %v3406
  %v3459 = vadd.f32 %v3281, %v3408
  %v3460 = vadd.f32 %v3282, %v3410
  %v3461 = vadd.f32 %v3283, %v3412
  %v3462 = vadd.f32 %v3284, %v3414
  %v3463 = vld [vmem:[#allocation2 + $0x210] sm:$0xff]
  %v3464 = vld [vmem:[#allocation2 + $0x218] sm:$0xff]
  %v3465 = vld [vmem:[#allocation2 + $0x220] sm:$0xff]
  %v3466 = vld [vmem:[#allocation2 + $0x228] sm:$0xff]
  %v3467 = vld [vmem:[#allocation2 + $0x230] sm:$0xff]
  %v3468 = vld [vmem:[#allocation2 + $0x238] sm:$0xff]
  %v3469 = vld [vmem:[#allocation2 + $0x240] sm:$0xff]
  %v3470 = vld [vmem:[#allocation2 + $0x248] sm:$0xff]
  %v3471 = vld [vmem:[#allocation2 + $0x250] sm:$0xff]
  %v3472 = vld [vmem:[#allocation2 + $0x258] sm:$0xff]
  %v3473 = vld [vmem:[#allocation2 + $0x260] sm:$0xff]
  %v3474 = vld [vmem:[#allocation2 + $0x268] sm:$0xff]
  %v3475 = vld [vmem:[#allocation2 + $0x270] sm:$0xff]
  %v3476 = vld [vmem:[#allocation2 + $0x278] sm:$0xff]
  %v3477 = vld [vmem:[#allocation2 + $0x280] sm:$0xff]
  %v3478 = vld [vmem:[#allocation2 + $0x288] sm:$0xff]
  %v3479 = vld [vmem:[#allocation2 + $0x290] sm:$0xff]
  %v3480 = vld [vmem:[#allocation2 + $0x298] sm:$0xff]
  %v3481 = vld [vmem:[#allocation2 + $0x2a0] sm:$0xff]
  %v3482 = vld [vmem:[#allocation2 + $0x2a8] sm:$0xff]
  %v3483 = vld [vmem:[#allocation2 + $0x2b0] sm:$0xff]
  %v3484 = vld [vmem:[#allocation2 + $0x2b8] sm:$0xff]
  %v3485 = vld [vmem:[#allocation2 + $0x2c0] sm:$0xff]
  %v3486 = vld [vmem:[#allocation2 + $0x2c8] sm:$0xff]
  %s3487 = scalar_lea.vmem %s6, 5
  %v3488 = vld [vmem:[%s3487] ss:$8 sm:$0x7]
  %v3490 = vlaneseq
  %v3491 = vshrl.u32 %v3490, 7
  %v3492 = vsub.s32 0, %v3491
  %v3493 = vrot.slane %v3488, %v3492
  %v3494 = vlaneseq
  %v3495 = vshrl.u32 %v3494, 7
  %v3496 = vsub.s32 1, %v3495
  %v3497 = vrot.slane %v3488, %v3496
  %v3498 = vlaneseq
  %v3499 = vshrl.u32 %v3498, 7
  %v3500 = vsub.s32 2, %v3499
  %v3501 = vrot.slane %v3488, %v3500
  %v3505 = vmul.f32 %v3463, %v3493
  %v3506 = vmul.f32 %v3464, %v3497
  %v3507 = vmul.f32 %v3465, %v3501
  %v3508 = vmul.f32 %v3466, %v3493
  %v3509 = vmul.f32 %v3467, %v3497
  %v3510 = vmul.f32 %v3468, %v3501
  %v3511 = vmul.f32 %v3469, %v3493
  %v3512 = vmul.f32 %v3470, %v3497
  %v3513 = vmul.f32 %v3471, %v3501
  %v3514 = vmul.f32 %v3472, %v3493
  %v3515 = vmul.f32 %v3473, %v3497
  %v3516 = vmul.f32 %v3474, %v3501
  %v3517 = vmul.f32 %v3475, %v3493
  %v3518 = vmul.f32 %v3476, %v3497
  %v3519 = vmul.f32 %v3477, %v3501
  %v3520 = vmul.f32 %v3478, %v3493
  %v3521 = vmul.f32 %v3479, %v3497
  %v3522 = vmul.f32 %v3480, %v3501
  %v3523 = vmul.f32 %v3481, %v3493
  %v3524 = vmul.f32 %v3482, %v3497
  %v3525 = vmul.f32 %v3483, %v3501
  %v3526 = vmul.f32 %v3484, %v3493
  %v3527 = vmul.f32 %v3485, %v3497
  %v3528 = vmul.f32 %v3486, %v3501
  %v3529 = vadd.f32 %v3439, %v3505
  %v3530 = vadd.f32 %v3440, %v3506
  %v3531 = vadd.f32 %v3441, %v3507
  %v3532 = vadd.f32 %v3442, %v3508
  %v3533 = vadd.f32 %v3443, %v3509
  %v3534 = vadd.f32 %v3444, %v3510
  %v3535 = vadd.f32 %v3445, %v3511
  %v3536 = vadd.f32 %v3446, %v3512
  %v3537 = vadd.f32 %v3447, %v3513
  %v3538 = vadd.f32 %v3448, %v3514
  %v3539 = vadd.f32 %v3449, %v3515
  %v3540 = vadd.f32 %v3450, %v3516
  %v3541 = vadd.f32 %v3451, %v3517
  %v3542 = vadd.f32 %v3452, %v3518
  %v3543 = vadd.f32 %v3453, %v3519
  %v3544 = vadd.f32 %v3454, %v3520
  %v3545 = vadd.f32 %v3455, %v3521
  %v3546 = vadd.f32 %v3456, %v3522
  %v3547 = vadd.f32 %v3457, %v3523
  %v3548 = vadd.f32 %v3458, %v3524
  %v3549 = vadd.f32 %v3459, %v3525
  %v3550 = vadd.f32 %v3460, %v3526
  %v3551 = vadd.f32 %v3461, %v3527
  %v3552 = vadd.f32 %v3462, %v3528
  %v3553 = vld [vmem:[#allocation2 + $0x318] sm:$0xff]
  %v3554 = vld [vmem:[#allocation2 + $0x320] sm:$0xff]
  %v3555 = vld [vmem:[#allocation2 + $0x328] sm:$0xff]
  %v3556 = vld [vmem:[#allocation2 + $0x330] sm:$0xff]
  %v3557 = vld [vmem:[#allocation2 + $0x338] sm:$0xff]
  %v3558 = vld [vmem:[#allocation2 + $0x340] sm:$0xff]
  %v3559 = vld [vmem:[#allocation2 + $0x348] sm:$0xff]
  %v3560 = vld [vmem:[#allocation2 + $0x350] sm:$0xff]
  %v3561 = vld [vmem:[#allocation2 + $0x358] sm:$0xff]
  %v3562 = vld [vmem:[#allocation2 + $0x360] sm:$0xff]
  %v3563 = vld [vmem:[#allocation2 + $0x368] sm:$0xff]
  %v3564 = vld [vmem:[#allocation2 + $0x370] sm:$0xff]
  %v3565 = vld [vmem:[#allocation2 + $0x378] sm:$0xff]
  %v3566 = vld [vmem:[#allocation2 + $0x380] sm:$0xff]
  %v3567 = vld [vmem:[#allocation2 + $0x388] sm:$0xff]
  %v3568 = vld [vmem:[#allocation2 + $0x390] sm:$0xff]
  %v3569 = vld [vmem:[#allocation2 + $0x398] sm:$0xff]
  %v3570 = vld [vmem:[#allocation2 + $0x3a0] sm:$0xff]
  %v3571 = vld [vmem:[#allocation2 + $0x3a8] sm:$0xff]
  %v3572 = vld [vmem:[#allocation2 + $0x3b0] sm:$0xff]
  %v3573 = vld [vmem:[#allocation2 + $0x3b8] sm:$0xff]
  %v3574 = vld [vmem:[#allocation2 + $0x3c0] sm:$0xff]
  %v3575 = vld [vmem:[#allocation2 + $0x3c8] sm:$0xff]
  %v3576 = vld [vmem:[#allocation2 + $0x3d0] sm:$0xff]
  %s3577 = scalar_lea.vmem %s6, 6
  %v3578 = vld [vmem:[%s3577] ss:$8 sm:$0x7]
  %v3580 = vlaneseq
  %v3581 = vshrl.u32 %v3580, 7
  %v3582 = vsub.s32 0, %v3581
  %v3583 = vrot.slane %v3578, %v3582
  %v3584 = vlaneseq
  %v3585 = vshrl.u32 %v3584, 7
  %v3586 = vsub.s32 1, %v3585
  %v3587 = vrot.slane %v3578, %v3586
  %v3588 = vlaneseq
  %v3589 = vshrl.u32 %v3588, 7
  %v3590 = vsub.s32 2, %v3589
  %v3591 = vrot.slane %v3578, %v3590
  %v3595 = vmul.f32 %v3553, %v3583
  %v3596 = vmul.f32 %v3554, %v3587
  %v3597 = vmul.f32 %v3555, %v3591
  %v3598 = vmul.f32 %v3556, %v3583
  %v3599 = vmul.f32 %v3557, %v3587
  %v3600 = vmul.f32 %v3558, %v3591
  %v3601 = vmul.f32 %v3559, %v3583
  %v3602 = vmul.f32 %v3560, %v3587
  %v3603 = vmul.f32 %v3561, %v3591
  %v3604 = vmul.f32 %v3562, %v3583
  %v3605 = vmul.f32 %v3563, %v3587
  %v3606 = vmul.f32 %v3564, %v3591
  %v3607 = vmul.f32 %v3565, %v3583
  %v3608 = vmul.f32 %v3566, %v3587
  %v3609 = vmul.f32 %v3567, %v3591
  %v3610 = vmul.f32 %v3568, %v3583
  %v3611 = vmul.f32 %v3569, %v3587
  %v3612 = vmul.f32 %v3570, %v3591
  %v3613 = vmul.f32 %v3571, %v3583
  %v3614 = vmul.f32 %v3572, %v3587
  %v3615 = vmul.f32 %v3573, %v3591
  %v3616 = vmul.f32 %v3574, %v3583
  %v3617 = vmul.f32 %v3575, %v3587
  %v3618 = vmul.f32 %v3576, %v3591
  %v3619 = vadd.f32 %v3529, %v3595
  %v3620 = vadd.f32 %v3530, %v3596
  %v3621 = vadd.f32 %v3531, %v3597
  %v3622 = vadd.f32 %v3532, %v3598
  %v3623 = vadd.f32 %v3533, %v3599
  %v3624 = vadd.f32 %v3534, %v3600
  %v3625 = vadd.f32 %v3535, %v3601
  %v3626 = vadd.f32 %v3536, %v3602
  %v3627 = vadd.f32 %v3537, %v3603
  %v3628 = vadd.f32 %v3538, %v3604
  %v3629 = vadd.f32 %v3539, %v3605
  %v3630 = vadd.f32 %v3540, %v3606
  %v3631 = vadd.f32 %v3541, %v3607
  %v3632 = vadd.f32 %v3542, %v3608
  %v3633 = vadd.f32 %v3543, %v3609
  %v3634 = vadd.f32 %v3544, %v3610
  %v3635 = vadd.f32 %v3545, %v3611
  %v3636 = vadd.f32 %v3546, %v3612
  %v3637 = vadd.f32 %v3547, %v3613
  %v3638 = vadd.f32 %v3548, %v3614
  %v3639 = vadd.f32 %v3549, %v3615
  %v3640 = vadd.f32 %v3550, %v3616
  %v3641 = vadd.f32 %v3551, %v3617
  %v3642 = vadd.f32 %v3552, %v3618
  %v3643 = vld [vmem:[#allocation2 + $0x210] sm:$0xfe]
  %v3644 = vld [vmem:[#allocation2 + $0x218] sm:$0xfe]
  %v3645 = vld [vmem:[#allocation2 + $0x220] sm:$0xfe]
  %v3646 = vld [vmem:[#allocation2 + $0x2d0] sm:$0x1]
  %v3647 = vld [vmem:[#allocation2 + $0x2d8] sm:$0x1]
  %v3648 = vld [vmem:[#allocation2 + $0x2e0] sm:$0x1]
  %s3649 = scalar_lea.vmem %s6, 7
  %v3650 = vld [vmem:[%s3649] ss:$8 sm:$0x7]
  %v3652 = vlaneseq
  %v3653 = vshrl.u32 %v3652, 7
  %v3654 = vsub.s32 0, %v3653
  %v3655 = vrot.slane %v3650, %v3654
  %v3656 = vlaneseq
  %v3657 = vshrl.u32 %v3656, 7
  %v3658 = vsub.s32 1, %v3657
  %v3659 = vrot.slane %v3650, %v3658
  %v3660 = vlaneseq
  %v3661 = vshrl.u32 %v3660, 7
  %v3662 = vsub.s32 2, %v3661
  %v3663 = vrot.slane %v3650, %v3662
  %v3667 = vmul.f32 %v3643, %v3655
  %v3668 = vmul.f32 %v3644, %v3659
  %v3669 = vmul.f32 %v3645, %v3663
  %v3670 = vmul.f32 %v3466, %v3655
  %v3671 = vmul.f32 %v3467, %v3659
  %v3672 = vmul.f32 %v3468, %v3663
  %v3673 = vmul.f32 %v3469, %v3655
  %v3674 = vmul.f32 %v3470, %v3659
  %v3675 = vmul.f32 %v3471, %v3663
  %v3676 = vmul.f32 %v3472, %v3655
  %v3677 = vmul.f32 %v3473, %v3659
  %v3678 = vmul.f32 %v3474, %v3663
  %v3679 = vmul.f32 %v3475, %v3655
  %v3680 = vmul.f32 %v3476, %v3659
  %v3681 = vmul.f32 %v3477, %v3663
  %v3682 = vmul.f32 %v3478, %v3655
  %v3683 = vmul.f32 %v3479, %v3659
  %v3684 = vmul.f32 %v3480, %v3663
  %v3685 = vmul.f32 %v3481, %v3655
  %v3686 = vmul.f32 %v3482, %v3659
  %v3687 = vmul.f32 %v3483, %v3663
  %v3688 = vmul.f32 %v3484, %v3655
  %v3689 = vmul.f32 %v3485, %v3659
  %v3690 = vmul.f32 %v3486, %v3663
  %v3691 = vmul.f32 %v3646, %v3655
  %v3692 = vmul.f32 %v3647, %v3659
  %v3693 = vmul.f32 %v3648, %v3663
  %v3721 = vrot.slane %v3667, 1
  %v3722 = vrot.slane %v3670, 1
  %v3723 = vsel %vm3008, %v3721, %v3722
  %v3724 = vrot.slane %v3668, 1
  %v3725 = vrot.slane %v3671, 1
  %v3726 = vsel %vm3008, %v3724, %v3725
  %v3727 = vrot.slane %v3669, 1
  %v3728 = vrot.slane %v3672, 1
  %v3729 = vsel %vm3008, %v3727, %v3728
  %v3730 = vrot.slane %v3673, 1
  %v3731 = vsel %vm3008, %v3722, %v3730
  %v3732 = vrot.slane %v3674, 1
  %v3733 = vsel %vm3008, %v3725, %v3732
  %v3734 = vrot.slane %v3675, 1
  %v3735 = vsel %vm3008, %v3728, %v3734
  %v3736 = vrot.slane %v3676, 1
  %v3737 = vsel %vm3008, %v3730, %v3736
  %v3738 = vrot.slane %v3677, 1
  %v3739 = vsel %vm3008, %v3732, %v3738
  %v3740 = vrot.slane %v3678, 1
  %v3741 = vsel %vm3008, %v3734, %v3740
  %v3742 = vrot.slane %v3679, 1
  %v3743 = vsel %vm3008, %v3736, %v3742
  %v3744 = vrot.slane %v3680, 1
  %v3745 = vsel %vm3008, %v3738, %v3744
  %v3746 = vrot.slane %v3681, 1
  %v3747 = vsel %vm3008, %v3740, %v3746
  %v3748 = vrot.slane %v3682, 1
  %v3749 = vsel %vm3008, %v3742, %v3748
  %v3750 = vrot.slane %v3683, 1
  %v3751 = vsel %vm3008, %v3744, %v3750
  %v3752 = vrot.slane %v3684, 1
  %v3753 = vsel %vm3008, %v3746, %v3752
  %v3754 = vrot.slane %v3685, 1
  %v3755 = vsel %vm3008, %v3748, %v3754
  %v3756 = vrot.slane %v3686, 1
  %v3757 = vsel %vm3008, %v3750, %v3756
  %v3758 = vrot.slane %v3687, 1
  %v3759 = vsel %vm3008, %v3752, %v3758
  %v3760 = vrot.slane %v3688, 1
  %v3761 = vsel %vm3008, %v3754, %v3760
  %v3762 = vrot.slane %v3689, 1
  %v3763 = vsel %vm3008, %v3756, %v3762
  %v3764 = vrot.slane %v3690, 1
  %v3765 = vsel %vm3008, %v3758, %v3764
  %v3766 = vrot.slane %v3691, 1
  %v3767 = vsel %vm3008, %v3760, %v3766
  %v3768 = vrot.slane %v3692, 1
  %v3769 = vsel %vm3008, %v3762, %v3768
  %v3770 = vrot.slane %v3693, 1
  %v3771 = vsel %vm3008, %v3764, %v3770
  %v3796 = vadd.f32 %v3619, %v3723
  %v3797 = vadd.f32 %v3620, %v3726
  %v3798 = vadd.f32 %v3621, %v3729
  %v3799 = vadd.f32 %v3622, %v3731
  %v3800 = vadd.f32 %v3623, %v3733
  %v3801 = vadd.f32 %v3624, %v3735
  %v3802 = vadd.f32 %v3625, %v3737
  %v3803 = vadd.f32 %v3626, %v3739
  %v3804 = vadd.f32 %v3627, %v3741
  %v3805 = vadd.f32 %v3628, %v3743
  %v3806 = vadd.f32 %v3629, %v3745
  %v3807 = vadd.f32 %v3630, %v3747
  %v3808 = vadd.f32 %v3631, %v3749
  %v3809 = vadd.f32 %v3632, %v3751
  %v3810 = vadd.f32 %v3633, %v3753
  %v3811 = vadd.f32 %v3634, %v3755
  %v3812 = vadd.f32 %v3635, %v3757
  %v3813 = vadd.f32 %v3636, %v3759
  %v3814 = vadd.f32 %v3637, %v3761
  %v3815 = vadd.f32 %v3638, %v3763
  %v3816 = vadd.f32 %v3639, %v3765
  %v3817 = vadd.f32 %v3640, %v3767
  %v3818 = vadd.f32 %v3641, %v3769
  %v3819 = vadd.f32 %v3642, %v3771
  %v3820 = vld [vmem:[#allocation2 + $0x318] sm:$0xfe]
  %v3821 = vld [vmem:[#allocation2 + $0x320] sm:$0xfe]
  %v3822 = vld [vmem:[#allocation2 + $0x328] sm:$0xfe]
  %v3823 = vld [vmem:[#allocation2 + $0x3d8] sm:$0x1]
  %v3824 = vld [vmem:[#allocation2 + $0x3e0] sm:$0x1]
  %v3825 = vld [vmem:[#allocation2 + $0x3e8] sm:$0x1]
  %s3826 = scalar_lea.vmem %s6, 24
  %v3827 = vld [vmem:[%s3826] ss:$8 sm:$0x7]
  %v3829 = vlaneseq
  %v3830 = vshrl.u32 %v3829, 7
  %v3831 = vsub.s32 0, %v3830
  %v3832 = vrot.slane %v3827, %v3831
  %v3833 = vlaneseq
  %v3834 = vshrl.u32 %v3833, 7
  %v3835 = vsub.s32 1, %v3834
  %v3836 = vrot.slane %v3827, %v3835
  %v3837 = vlaneseq
  %v3838 = vshrl.u32 %v3837, 7
  %v3839 = vsub.s32 2, %v3838
  %v3840 = vrot.slane %v3827, %v3839
  %v3844 = vmul.f32 %v3820, %v3832
  %v3845 = vmul.f32 %v3821, %v3836
  %v3846 = vmul.f32 %v3822, %v3840
  %v3847 = vmul.f32 %v3556, %v3832
  %v3848 = vmul.f32 %v3557, %v3836
  %v3849 = vmul.f32 %v3558, %v3840
  %v3850 = vmul.f32 %v3559, %v3832
  %v3851 = vmul.f32 %v3560, %v3836
  %v3852 = vmul.f32 %v3561, %v3840
  %v3853 = vmul.f32 %v3562, %v3832
  %v3854 = vmul.f32 %v3563, %v3836
  %v3855 = vmul.f32 %v3564, %v3840
  %v3856 = vmul.f32 %v3565, %v3832
  %v3857 = vmul.f32 %v3566, %v3836
  %v3858 = vmul.f32 %v3567, %v3840
  %v3859 = vmul.f32 %v3568, %v3832
  %v3860 = vmul.f32 %v3569, %v3836
  %v3861 = vmul.f32 %v3570, %v3840
  %v3862 = vmul.f32 %v3571, %v3832
  %v3863 = vmul.f32 %v3572, %v3836
  %v3864 = vmul.f32 %v3573, %v3840
  %v3865 = vmul.f32 %v3574, %v3832
  %v3866 = vmul.f32 %v3575, %v3836
  %v3867 = vmul.f32 %v3576, %v3840
  %v3868 = vmul.f32 %v3823, %v3832
  %v3869 = vmul.f32 %v3824, %v3836
  %v3870 = vmul.f32 %v3825, %v3840
  %v3898 = vrot.slane %v3844, 1
  %v3899 = vrot.slane %v3847, 1
  %v3900 = vsel %vm3008, %v3898, %v3899
  %v3901 = vrot.slane %v3845, 1
  %v3902 = vrot.slane %v3848, 1
  %v3903 = vsel %vm3008, %v3901, %v3902
  %v3904 = vrot.slane %v3846, 1
  %v3905 = vrot.slane %v3849, 1
  %v3906 = vsel %vm3008, %v3904, %v3905
  %v3907 = vrot.slane %v3850, 1
  %v3908 = vsel %vm3008, %v3899, %v3907
  %v3909 = vrot.slane %v3851, 1
  %v3910 = vsel %vm3008, %v3902, %v3909
  %v3911 = vrot.slane %v3852, 1
  %v3912 = vsel %vm3008, %v3905, %v3911
  %v3913 = vrot.slane %v3853, 1
  %v3914 = vsel %vm3008, %v3907, %v3913
  %v3915 = vrot.slane %v3854, 1
  %v3916 = vsel %vm3008, %v3909, %v3915
  %v3917 = vrot.slane %v3855, 1
  %v3918 = vsel %vm3008, %v3911, %v3917
  %v3919 = vrot.slane %v3856, 1
  %v3920 = vsel %vm3008, %v3913, %v3919
  %v3921 = vrot.slane %v3857, 1
  %v3922 = vsel %vm3008, %v3915, %v3921
  %v3923 = vrot.slane %v3858, 1
  %v3924 = vsel %vm3008, %v3917, %v3923
  %v3925 = vrot.slane %v3859, 1
  %v3926 = vsel %vm3008, %v3919, %v3925
  %v3927 = vrot.slane %v3860, 1
  %v3928 = vsel %vm3008, %v3921, %v3927
  %v3929 = vrot.slane %v3861, 1
  %v3930 = vsel %vm3008, %v3923, %v3929
  %v3931 = vrot.slane %v3862, 1
  %v3932 = vsel %vm3008, %v3925, %v3931
  %v3933 = vrot.slane %v3863, 1
  %v3934 = vsel %vm3008, %v3927, %v3933
  %v3935 = vrot.slane %v3864, 1
  %v3936 = vsel %vm3008, %v3929, %v3935
  %v3937 = vrot.slane %v3865, 1
  %v3938 = vsel %vm3008, %v3931, %v3937
  %v3939 = vrot.slane %v3866, 1
  %v3940 = vsel %vm3008, %v3933, %v3939
  %v3941 = vrot.slane %v3867, 1
  %v3942 = vsel %vm3008, %v3935, %v3941
  %v3943 = vrot.slane %v3868, 1
  %v3944 = vsel %vm3008, %v3937, %v3943
  %v3945 = vrot.slane %v3869, 1
  %v3946 = vsel %vm3008, %v3939, %v3945
  %v3947 = vrot.slane %v3870, 1
  %v3948 = vsel %vm3008, %v3941, %v3947
  %v3973 = vadd.f32 %v3796, %v3900
  %v3974 = vadd.f32 %v3797, %v3903
  %v3975 = vadd.f32 %v3798, %v3906
  %v3976 = vadd.f32 %v3799, %v3908
  %v3977 = vadd.f32 %v3800, %v3910
  %v3978 = vadd.f32 %v3801, %v3912
  %v3979 = vadd.f32 %v3802, %v3914
  %v3980 = vadd.f32 %v3803, %v3916
  %v3981 = vadd.f32 %v3804, %v3918
  %v3982 = vadd.f32 %v3805, %v3920
  %v3983 = vadd.f32 %v3806, %v3922
  %v3984 = vadd.f32 %v3807, %v3924
  %v3985 = vadd.f32 %v3808, %v3926
  %v3986 = vadd.f32 %v3809, %v3928
  %v3987 = vadd.f32 %v3810, %v3930
  %v3988 = vadd.f32 %v3811, %v3932
  %v3989 = vadd.f32 %v3812, %v3934
  %v3990 = vadd.f32 %v3813, %v3936
  %v3991 = vadd.f32 %v3814, %v3938
  %v3992 = vadd.f32 %v3815, %v3940
  %v3993 = vadd.f32 %v3816, %v3942
  %v3994 = vadd.f32 %v3817, %v3944
  %v3995 = vadd.f32 %v3818, %v3946
  %v3996 = vadd.f32 %v3819, %v3948
  %v3997 = vld [vmem:[#allocation2 + $0x210] sm:$0xfc]
  %v3998 = vld [vmem:[#allocation2 + $0x218] sm:$0xfc]
  %v3999 = vld [vmem:[#allocation2 + $0x220] sm:$0xfc]
  %v4000 = vld [vmem:[#allocation2 + $0x2d0] sm:$0x3]
  %v4001 = vld [vmem:[#allocation2 + $0x2d8] sm:$0x3]
  %v4002 = vld [vmem:[#allocation2 + $0x2e0] sm:$0x3]
  %s4003 = scalar_lea.vmem %s6, 25
  %v4004 = vld [vmem:[%s4003] ss:$8 sm:$0x7]
  %v4006 = vlaneseq
  %v4007 = vshrl.u32 %v4006, 7
  %v4008 = vsub.s32 0, %v4007
  %v4009 = vrot.slane %v4004, %v4008
  %v4010 = vlaneseq
  %v4011 = vshrl.u32 %v4010, 7
  %v4012 = vsub.s32 1, %v4011
  %v4013 = vrot.slane %v4004, %v4012
  %v4014 = vlaneseq
  %v4015 = vshrl.u32 %v4014, 7
  %v4016 = vsub.s32 2, %v4015
  %v4017 = vrot.slane %v4004, %v4016
  %v4021 = vmul.f32 %v3997, %v4009
  %v4022 = vmul.f32 %v3998, %v4013
  %v4023 = vmul.f32 %v3999, %v4017
  %v4024 = vmul.f32 %v3466, %v4009
  %v4025 = vmul.f32 %v3467, %v4013
  %v4026 = vmul.f32 %v3468, %v4017
  %v4027 = vmul.f32 %v3469, %v4009
  %v4028 = vmul.f32 %v3470, %v4013
  %v4029 = vmul.f32 %v3471, %v4017
  %v4030 = vmul.f32 %v3472, %v4009
  %v4031 = vmul.f32 %v3473, %v4013
  %v4032 = vmul.f32 %v3474, %v4017
  %v4033 = vmul.f32 %v3475, %v4009
  %v4034 = vmul.f32 %v3476, %v4013
  %v4035 = vmul.f32 %v3477, %v4017
  %v4036 = vmul.f32 %v3478, %v4009
  %v4037 = vmul.f32 %v3479, %v4013
  %v4038 = vmul.f32 %v3480, %v4017
  %v4039 = vmul.f32 %v3481, %v4009
  %v4040 = vmul.f32 %v3482, %v4013
  %v4041 = vmul.f32 %v3483, %v4017
  %v4042 = vmul.f32 %v3484, %v4009
  %v4043 = vmul.f32 %v3485, %v4013
  %v4044 = vmul.f32 %v3486, %v4017
  %v4045 = vmul.f32 %v4000, %v4009
  %v4046 = vmul.f32 %v4001, %v4013
  %v4047 = vmul.f32 %v4002, %v4017
  %v4075 = vrot.slane %v4021, 2
  %v4076 = vrot.slane %v4024, 2
  %v4077 = vsel %vm3363, %v4075, %v4076
  %v4078 = vrot.slane %v4022, 2
  %v4079 = vrot.slane %v4025, 2
  %v4080 = vsel %vm3363, %v4078, %v4079
  %v4081 = vrot.slane %v4023, 2
  %v4082 = vrot.slane %v4026, 2
  %v4083 = vsel %vm3363, %v4081, %v4082
  %v4084 = vrot.slane %v4027, 2
  %v4085 = vsel %vm3363, %v4076, %v4084
  %v4086 = vrot.slane %v4028, 2
  %v4087 = vsel %vm3363, %v4079, %v4086
  %v4088 = vrot.slane %v4029, 2
  %v4089 = vsel %vm3363, %v4082, %v4088
  %v4090 = vrot.slane %v4030, 2
  %v4091 = vsel %vm3363, %v4084, %v4090
  %v4092 = vrot.slane %v4031, 2
  %v4093 = vsel %vm3363, %v4086, %v4092
  %v4094 = vrot.slane %v4032, 2
  %v4095 = vsel %vm3363, %v4088, %v4094
  %v4096 = vrot.slane %v4033, 2
  %v4097 = vsel %vm3363, %v4090, %v4096
  %v4098 = vrot.slane %v4034, 2
  %v4099 = vsel %vm3363, %v4092, %v4098
  %v4100 = vrot.slane %v4035, 2
  %v4101 = vsel %vm3363, %v4094, %v4100
  %v4102 = vrot.slane %v4036, 2
  %v4103 = vsel %vm3363, %v4096, %v4102
  %v4104 = vrot.slane %v4037, 2
  %v4105 = vsel %vm3363, %v4098, %v4104
  %v4106 = vrot.slane %v4038, 2
  %v4107 = vsel %vm3363, %v4100, %v4106
  %v4108 = vrot.slane %v4039, 2
  %v4109 = vsel %vm3363, %v4102, %v4108
  %v4110 = vrot.slane %v4040, 2
  %v4111 = vsel %vm3363, %v4104, %v4110
  %v4112 = vrot.slane %v4041, 2
  %v4113 = vsel %vm3363, %v4106, %v4112
  %v4114 = vrot.slane %v4042, 2
  %v4115 = vsel %vm3363, %v4108, %v4114
  %v4116 = vrot.slane %v4043, 2
  %v4117 = vsel %vm3363, %v4110, %v4116
  %v4118 = vrot.slane %v4044, 2
  %v4119 = vsel %vm3363, %v4112, %v4118
  %v4120 = vrot.slane %v4045, 2
  %v4121 = vsel %vm3363, %v4114, %v4120
  %v4122 = vrot.slane %v4046, 2
  %v4123 = vsel %vm3363, %v4116, %v4122
  %v4124 = vrot.slane %v4047, 2
  %v4125 = vsel %vm3363, %v4118, %v4124
  %v4150 = vadd.f32 %v3973, %v4077
  %v4151 = vadd.f32 %v3974, %v4080
  %v4152 = vadd.f32 %v3975, %v4083
  %v4153 = vadd.f32 %v3976, %v4085
  %v4154 = vadd.f32 %v3977, %v4087
  %v4155 = vadd.f32 %v3978, %v4089
  %v4156 = vadd.f32 %v3979, %v4091
  %v4157 = vadd.f32 %v3980, %v4093
  %v4158 = vadd.f32 %v3981, %v4095
  %v4159 = vadd.f32 %v3982, %v4097
  %v4160 = vadd.f32 %v3983, %v4099
  %v4161 = vadd.f32 %v3984, %v4101
  %v4162 = vadd.f32 %v3985, %v4103
  %v4163 = vadd.f32 %v3986, %v4105
  %v4164 = vadd.f32 %v3987, %v4107
  %v4165 = vadd.f32 %v3988, %v4109
  %v4166 = vadd.f32 %v3989, %v4111
  %v4167 = vadd.f32 %v3990, %v4113
  %v4168 = vadd.f32 %v3991, %v4115
  %v4169 = vadd.f32 %v3992, %v4117
  %v4170 = vadd.f32 %v3993, %v4119
  %v4171 = vadd.f32 %v3994, %v4121
  %v4172 = vadd.f32 %v3995, %v4123
  %v4173 = vadd.f32 %v3996, %v4125
  %v4174 = vld [vmem:[#allocation2 + $0x18] sm:$0xfe]
  %v4175 = vld [vmem:[#allocation2 + $0x20] sm:$0xfe]
  %v4176 = vld [vmem:[#allocation2 + $0x28] sm:$0xfe]
  %v4177 = vld [vmem:[#allocation2 + $0xc0] sm:$0xff]
  %v4178 = vld [vmem:[#allocation2 + $0xc8] sm:$0xff]
  %v4179 = vld [vmem:[#allocation2 + $0xd0] sm:$0xff]
  %v4180 = vld [vmem:[#allocation2 + $0xd8] sm:$0x1]
  %v4181 = vld [vmem:[#allocation2 + $0xe0] sm:$0x1]
  %v4182 = vld [vmem:[#allocation2 + $0xe8] sm:$0x1]
  %s4183 = scalar_lea.vmem %s6, 26
  %v4184 = vld [vmem:[%s4183] ss:$8 sm:$0x7]
  %v4186 = vlaneseq
  %v4187 = vshrl.u32 %v4186, 7
  %v4188 = vsub.s32 0, %v4187
  %v4189 = vrot.slane %v4184, %v4188
  %v4190 = vlaneseq
  %v4191 = vshrl.u32 %v4190, 7
  %v4192 = vsub.s32 1, %v4191
  %v4193 = vrot.slane %v4184, %v4192
  %v4194 = vlaneseq
  %v4195 = vshrl.u32 %v4194, 7
  %v4196 = vsub.s32 2, %v4195
  %v4197 = vrot.slane %v4184, %v4196
  %v4201 = vmul.f32 %v4174, %v4189
  %v4202 = vmul.f32 %v4175, %v4193
  %v4203 = vmul.f32 %v4176, %v4197
  %v4204 = vmul.f32 %v2757, %v4189
  %v4205 = vmul.f32 %v2758, %v4193
  %v4206 = vmul.f32 %v2759, %v4197
  %v4207 = vmul.f32 %v2760, %v4189
  %v4208 = vmul.f32 %v2761, %v4193
  %v4209 = vmul.f32 %v2762, %v4197
  %v4210 = vmul.f32 %v2763, %v4189
  %v4211 = vmul.f32 %v2764, %v4193
  %v4212 = vmul.f32 %v2765, %v4197
  %v4213 = vmul.f32 %v2766, %v4189
  %v4214 = vmul.f32 %v2767, %v4193
  %v4215 = vmul.f32 %v2768, %v4197
  %v4216 = vmul.f32 %v2769, %v4189
  %v4217 = vmul.f32 %v2770, %v4193
  %v4218 = vmul.f32 %v2771, %v4197
  %v4219 = vmul.f32 %v2772, %v4189
  %v4220 = vmul.f32 %v2773, %v4193
  %v4221 = vmul.f32 %v2774, %v4197
  %v4222 = vmul.f32 %v4177, %v4189
  %v4223 = vmul.f32 %v4178, %v4193
  %v4224 = vmul.f32 %v4179, %v4197
  %v4225 = vmul.f32 %v4180, %v4189
  %v4226 = vmul.f32 %v4181, %v4193
  %v4227 = vmul.f32 %v4182, %v4197
  %v4255 = vrot.slane %v4201, 1
  %v4256 = vrot.slane %v4204, 1
  %v4257 = vsel %vm3008, %v4255, %v4256
  %v4258 = vrot.slane %v4202, 1
  %v4259 = vrot.slane %v4205, 1
  %v4260 = vsel %vm3008, %v4258, %v4259
  %v4261 = vrot.slane %v4203, 1
  %v4262 = vrot.slane %v4206, 1
  %v4263 = vsel %vm3008, %v4261, %v4262
  %v4264 = vrot.slane %v4207, 1
  %v4265 = vsel %vm3008, %v4256, %v4264
  %v4266 = vrot.slane %v4208, 1
  %v4267 = vsel %vm3008, %v4259, %v4266
  %v4268 = vrot.slane %v4209, 1
  %v4269 = vsel %vm3008, %v4262, %v4268
  %v4270 = vrot.slane %v4210, 1
  %v4271 = vsel %vm3008, %v4264, %v4270
  %v4272 = vrot.slane %v4211, 1
  %v4273 = vsel %vm3008, %v4266, %v4272
  %v4274 = vrot.slane %v4212, 1
  %v4275 = vsel %vm3008, %v4268, %v4274
  %v4276 = vrot.slane %v4213, 1
  %v4277 = vsel %vm3008, %v4270, %v4276
  %v4278 = vrot.slane %v4214, 1
  %v4279 = vsel %vm3008, %v4272, %v4278
  %v4280 = vrot.slane %v4215, 1
  %v4281 = vsel %vm3008, %v4274, %v4280
  %v4282 = vrot.slane %v4216, 1
  %v4283 = vsel %vm3008, %v4276, %v4282
  %v4284 = vrot.slane %v4217, 1
  %v4285 = vsel %vm3008, %v4278, %v4284
  %v4286 = vrot.slane %v4218, 1
  %v4287 = vsel %vm3008, %v4280, %v4286
  %v4288 = vrot.slane %v4219, 1
  %v4289 = vsel %vm3008, %v4282, %v4288
  %v4290 = vrot.slane %v4220, 1
  %v4291 = vsel %vm3008, %v4284, %v4290
  %v4292 = vrot.slane %v4221, 1
  %v4293 = vsel %vm3008, %v4286, %v4292
  %v4294 = vrot.slane %v4222, 1
  %v4295 = vsel %vm3008, %v4288, %v4294
  %v4296 = vrot.slane %v4223, 1
  %v4297 = vsel %vm3008, %v4290, %v4296
  %v4298 = vrot.slane %v4224, 1
  %v4299 = vsel %vm3008, %v4292, %v4298
  %v4300 = vrot.slane %v4225, 1
  %v4301 = vsel %vm3008, %v4294, %v4300
  %v4302 = vrot.slane %v4226, 1
  %v4303 = vsel %vm3008, %v4296, %v4302
  %v4304 = vrot.slane %v4227, 1
  %v4305 = vsel %vm3008, %v4298, %v4304
  %v4330 = vadd.f32 %v4150, %v4257
  %v4331 = vadd.f32 %v4151, %v4260
  %v4332 = vadd.f32 %v4152, %v4263
  %v4333 = vadd.f32 %v4153, %v4265
  %v4334 = vadd.f32 %v4154, %v4267
  %v4335 = vadd.f32 %v4155, %v4269
  %v4336 = vadd.f32 %v4156, %v4271
  %v4337 = vadd.f32 %v4157, %v4273
  %v4338 = vadd.f32 %v4158, %v4275
  %v4339 = vadd.f32 %v4159, %v4277
  %v4340 = vadd.f32 %v4160, %v4279
  %v4341 = vadd.f32 %v4161, %v4281
  %v4342 = vadd.f32 %v4162, %v4283
  %v4343 = vadd.f32 %v4163, %v4285
  %v4344 = vadd.f32 %v4164, %v4287
  %v4345 = vadd.f32 %v4165, %v4289
  %v4346 = vadd.f32 %v4166, %v4291
  %v4347 = vadd.f32 %v4167, %v4293
  %v4348 = vadd.f32 %v4168, %v4295
  %v4349 = vadd.f32 %v4169, %v4297
  %v4350 = vadd.f32 %v4170, %v4299
  %v4351 = vadd.f32 %v4171, %v4301
  %v4352 = vadd.f32 %v4172, %v4303
  %v4353 = vadd.f32 %v4173, %v4305
  %v4354 = vld [vmem:[#allocation2 + $0x120] sm:$0xfe]
  %v4355 = vld [vmem:[#allocation2 + $0x128] sm:$0xfe]
  %v4356 = vld [vmem:[#allocation2 + $0x130] sm:$0xfe]
  %v4357 = vld [vmem:[#allocation2 + $0x1c8] sm:$0xff]
  %v4358 = vld [vmem:[#allocation2 + $0x1d0] sm:$0xff]
  %v4359 = vld [vmem:[#allocation2 + $0x1d8] sm:$0xff]
  %v4360 = vld [vmem:[#allocation2 + $0x1e0] sm:$0x1]
  %v4361 = vld [vmem:[#allocation2 + $0x1e8] sm:$0x1]
  %v4362 = vld [vmem:[#allocation2 + $0x1f0] sm:$0x1]
  %s4363 = scalar_lea.vmem %s6, 27
  %v4364 = vld [vmem:[%s4363] ss:$8 sm:$0x7]
  %v4366 = vlaneseq
  %v4367 = vshrl.u32 %v4366, 7
  %v4368 = vsub.s32 0, %v4367
  %v4369 = vrot.slane %v4364, %v4368
  %v4370 = vlaneseq
  %v4371 = vshrl.u32 %v4370, 7
  %v4372 = vsub.s32 1, %v4371
  %v4373 = vrot.slane %v4364, %v4372
  %v4374 = vlaneseq
  %v4375 = vshrl.u32 %v4374, 7
  %v4376 = vsub.s32 2, %v4375
  %v4377 = vrot.slane %v4364, %v4376
  %v4381 = vmul.f32 %v4354, %v4369
  %v4382 = vmul.f32 %v4355, %v4373
  %v4383 = vmul.f32 %v4356, %v4377
  %v4384 = vmul.f32 %v2846, %v4369
  %v4385 = vmul.f32 %v2847, %v4373
  %v4386 = vmul.f32 %v2848, %v4377
  %v4387 = vmul.f32 %v2849, %v4369
  %v4388 = vmul.f32 %v2850, %v4373
  %v4389 = vmul.f32 %v2851, %v4377
  %v4390 = vmul.f32 %v2852, %v4369
  %v4391 = vmul.f32 %v2853, %v4373
  %v4392 = vmul.f32 %v2854, %v4377
  %v4393 = vmul.f32 %v2855, %v4369
  %v4394 = vmul.f32 %v2856, %v4373
  %v4395 = vmul.f32 %v2857, %v4377
  %v4396 = vmul.f32 %v2858, %v4369
  %v4397 = vmul.f32 %v2859, %v4373
  %v4398 = vmul.f32 %v2860, %v4377
  %v4399 = vmul.f32 %v2861, %v4369
  %v4400 = vmul.f32 %v2862, %v4373
  %v4401 = vmul.f32 %v2863, %v4377
  %v4402 = vmul.f32 %v4357, %v4369
  %v4403 = vmul.f32 %v4358, %v4373
  %v4404 = vmul.f32 %v4359, %v4377
  %v4405 = vmul.f32 %v4360, %v4369
  %v4406 = vmul.f32 %v4361, %v4373
  %v4407 = vmul.f32 %v4362, %v4377
  %v4435 = vrot.slane %v4381, 1
  %v4436 = vrot.slane %v4384, 1
  %v4437 = vsel %vm3008, %v4435, %v4436
  %v4438 = vrot.slane %v4382, 1
  %v4439 = vrot.slane %v4385, 1
  %v4440 = vsel %vm3008, %v4438, %v4439
  %v4441 = vrot.slane %v4383, 1
  %v4442 = vrot.slane %v4386, 1
  %v4443 = vsel %vm3008, %v4441, %v4442
  %v4444 = vrot.slane %v4387, 1
  %v4445 = vsel %vm3008, %v4436, %v4444
  %v4446 = vrot.slane %v4388, 1
  %v4447 = vsel %vm3008, %v4439, %v4446
  %v4448 = vrot.slane %v4389, 1
  %v4449 = vsel %vm3008, %v4442, %v4448
  %v4450 = vrot.slane %v4390, 1
  %v4451 = vsel %vm3008, %v4444, %v4450
  %v4452 = vrot.slane %v4391, 1
  %v4453 = vsel %vm3008, %v4446, %v4452
  %v4454 = vrot.slane %v4392, 1
  %v4455 = vsel %vm3008, %v4448, %v4454
  %v4456 = vrot.slane %v4393, 1
  %v4457 = vsel %vm3008, %v4450, %v4456
  %v4458 = vrot.slane %v4394, 1
  %v4459 = vsel %vm3008, %v4452, %v4458
  %v4460 = vrot.slane %v4395, 1
  %v4461 = vsel %vm3008, %v4454, %v4460
  %v4462 = vrot.slane %v4396, 1
  %v4463 = vsel %vm3008, %v4456, %v4462
  %v4464 = vrot.slane %v4397, 1
  %v4465 = vsel %vm3008, %v4458, %v4464
  %v4466 = vrot.slane %v4398, 1
  %v4467 = vsel %vm3008, %v4460, %v4466
  %v4468 = vrot.slane %v4399, 1
  %v4469 = vsel %vm3008, %v4462, %v4468
  %v4470 = vrot.slane %v4400, 1
  %v4471 = vsel %vm3008, %v4464, %v4470
  %v4472 = vrot.slane %v4401, 1
  %v4473 = vsel %vm3008, %v4466, %v4472
  %v4474 = vrot.slane %v4402, 1
  %v4475 = vsel %vm3008, %v4468, %v4474
  %v4476 = vrot.slane %v4403, 1
  %v4477 = vsel %vm3008, %v4470, %v4476
  %v4478 = vrot.slane %v4404, 1
  %v4479 = vsel %vm3008, %v4472, %v4478
  %v4480 = vrot.slane %v4405, 1
  %v4481 = vsel %vm3008, %v4474, %v4480
  %v4482 = vrot.slane %v4406, 1
  %v4483 = vsel %vm3008, %v4476, %v4482
  %v4484 = vrot.slane %v4407, 1
  %v4485 = vsel %vm3008, %v4478, %v4484
  %v4510 = vadd.f32 %v4330, %v4437
  %v4511 = vadd.f32 %v4331, %v4440
  %v4512 = vadd.f32 %v4332, %v4443
  %v4513 = vadd.f32 %v4333, %v4445
  %v4514 = vadd.f32 %v4334, %v4447
  %v4515 = vadd.f32 %v4335, %v4449
  %v4516 = vadd.f32 %v4336, %v4451
  %v4517 = vadd.f32 %v4337, %v4453
  %v4518 = vadd.f32 %v4338, %v4455
  %v4519 = vadd.f32 %v4339, %v4457
  %v4520 = vadd.f32 %v4340, %v4459
  %v4521 = vadd.f32 %v4341, %v4461
  %v4522 = vadd.f32 %v4342, %v4463
  %v4523 = vadd.f32 %v4343, %v4465
  %v4524 = vadd.f32 %v4344, %v4467
  %v4525 = vadd.f32 %v4345, %v4469
  %v4526 = vadd.f32 %v4346, %v4471
  %v4527 = vadd.f32 %v4347, %v4473
  %v4528 = vadd.f32 %v4348, %v4475
  %v4529 = vadd.f32 %v4349, %v4477
  %v4530 = vadd.f32 %v4350, %v4479
  %v4531 = vadd.f32 %v4351, %v4481
  %v4532 = vadd.f32 %v4352, %v4483
  %v4533 = vadd.f32 %v4353, %v4485
  %v4534 = vld [vmem:[#allocation2 + $0x18] sm:$0xfc]
  %v4535 = vld [vmem:[#allocation2 + $0x20] sm:$0xfc]
  %v4536 = vld [vmem:[#allocation2 + $0x28] sm:$0xfc]
  %v4537 = vld [vmem:[#allocation2 + $0xd8] sm:$0x3]
  %v4538 = vld [vmem:[#allocation2 + $0xe0] sm:$0x3]
  %v4539 = vld [vmem:[#allocation2 + $0xe8] sm:$0x3]
  %s4540 = scalar_lea.vmem %s6, 28
  %v4541 = vld [vmem:[%s4540] ss:$8 sm:$0x7]
  %v4543 = vlaneseq
  %v4544 = vshrl.u32 %v4543, 7
  %v4545 = vsub.s32 0, %v4544
  %v4546 = vrot.slane %v4541, %v4545
  %v4547 = vlaneseq
  %v4548 = vshrl.u32 %v4547, 7
  %v4549 = vsub.s32 1, %v4548
  %v4550 = vrot.slane %v4541, %v4549
  %v4551 = vlaneseq
  %v4552 = vshrl.u32 %v4551, 7
  %v4553 = vsub.s32 2, %v4552
  %v4554 = vrot.slane %v4541, %v4553
  %v4558 = vmul.f32 %v4534, %v4546
  %v4559 = vmul.f32 %v4535, %v4550
  %v4560 = vmul.f32 %v4536, %v4554
  %v4561 = vmul.f32 %v2757, %v4546
  %v4562 = vmul.f32 %v2758, %v4550
  %v4563 = vmul.f32 %v2759, %v4554
  %v4564 = vmul.f32 %v2760, %v4546
  %v4565 = vmul.f32 %v2761, %v4550
  %v4566 = vmul.f32 %v2762, %v4554
  %v4567 = vmul.f32 %v2763, %v4546
  %v4568 = vmul.f32 %v2764, %v4550
  %v4569 = vmul.f32 %v2765, %v4554
  %v4570 = vmul.f32 %v2766, %v4546
  %v4571 = vmul.f32 %v2767, %v4550
  %v4572 = vmul.f32 %v2768, %v4554
  %v4573 = vmul.f32 %v2769, %v4546
  %v4574 = vmul.f32 %v2770, %v4550
  %v4575 = vmul.f32 %v2771, %v4554
  %v4576 = vmul.f32 %v2772, %v4546
  %v4577 = vmul.f32 %v2773, %v4550
  %v4578 = vmul.f32 %v2774, %v4554
  %v4579 = vmul.f32 %v4177, %v4546
  %v4580 = vmul.f32 %v4178, %v4550
  %v4581 = vmul.f32 %v4179, %v4554
  %v4582 = vmul.f32 %v4537, %v4546
  %v4583 = vmul.f32 %v4538, %v4550
  %v4584 = vmul.f32 %v4539, %v4554
  %v4612 = vrot.slane %v4558, 2
  %v4613 = vrot.slane %v4561, 2
  %v4614 = vsel %vm3363, %v4612, %v4613
  %v4615 = vrot.slane %v4559, 2
  %v4616 = vrot.slane %v4562, 2
  %v4617 = vsel %vm3363, %v4615, %v4616
  %v4618 = vrot.slane %v4560, 2
  %v4619 = vrot.slane %v4563, 2
  %v4620 = vsel %vm3363, %v4618, %v4619
  %v4621 = vrot.slane %v4564, 2
  %v4622 = vsel %vm3363, %v4613, %v4621
  %v4623 = vrot.slane %v4565, 2
  %v4624 = vsel %vm3363, %v4616, %v4623
  %v4625 = vrot.slane %v4566, 2
  %v4626 = vsel %vm3363, %v4619, %v4625
  %v4627 = vrot.slane %v4567, 2
  %v4628 = vsel %vm3363, %v4621, %v4627
  %v4629 = vrot.slane %v4568, 2
  %v4630 = vsel %vm3363, %v4623, %v4629
  %v4631 = vrot.slane %v4569, 2
  %v4632 = vsel %vm3363, %v4625, %v4631
  %v4633 = vrot.slane %v4570, 2
  %v4634 = vsel %vm3363, %v4627, %v4633
  %v4635 = vrot.slane %v4571, 2
  %v4636 = vsel %vm3363, %v4629, %v4635
  %v4637 = vrot.slane %v4572, 2
  %v4638 = vsel %vm3363, %v4631, %v4637
  %v4639 = vrot.slane %v4573, 2
  %v4640 = vsel %vm3363, %v4633, %v4639
  %v4641 = vrot.slane %v4574, 2
  %v4642 = vsel %vm3363, %v4635, %v4641
  %v4643 = vrot.slane %v4575, 2
  %v4644 = vsel %vm3363, %v4637, %v4643
  %v4645 = vrot.slane %v4576, 2
  %v4646 = vsel %vm3363, %v4639, %v4645
  %v4647 = vrot.slane %v4577, 2
  %v4648 = vsel %vm3363, %v4641, %v4647
  %v4649 = vrot.slane %v4578, 2
  %v4650 = vsel %vm3363, %v4643, %v4649
  %v4651 = vrot.slane %v4579, 2
  %v4652 = vsel %vm3363, %v4645, %v4651
  %v4653 = vrot.slane %v4580, 2
  %v4654 = vsel %vm3363, %v4647, %v4653
  %v4655 = vrot.slane %v4581, 2
  %v4656 = vsel %vm3363, %v4649, %v4655
  %v4657 = vrot.slane %v4582, 2
  %v4658 = vsel %vm3363, %v4651, %v4657
  %v4659 = vrot.slane %v4583, 2
  %v4660 = vsel %vm3363, %v4653, %v4659
  %v4661 = vrot.slane %v4584, 2
  %v4662 = vsel %vm3363, %v4655, %v4661
  %v4687 = vadd.f32 %v4510, %v4614
  %v4688 = vadd.f32 %v4511, %v4617
  %v4689 = vadd.f32 %v4512, %v4620
  %v4690 = vadd.f32 %v4513, %v4622
  %v4691 = vadd.f32 %v4514, %v4624
  %v4692 = vadd.f32 %v4515, %v4626
  %v4693 = vadd.f32 %v4516, %v4628
  %v4694 = vadd.f32 %v4517, %v4630
  %v4695 = vadd.f32 %v4518, %v4632
  %v4696 = vadd.f32 %v4519, %v4634
  %v4697 = vadd.f32 %v4520, %v4636
  %v4698 = vadd.f32 %v4521, %v4638
  %v4699 = vadd.f32 %v4522, %v4640
  %v4700 = vadd.f32 %v4523, %v4642
  %v4701 = vadd.f32 %v4524, %v4644
  %v4702 = vadd.f32 %v4525, %v4646
  %v4703 = vadd.f32 %v4526, %v4648
  %v4704 = vadd.f32 %v4527, %v4650
  %v4705 = vadd.f32 %v4528, %v4652
  %v4706 = vadd.f32 %v4529, %v4654
  %v4707 = vadd.f32 %v4530, %v4656
  %v4708 = vadd.f32 %v4531, %v4658
  %v4709 = vadd.f32 %v4532, %v4660
  %v4710 = vadd.f32 %v4533, %v4662
  %v4711 = vld [vmem:[#allocation2 + $0x120] sm:$0xfc]
  %v4712 = vld [vmem:[#allocation2 + $0x128] sm:$0xfc]
  %v4713 = vld [vmem:[#allocation2 + $0x130] sm:$0xfc]
  %v4714 = vld [vmem:[#allocation2 + $0x1e0] sm:$0x3]
  %v4715 = vld [vmem:[#allocation2 + $0x1e8] sm:$0x3]
  %v4716 = vld [vmem:[#allocation2 + $0x1f0] sm:$0x3]
  %s4717 = scalar_lea.vmem %s6, 29
  %v4718 = vld [vmem:[%s4717] ss:$8 sm:$0x7]
  %v4720 = vlaneseq
  %v4721 = vshrl.u32 %v4720, 7
  %v4722 = vsub.s32 0, %v4721
  %v4723 = vrot.slane %v4718, %v4722
  %v4724 = vlaneseq
  %v4725 = vshrl.u32 %v4724, 7
  %v4726 = vsub.s32 1, %v4725
  %v4727 = vrot.slane %v4718, %v4726
  %v4728 = vlaneseq
  %v4729 = vshrl.u32 %v4728, 7
  %v4730 = vsub.s32 2, %v4729
  %v4731 = vrot.slane %v4718, %v4730
  %v4735 = vmul.f32 %v4711, %v4723
  %v4736 = vmul.f32 %v4712, %v4727
  %v4737 = vmul.f32 %v4713, %v4731
  %v4738 = vmul.f32 %v2846, %v4723
  %v4739 = vmul.f32 %v2847, %v4727
  %v4740 = vmul.f32 %v2848, %v4731
  %v4741 = vmul.f32 %v2849, %v4723
  %v4742 = vmul.f32 %v2850, %v4727
  %v4743 = vmul.f32 %v2851, %v4731
  %v4744 = vmul.f32 %v2852, %v4723
  %v4745 = vmul.f32 %v2853, %v4727
  %v4746 = vmul.f32 %v2854, %v4731
  %v4747 = vmul.f32 %v2855, %v4723
  %v4748 = vmul.f32 %v2856, %v4727
  %v4749 = vmul.f32 %v2857, %v4731
  %v4750 = vmul.f32 %v2858, %v4723
  %v4751 = vmul.f32 %v2859, %v4727
  %v4752 = vmul.f32 %v2860, %v4731
  %v4753 = vmul.f32 %v2861, %v4723
  %v4754 = vmul.f32 %v2862, %v4727
  %v4755 = vmul.f32 %v2863, %v4731
  %v4756 = vmul.f32 %v4357, %v4723
  %v4757 = vmul.f32 %v4358, %v4727
  %v4758 = vmul.f32 %v4359, %v4731
  %v4759 = vmul.f32 %v4714, %v4723
  %v4760 = vmul.f32 %v4715, %v4727
  %v4761 = vmul.f32 %v4716, %v4731
  %v4789 = vrot.slane %v4735, 2
  %v4790 = vrot.slane %v4738, 2
  %v4791 = vsel %vm3363, %v4789, %v4790
  %v4792 = vrot.slane %v4736, 2
  %v4793 = vrot.slane %v4739, 2
  %v4794 = vsel %vm3363, %v4792, %v4793
  %v4795 = vrot.slane %v4737, 2
  %v4796 = vrot.slane %v4740, 2
  %v4797 = vsel %vm3363, %v4795, %v4796
  %v4798 = vrot.slane %v4741, 2
  %v4799 = vsel %vm3363, %v4790, %v4798
  %v4800 = vrot.slane %v4742, 2
  %v4801 = vsel %vm3363, %v4793, %v4800
  %v4802 = vrot.slane %v4743, 2
  %v4803 = vsel %vm3363, %v4796, %v4802
  %v4804 = vrot.slane %v4744, 2
  %v4805 = vsel %vm3363, %v4798, %v4804
  %v4806 = vrot.slane %v4745, 2
  %v4807 = vsel %vm3363, %v4800, %v4806
  %v4808 = vrot.slane %v4746, 2
  %v4809 = vsel %vm3363, %v4802, %v4808
  %v4810 = vrot.slane %v4747, 2
  %v4811 = vsel %vm3363, %v4804, %v4810
  %v4812 = vrot.slane %v4748, 2
  %v4813 = vsel %vm3363, %v4806, %v4812
  %v4814 = vrot.slane %v4749, 2
  %v4815 = vsel %vm3363, %v4808, %v4814
  %v4816 = vrot.slane %v4750, 2
  %v4817 = vsel %vm3363, %v4810, %v4816
  %v4818 = vrot.slane %v4751, 2
  %v4819 = vsel %vm3363, %v4812, %v4818
  %v4820 = vrot.slane %v4752, 2
  %v4821 = vsel %vm3363, %v4814, %v4820
  %v4822 = vrot.slane %v4753, 2
  %v4823 = vsel %vm3363, %v4816, %v4822
  %v4824 = vrot.slane %v4754, 2
  %v4825 = vsel %vm3363, %v4818, %v4824
  %v4826 = vrot.slane %v4755, 2
  %v4827 = vsel %vm3363, %v4820, %v4826
  %v4828 = vrot.slane %v4756, 2
  %v4829 = vsel %vm3363, %v4822, %v4828
  %v4830 = vrot.slane %v4757, 2
  %v4831 = vsel %vm3363, %v4824, %v4830
  %v4832 = vrot.slane %v4758, 2
  %v4833 = vsel %vm3363, %v4826, %v4832
  %v4834 = vrot.slane %v4759, 2
  %v4835 = vsel %vm3363, %v4828, %v4834
  %v4836 = vrot.slane %v4760, 2
  %v4837 = vsel %vm3363, %v4830, %v4836
  %v4838 = vrot.slane %v4761, 2
  %v4839 = vsel %vm3363, %v4832, %v4838
  %v4864 = vadd.f32 %v4687, %v4791
  %v4865 = vadd.f32 %v4688, %v4794
  %v4866 = vadd.f32 %v4689, %v4797
  %v4867 = vadd.f32 %v4690, %v4799
  %v4868 = vadd.f32 %v4691, %v4801
  %v4869 = vadd.f32 %v4692, %v4803
  %v4870 = vadd.f32 %v4693, %v4805
  %v4871 = vadd.f32 %v4694, %v4807
  %v4872 = vadd.f32 %v4695, %v4809
  %v4873 = vadd.f32 %v4696, %v4811
  %v4874 = vadd.f32 %v4697, %v4813
  %v4875 = vadd.f32 %v4698, %v4815
  %v4876 = vadd.f32 %v4699, %v4817
  %v4877 = vadd.f32 %v4700, %v4819
  %v4878 = vadd.f32 %v4701, %v4821
  %v4879 = vadd.f32 %v4702, %v4823
  %v4880 = vadd.f32 %v4703, %v4825
  %v4881 = vadd.f32 %v4704, %v4827
  %v4882 = vadd.f32 %v4705, %v4829
  %v4883 = vadd.f32 %v4706, %v4831
  %v4884 = vadd.f32 %v4707, %v4833
  %v4885 = vadd.f32 %v4708, %v4835
  %v4886 = vadd.f32 %v4709, %v4837
  %v4887 = vadd.f32 %v4710, %v4839
  %v4888 = vld [vmem:[#allocation2 + $0x18] sm:$0xf8]
  %v4889 = vld [vmem:[#allocation2 + $0x20] sm:$0xf8]
  %v4890 = vld [vmem:[#allocation2 + $0x28] sm:$0xf8]
  %v4891 = vld [vmem:[#allocation2 + $0xd8] sm:$0x7]
  %v4892 = vld [vmem:[#allocation2 + $0xe0] sm:$0x7]
  %v4893 = vld [vmem:[#allocation2 + $0xe8] sm:$0x7]
  %s4894 = scalar_lea.vmem %s6, 30
  %v4895 = vld [vmem:[%s4894] ss:$8 sm:$0x7]
  %v4897 = vlaneseq
  %v4898 = vshrl.u32 %v4897, 7
  %v4899 = vsub.s32 0, %v4898
  %v4900 = vrot.slane %v4895, %v4899
  %v4901 = vlaneseq
  %v4902 = vshrl.u32 %v4901, 7
  %v4903 = vsub.s32 1, %v4902
  %v4904 = vrot.slane %v4895, %v4903
  %v4905 = vlaneseq
  %v4906 = vshrl.u32 %v4905, 7
  %v4907 = vsub.s32 2, %v4906
  %v4908 = vrot.slane %v4895, %v4907
  %v4912 = vmul.f32 %v4888, %v4900
  %v4913 = vmul.f32 %v4889, %v4904
  %v4914 = vmul.f32 %v4890, %v4908
  %v4915 = vmul.f32 %v2757, %v4900
  %v4916 = vmul.f32 %v2758, %v4904
  %v4917 = vmul.f32 %v2759, %v4908
  %v4918 = vmul.f32 %v2760, %v4900
  %v4919 = vmul.f32 %v2761, %v4904
  %v4920 = vmul.f32 %v2762, %v4908
  %v4921 = vmul.f32 %v2763, %v4900
  %v4922 = vmul.f32 %v2764, %v4904
  %v4923 = vmul.f32 %v2765, %v4908
  %v4924 = vmul.f32 %v2766, %v4900
  %v4925 = vmul.f32 %v2767, %v4904
  %v4926 = vmul.f32 %v2768, %v4908
  %v4927 = vmul.f32 %v2769, %v4900
  %v4928 = vmul.f32 %v2770, %v4904
  %v4929 = vmul.f32 %v2771, %v4908
  %v4930 = vmul.f32 %v2772, %v4900
  %v4931 = vmul.f32 %v2773, %v4904
  %v4932 = vmul.f32 %v2774, %v4908
  %v4933 = vmul.f32 %v4177, %v4900
  %v4934 = vmul.f32 %v4178, %v4904
  %v4935 = vmul.f32 %v4179, %v4908
  %v4936 = vmul.f32 %v4891, %v4900
  %v4937 = vmul.f32 %v4892, %v4904
  %v4938 = vmul.f32 %v4893, %v4908
  %vm4966 = vcmask 1044480
  %v4967 = vrot.slane %v4912, 3
  %v4968 = vrot.slane %v4915, 3
  %v4969 = vsel %vm4966, %v4967, %v4968
  %v4970 = vrot.slane %v4913, 3
  %v4971 = vrot.slane %v4916, 3
  %v4972 = vsel %vm4966, %v4970, %v4971
  %v4973 = vrot.slane %v4914, 3
  %v4974 = vrot.slane %v4917, 3
  %v4975 = vsel %vm4966, %v4973, %v4974
  %v4976 = vrot.slane %v4918, 3
  %v4977 = vsel %vm4966, %v4968, %v4976
  %v4978 = vrot.slane %v4919, 3
  %v4979 = vsel %vm4966, %v4971, %v4978
  %v4980 = vrot.slane %v4920, 3
  %v4981 = vsel %vm4966, %v4974, %v4980
  %v4982 = vrot.slane %v4921, 3
  %v4983 = vsel %vm4966, %v4976, %v4982
  %v4984 = vrot.slane %v4922, 3
  %v4985 = vsel %vm4966, %v4978, %v4984
  %v4986 = vrot.slane %v4923, 3
  %v4987 = vsel %vm4966, %v4980, %v4986
  %v4988 = vrot.slane %v4924, 3
  %v4989 = vsel %vm4966, %v4982, %v4988
  %v4990 = vrot.slane %v4925, 3
  %v4991 = vsel %vm4966, %v4984, %v4990
  %v4992 = vrot.slane %v4926, 3
  %v4993 = vsel %vm4966, %v4986, %v4992
  %v4994 = vrot.slane %v4927, 3
  %v4995 = vsel %vm4966, %v4988, %v4994
  %v4996 = vrot.slane %v4928, 3
  %v4997 = vsel %vm4966, %v4990, %v4996
  %v4998 = vrot.slane %v4929, 3
  %v4999 = vsel %vm4966, %v4992, %v4998
  %v5000 = vrot.slane %v4930, 3
  %v5001 = vsel %vm4966, %v4994, %v5000
  %v5002 = vrot.slane %v4931, 3
  %v5003 = vsel %vm4966, %v4996, %v5002
  %v5004 = vrot.slane %v4932, 3
  %v5005 = vsel %vm4966, %v4998, %v5004
  %v5006 = vrot.slane %v4933, 3
  %v5007 = vsel %vm4966, %v5000, %v5006
  %v5008 = vrot.slane %v4934, 3
  %v5009 = vsel %vm4966, %v5002, %v5008
  %v5010 = vrot.slane %v4935, 3
  %v5011 = vsel %vm4966, %v5004, %v5010
  %v5012 = vrot.slane %v4936, 3
  %v5013 = vsel %vm4966, %v5006, %v5012
  %v5014 = vrot.slane %v4937, 3
  %v5015 = vsel %vm4966, %v5008, %v5014
  %v5016 = vrot.slane %v4938, 3
  %v5017 = vsel %vm4966, %v5010, %v5016
  %v5042 = vadd.f32 %v4864, %v4969
  %v5043 = vadd.f32 %v4865, %v4972
  %v5044 = vadd.f32 %v4866, %v4975
  %v5045 = vadd.f32 %v4867, %v4977
  %v5046 = vadd.f32 %v4868, %v4979
  %v5047 = vadd.f32 %v4869, %v4981
  %v5048 = vadd.f32 %v4870, %v4983
  %v5049 = vadd.f32 %v4871, %v4985
  %v5050 = vadd.f32 %v4872, %v4987
  %v5051 = vadd.f32 %v4873, %v4989
  %v5052 = vadd.f32 %v4874, %v4991
  %v5053 = vadd.f32 %v4875, %v4993
  %v5054 = vadd.f32 %v4876, %v4995
  %v5055 = vadd.f32 %v4877, %v4997
  %v5056 = vadd.f32 %v4878, %v4999
  %v5057 = vadd.f32 %v4879, %v5001
  %v5058 = vadd.f32 %v4880, %v5003
  %v5059 = vadd.f32 %v4881, %v5005
  %v5060 = vadd.f32 %v4882, %v5007
  %v5061 = vadd.f32 %v4883, %v5009
  %v5062 = vadd.f32 %v4884, %v5011
  %v5063 = vadd.f32 %v4885, %v5013
  %v5064 = vadd.f32 %v4886, %v5015
  %v5065 = vadd.f32 %v4887, %v5017
  %v5066 = vld [vmem:[#allocation2 + $0x228] sm:$0xfe]
  %v5067 = vld [vmem:[#allocation2 + $0x230] sm:$0xfe]
  %v5068 = vld [vmem:[#allocation2 + $0x238] sm:$0xfe]
  %v5069 = vld [vmem:[#allocation2 + $0x2d0] sm:$0xff]
  %v5070 = vld [vmem:[#allocation2 + $0x2d8] sm:$0xff]
  %v5071 = vld [vmem:[#allocation2 + $0x2e0] sm:$0xff]
  %v5072 = vld [vmem:[#allocation2 + $0x2e8] sm:$0x1]
  %v5073 = vld [vmem:[#allocation2 + $0x2f0] sm:$0x1]
  %v5074 = vld [vmem:[#allocation2 + $0x2f8] sm:$0x1]
  %s5075 = scalar_lea.vmem %s6, 31
  %v5076 = vld [vmem:[%s5075] ss:$8 sm:$0x7]
  %v5078 = vlaneseq
  %v5079 = vshrl.u32 %v5078, 7
  %v5080 = vsub.s32 0, %v5079
  %v5081 = vrot.slane %v5076, %v5080
  %v5082 = vlaneseq
  %v5083 = vshrl.u32 %v5082, 7
  %v5084 = vsub.s32 1, %v5083
  %v5085 = vrot.slane %v5076, %v5084
  %v5086 = vlaneseq
  %v5087 = vshrl.u32 %v5086, 7
  %v5088 = vsub.s32 2, %v5087
  %v5089 = vrot.slane %v5076, %v5088
  %v5093 = vmul.f32 %v5066, %v5081
  %v5094 = vmul.f32 %v5067, %v5085
  %v5095 = vmul.f32 %v5068, %v5089
  %v5096 = vmul.f32 %v3469, %v5081
  %v5097 = vmul.f32 %v3470, %v5085
  %v5098 = vmul.f32 %v3471, %v5089
  %v5099 = vmul.f32 %v3472, %v5081
  %v5100 = vmul.f32 %v3473, %v5085
  %v5101 = vmul.f32 %v3474, %v5089
  %v5102 = vmul.f32 %v3475, %v5081
  %v5103 = vmul.f32 %v3476, %v5085
  %v5104 = vmul.f32 %v3477, %v5089
  %v5105 = vmul.f32 %v3478, %v5081
  %v5106 = vmul.f32 %v3479, %v5085
  %v5107 = vmul.f32 %v3480, %v5089
  %v5108 = vmul.f32 %v3481, %v5081
  %v5109 = vmul.f32 %v3482, %v5085
  %v5110 = vmul.f32 %v3483, %v5089
  %v5111 = vmul.f32 %v3484, %v5081
  %v5112 = vmul.f32 %v3485, %v5085
  %v5113 = vmul.f32 %v3486, %v5089
  %v5114 = vmul.f32 %v5069, %v5081
  %v5115 = vmul.f32 %v5070, %v5085
  %v5116 = vmul.f32 %v5071, %v5089
  %v5117 = vmul.f32 %v5072, %v5081
  %v5118 = vmul.f32 %v5073, %v5085
  %v5119 = vmul.f32 %v5074, %v5089
  %v5147 = vrot.slane %v5093, 1
  %v5148 = vrot.slane %v5096, 1
  %v5149 = vsel %vm3008, %v5147, %v5148
  %v5150 = vrot.slane %v5094, 1
  %v5151 = vrot.slane %v5097, 1
  %v5152 = vsel %vm3008, %v5150, %v5151
  %v5153 = vrot.slane %v5095, 1
  %v5154 = vrot.slane %v5098, 1
  %v5155 = vsel %vm3008, %v5153, %v5154
  %v5156 = vrot.slane %v5099, 1
  %v5157 = vsel %vm3008, %v5148, %v5156
  %v5158 = vrot.slane %v5100, 1
  %v5159 = vsel %vm3008, %v5151, %v5158
  %v5160 = vrot.slane %v5101, 1
  %v5161 = vsel %vm3008, %v5154, %v5160
  %v5162 = vrot.slane %v5102, 1
  %v5163 = vsel %vm3008, %v5156, %v5162
  %v5164 = vrot.slane %v5103, 1
  %v5165 = vsel %vm3008, %v5158, %v5164
  %v5166 = vrot.slane %v5104, 1
  %v5167 = vsel %vm3008, %v5160, %v5166
  %v5168 = vrot.slane %v5105, 1
  %v5169 = vsel %vm3008, %v5162, %v5168
  %v5170 = vrot.slane %v5106, 1
  %v5171 = vsel %vm3008, %v5164, %v5170
  %v5172 = vrot.slane %v5107, 1
  %v5173 = vsel %vm3008, %v5166, %v5172
  %v5174 = vrot.slane %v5108, 1
  %v5175 = vsel %vm3008, %v5168, %v5174
  %v5176 = vrot.slane %v5109, 1
  %v5177 = vsel %vm3008, %v5170, %v5176
  %v5178 = vrot.slane %v5110, 1
  %v5179 = vsel %vm3008, %v5172, %v5178
  %v5180 = vrot.slane %v5111, 1
  %v5181 = vsel %vm3008, %v5174, %v5180
  %v5182 = vrot.slane %v5112, 1
  %v5183 = vsel %vm3008, %v5176, %v5182
  %v5184 = vrot.slane %v5113, 1
  %v5185 = vsel %vm3008, %v5178, %v5184
  %v5186 = vrot.slane %v5114, 1
  %v5187 = vsel %vm3008, %v5180, %v5186
  %v5188 = vrot.slane %v5115, 1
  %v5189 = vsel %vm3008, %v5182, %v5188
  %v5190 = vrot.slane %v5116, 1
  %v5191 = vsel %vm3008, %v5184, %v5190
  %v5192 = vrot.slane %v5117, 1
  %v5193 = vsel %vm3008, %v5186, %v5192
  %v5194 = vrot.slane %v5118, 1
  %v5195 = vsel %vm3008, %v5188, %v5194
  %v5196 = vrot.slane %v5119, 1
  %v5197 = vsel %vm3008, %v5190, %v5196
  %v5222 = vadd.f32 %v5042, %v5149
  %v5223 = vadd.f32 %v5043, %v5152
  %v5224 = vadd.f32 %v5044, %v5155
  %v5225 = vadd.f32 %v5045, %v5157
  %v5226 = vadd.f32 %v5046, %v5159
  %v5227 = vadd.f32 %v5047, %v5161
  %v5228 = vadd.f32 %v5048, %v5163
  %v5229 = vadd.f32 %v5049, %v5165
  %v5230 = vadd.f32 %v5050, %v5167
  %v5231 = vadd.f32 %v5051, %v5169
  %v5232 = vadd.f32 %v5052, %v5171
  %v5233 = vadd.f32 %v5053, %v5173
  %v5234 = vadd.f32 %v5054, %v5175
  %v5235 = vadd.f32 %v5055, %v5177
  %v5236 = vadd.f32 %v5056, %v5179
  %v5237 = vadd.f32 %v5057, %v5181
  %v5238 = vadd.f32 %v5058, %v5183
  %v5239 = vadd.f32 %v5059, %v5185
  %v5240 = vadd.f32 %v5060, %v5187
  %v5241 = vadd.f32 %v5061, %v5189
  %v5242 = vadd.f32 %v5062, %v5191
  %v5243 = vadd.f32 %v5063, %v5193
  %v5244 = vadd.f32 %v5064, %v5195
  %v5245 = vadd.f32 %v5065, %v5197
  %v5246 = vld [vmem:[#allocation2 + $0x330] sm:$0xfe]
  %v5247 = vld [vmem:[#allocation2 + $0x338] sm:$0xfe]
  %v5248 = vld [vmem:[#allocation2 + $0x340] sm:$0xfe]
  %v5249 = vld [vmem:[#allocation2 + $0x3d8] sm:$0xff]
  %v5250 = vld [vmem:[#allocation2 + $0x3e0] sm:$0xff]
  %v5251 = vld [vmem:[#allocation2 + $0x3e8] sm:$0xff]
  %v5252 = vld [vmem:[#allocation2 + $0x3f0] sm:$0x1]
  %v5253 = vld [vmem:[#allocation2 + $0x3f8] sm:$0x1]
  %v5254 = vld [vmem:[#allocation2 + $0x400] sm:$0x1]
  %s5255 = scalar_lea.vmem %s6, 48
  %v5256 = vld [vmem:[%s5255] ss:$8 sm:$0x7]
  %v5258 = vlaneseq
  %v5259 = vshrl.u32 %v5258, 7
  %v5260 = vsub.s32 0, %v5259
  %v5261 = vrot.slane %v5256, %v5260
  %v5262 = vlaneseq
  %v5263 = vshrl.u32 %v5262, 7
  %v5264 = vsub.s32 1, %v5263
  %v5265 = vrot.slane %v5256, %v5264
  %v5266 = vlaneseq
  %v5267 = vshrl.u32 %v5266, 7
  %v5268 = vsub.s32 2, %v5267
  %v5269 = vrot.slane %v5256, %v5268
  %v5273 = vmul.f32 %v5246, %v5261
  %v5274 = vmul.f32 %v5247, %v5265
  %v5275 = vmul.f32 %v5248, %v5269
  %v5276 = vmul.f32 %v3559, %v5261
  %v5277 = vmul.f32 %v3560, %v5265
  %v5278 = vmul.f32 %v3561, %v5269
  %v5279 = vmul.f32 %v3562, %v5261
  %v5280 = vmul.f32 %v3563, %v5265
  %v5281 = vmul.f32 %v3564, %v5269
  %v5282 = vmul.f32 %v3565, %v5261
  %v5283 = vmul.f32 %v3566, %v5265
  %v5284 = vmul.f32 %v3567, %v5269
  %v5285 = vmul.f32 %v3568, %v5261
  %v5286 = vmul.f32 %v3569, %v5265
  %v5287 = vmul.f32 %v3570, %v5269
  %v5288 = vmul.f32 %v3571, %v5261
  %v5289 = vmul.f32 %v3572, %v5265
  %v5290 = vmul.f32 %v3573, %v5269
  %v5291 = vmul.f32 %v3574, %v5261
  %v5292 = vmul.f32 %v3575, %v5265
  %v5293 = vmul.f32 %v3576, %v5269
  %v5294 = vmul.f32 %v5249, %v5261
  %v5295 = vmul.f32 %v5250, %v5265
  %v5296 = vmul.f32 %v5251, %v5269
  %v5297 = vmul.f32 %v5252, %v5261
  %v5298 = vmul.f32 %v5253, %v5265
  %v5299 = vmul.f32 %v5254, %v5269
  %v5327 = vrot.slane %v5273, 1
  %v5328 = vrot.slane %v5276, 1
  %v5329 = vsel %vm3008, %v5327, %v5328
  %v5330 = vrot.slane %v5274, 1
  %v5331 = vrot.slane %v5277, 1
  %v5332 = vsel %vm3008, %v5330, %v5331
  %v5333 = vrot.slane %v5275, 1
  %v5334 = vrot.slane %v5278, 1
  %v5335 = vsel %vm3008, %v5333, %v5334
  %v5336 = vrot.slane %v5279, 1
  %v5337 = vsel %vm3008, %v5328, %v5336
  %v5338 = vrot.slane %v5280, 1
  %v5339 = vsel %vm3008, %v5331, %v5338
  %v5340 = vrot.slane %v5281, 1
  %v5341 = vsel %vm3008, %v5334, %v5340
  %v5342 = vrot.slane %v5282, 1
  %v5343 = vsel %vm3008, %v5336, %v5342
  %v5344 = vrot.slane %v5283, 1
  %v5345 = vsel %vm3008, %v5338, %v5344
  %v5346 = vrot.slane %v5284, 1
  %v5347 = vsel %vm3008, %v5340, %v5346
  %v5348 = vrot.slane %v5285, 1
  %v5349 = vsel %vm3008, %v5342, %v5348
  %v5350 = vrot.slane %v5286, 1
  %v5351 = vsel %vm3008, %v5344, %v5350
  %v5352 = vrot.slane %v5287, 1
  %v5353 = vsel %vm3008, %v5346, %v5352
  %v5354 = vrot.slane %v5288, 1
  %v5355 = vsel %vm3008, %v5348, %v5354
  %v5356 = vrot.slane %v5289, 1
  %v5357 = vsel %vm3008, %v5350, %v5356
  %v5358 = vrot.slane %v5290, 1
  %v5359 = vsel %vm3008, %v5352, %v5358
  %v5360 = vrot.slane %v5291, 1
  %v5361 = vsel %vm3008, %v5354, %v5360
  %v5362 = vrot.slane %v5292, 1
  %v5363 = vsel %vm3008, %v5356, %v5362
  %v5364 = vrot.slane %v5293, 1
  %v5365 = vsel %vm3008, %v5358, %v5364
  %v5366 = vrot.slane %v5294, 1
  %v5367 = vsel %vm3008, %v5360, %v5366
  %v5368 = vrot.slane %v5295, 1
  %v5369 = vsel %vm3008, %v5362, %v5368
  %v5370 = vrot.slane %v5296, 1
  %v5371 = vsel %vm3008, %v5364, %v5370
  %v5372 = vrot.slane %v5297, 1
  %v5373 = vsel %vm3008, %v5366, %v5372
  %v5374 = vrot.slane %v5298, 1
  %v5375 = vsel %vm3008, %v5368, %v5374
  %v5376 = vrot.slane %v5299, 1
  %v5377 = vsel %vm3008, %v5370, %v5376
  %v5402 = vadd.f32 %v5222, %v5329
  %v5403 = vadd.f32 %v5223, %v5332
  %v5404 = vadd.f32 %v5224, %v5335
  %v5405 = vadd.f32 %v5225, %v5337
  %v5406 = vadd.f32 %v5226, %v5339
  %v5407 = vadd.f32 %v5227, %v5341
  %v5408 = vadd.f32 %v5228, %v5343
  %v5409 = vadd.f32 %v5229, %v5345
  %v5410 = vadd.f32 %v5230, %v5347
  %v5411 = vadd.f32 %v5231, %v5349
  %v5412 = vadd.f32 %v5232, %v5351
  %v5413 = vadd.f32 %v5233, %v5353
  %v5414 = vadd.f32 %v5234, %v5355
  %v5415 = vadd.f32 %v5235, %v5357
  %v5416 = vadd.f32 %v5236, %v5359
  %v5417 = vadd.f32 %v5237, %v5361
  %v5418 = vadd.f32 %v5238, %v5363
  %v5419 = vadd.f32 %v5239, %v5365
  %v5420 = vadd.f32 %v5240, %v5367
  %v5421 = vadd.f32 %v5241, %v5369
  %v5422 = vadd.f32 %v5242, %v5371
  %v5423 = vadd.f32 %v5243, %v5373
  %v5424 = vadd.f32 %v5244, %v5375
  %v5425 = vadd.f32 %v5245, %v5377
  %v5426 = vld [vmem:[#allocation2 + $0x228] sm:$0xfc]
  %v5427 = vld [vmem:[#allocation2 + $0x230] sm:$0xfc]
  %v5428 = vld [vmem:[#allocation2 + $0x238] sm:$0xfc]
  %v5429 = vld [vmem:[#allocation2 + $0x2e8] sm:$0x3]
  %v5430 = vld [vmem:[#allocation2 + $0x2f0] sm:$0x3]
  %v5431 = vld [vmem:[#allocation2 + $0x2f8] sm:$0x3]
  %s5432 = scalar_lea.vmem %s6, 49
  %v5433 = vld [vmem:[%s5432] ss:$8 sm:$0x7]
  %v5435 = vlaneseq
  %v5436 = vshrl.u32 %v5435, 7
  %v5437 = vsub.s32 0, %v5436
  %v5438 = vrot.slane %v5433, %v5437
  %v5439 = vlaneseq
  %v5440 = vshrl.u32 %v5439, 7
  %v5441 = vsub.s32 1, %v5440
  %v5442 = vrot.slane %v5433, %v5441
  %v5443 = vlaneseq
  %v5444 = vshrl.u32 %v5443, 7
  %v5445 = vsub.s32 2, %v5444
  %v5446 = vrot.slane %v5433, %v5445
  %v5450 = vmul.f32 %v5426, %v5438
  %v5451 = vmul.f32 %v5427, %v5442
  %v5452 = vmul.f32 %v5428, %v5446
  %v5453 = vmul.f32 %v3469, %v5438
  %v5454 = vmul.f32 %v3470, %v5442
  %v5455 = vmul.f32 %v3471, %v5446
  %v5456 = vmul.f32 %v3472, %v5438
  %v5457 = vmul.f32 %v3473, %v5442
  %v5458 = vmul.f32 %v3474, %v5446
  %v5459 = vmul.f32 %v3475, %v5438
  %v5460 = vmul.f32 %v3476, %v5442
  %v5461 = vmul.f32 %v3477, %v5446
  %v5462 = vmul.f32 %v3478, %v5438
  %v5463 = vmul.f32 %v3479, %v5442
  %v5464 = vmul.f32 %v3480, %v5446
  %v5465 = vmul.f32 %v3481, %v5438
  %v5466 = vmul.f32 %v3482, %v5442
  %v5467 = vmul.f32 %v3483, %v5446
  %v5468 = vmul.f32 %v3484, %v5438
  %v5469 = vmul.f32 %v3485, %v5442
  %v5470 = vmul.f32 %v3486, %v5446
  %v5471 = vmul.f32 %v5069, %v5438
  %v5472 = vmul.f32 %v5070, %v5442
  %v5473 = vmul.f32 %v5071, %v5446
  %v5474 = vmul.f32 %v5429, %v5438
  %v5475 = vmul.f32 %v5430, %v5442
  %v5476 = vmul.f32 %v5431, %v5446
  %v5504 = vrot.slane %v5450, 2
  %v5505 = vrot.slane %v5453, 2
  %v5506 = vsel %vm3363, %v5504, %v5505
  %v5507 = vrot.slane %v5451, 2
  %v5508 = vrot.slane %v5454, 2
  %v5509 = vsel %vm3363, %v5507, %v5508
  %v5510 = vrot.slane %v5452, 2
  %v5511 = vrot.slane %v5455, 2
  %v5512 = vsel %vm3363, %v5510, %v5511
  %v5513 = vrot.slane %v5456, 2
  %v5514 = vsel %vm3363, %v5505, %v5513
  %v5515 = vrot.slane %v5457, 2
  %v5516 = vsel %vm3363, %v5508, %v5515
  %v5517 = vrot.slane %v5458, 2
  %v5518 = vsel %vm3363, %v5511, %v5517
  %v5519 = vrot.slane %v5459, 2
  %v5520 = vsel %vm3363, %v5513, %v5519
  %v5521 = vrot.slane %v5460, 2
  %v5522 = vsel %vm3363, %v5515, %v5521
  %v5523 = vrot.slane %v5461, 2
  %v5524 = vsel %vm3363, %v5517, %v5523
  %v5525 = vrot.slane %v5462, 2
  %v5526 = vsel %vm3363, %v5519, %v5525
  %v5527 = vrot.slane %v5463, 2
  %v5528 = vsel %vm3363, %v5521, %v5527
  %v5529 = vrot.slane %v5464, 2
  %v5530 = vsel %vm3363, %v5523, %v5529
  %v5531 = vrot.slane %v5465, 2
  %v5532 = vsel %vm3363, %v5525, %v5531
  %v5533 = vrot.slane %v5466, 2
  %v5534 = vsel %vm3363, %v5527, %v5533
  %v5535 = vrot.slane %v5467, 2
  %v5536 = vsel %vm3363, %v5529, %v5535
  %v5537 = vrot.slane %v5468, 2
  %v5538 = vsel %vm3363, %v5531, %v5537
  %v5539 = vrot.slane %v5469, 2
  %v5540 = vsel %vm3363, %v5533, %v5539
  %v5541 = vrot.slane %v5470, 2
  %v5542 = vsel %vm3363, %v5535, %v5541
  %v5543 = vrot.slane %v5471, 2
  %v5544 = vsel %vm3363, %v5537, %v5543
  %v5545 = vrot.slane %v5472, 2
  %v5546 = vsel %vm3363, %v5539, %v5545
  %v5547 = vrot.slane %v5473, 2
  %v5548 = vsel %vm3363, %v5541, %v5547
  %v5549 = vrot.slane %v5474, 2
  %v5550 = vsel %vm3363, %v5543, %v5549
  %v5551 = vrot.slane %v5475, 2
  %v5552 = vsel %vm3363, %v5545, %v5551
  %v5553 = vrot.slane %v5476, 2
  %v5554 = vsel %vm3363, %v5547, %v5553
  %v5579 = vadd.f32 %v5402, %v5506
  %v5580 = vadd.f32 %v5403, %v5509
  %v5581 = vadd.f32 %v5404, %v5512
  %v5582 = vadd.f32 %v5405, %v5514
  %v5583 = vadd.f32 %v5406, %v5516
  %v5584 = vadd.f32 %v5407, %v5518
  %v5585 = vadd.f32 %v5408, %v5520
  %v5586 = vadd.f32 %v5409, %v5522
  %v5587 = vadd.f32 %v5410, %v5524
  %v5588 = vadd.f32 %v5411, %v5526
  %v5589 = vadd.f32 %v5412, %v5528
  %v5590 = vadd.f32 %v5413, %v5530
  %v5591 = vadd.f32 %v5414, %v5532
  %v5592 = vadd.f32 %v5415, %v5534
  %v5593 = vadd.f32 %v5416, %v5536
  %v5594 = vadd.f32 %v5417, %v5538
  %v5595 = vadd.f32 %v5418, %v5540
  %v5596 = vadd.f32 %v5419, %v5542
  %v5597 = vadd.f32 %v5420, %v5544
  %v5598 = vadd.f32 %v5421, %v5546
  %v5599 = vadd.f32 %v5422, %v5548
  %v5600 = vadd.f32 %v5423, %v5550
  %v5601 = vadd.f32 %v5424, %v5552
  %v5602 = vadd.f32 %v5425, %v5554
  %v5603 = vld [vmem:[#allocation2 + $0x330] sm:$0xfc]
  %v5604 = vld [vmem:[#allocation2 + $0x338] sm:$0xfc]
  %v5605 = vld [vmem:[#allocation2 + $0x340] sm:$0xfc]
  %v5606 = vld [vmem:[#allocation2 + $0x3f0] sm:$0x3]
  %v5607 = vld [vmem:[#allocation2 + $0x3f8] sm:$0x3]
  %v5608 = vld [vmem:[#allocation2 + $0x400] sm:$0x3]
  %s5609 = scalar_lea.vmem %s6, 50
  %v5610 = vld [vmem:[%s5609] ss:$8 sm:$0x7]
  %v5612 = vlaneseq
  %v5613 = vshrl.u32 %v5612, 7
  %v5614 = vsub.s32 0, %v5613
  %v5615 = vrot.slane %v5610, %v5614
  %v5616 = vlaneseq
  %v5617 = vshrl.u32 %v5616, 7
  %v5618 = vsub.s32 1, %v5617
  %v5619 = vrot.slane %v5610, %v5618
  %v5620 = vlaneseq
  %v5621 = vshrl.u32 %v5620, 7
  %v5622 = vsub.s32 2, %v5621
  %v5623 = vrot.slane %v5610, %v5622
  %v5627 = vmul.f32 %v5603, %v5615
  %v5628 = vmul.f32 %v5604, %v5619
  %v5629 = vmul.f32 %v5605, %v5623
  %v5630 = vmul.f32 %v3559, %v5615
  %v5631 = vmul.f32 %v3560, %v5619
  %v5632 = vmul.f32 %v3561, %v5623
  %v5633 = vmul.f32 %v3562, %v5615
  %v5634 = vmul.f32 %v3563, %v5619
  %v5635 = vmul.f32 %v3564, %v5623
  %v5636 = vmul.f32 %v3565, %v5615
  %v5637 = vmul.f32 %v3566, %v5619
  %v5638 = vmul.f32 %v3567, %v5623
  %v5639 = vmul.f32 %v3568, %v5615
  %v5640 = vmul.f32 %v3569, %v5619
  %v5641 = vmul.f32 %v3570, %v5623
  %v5642 = vmul.f32 %v3571, %v5615
  %v5643 = vmul.f32 %v3572, %v5619
  %v5644 = vmul.f32 %v3573, %v5623
  %v5645 = vmul.f32 %v3574, %v5615
  %v5646 = vmul.f32 %v3575, %v5619
  %v5647 = vmul.f32 %v3576, %v5623
  %v5648 = vmul.f32 %v5249, %v5615
  %v5649 = vmul.f32 %v5250, %v5619
  %v5650 = vmul.f32 %v5251, %v5623
  %v5651 = vmul.f32 %v5606, %v5615
  %v5652 = vmul.f32 %v5607, %v5619
  %v5653 = vmul.f32 %v5608, %v5623
  %v5681 = vrot.slane %v5627, 2
  %v5682 = vrot.slane %v5630, 2
  %v5683 = vsel %vm3363, %v5681, %v5682
  %v5684 = vrot.slane %v5628, 2
  %v5685 = vrot.slane %v5631, 2
  %v5686 = vsel %vm3363, %v5684, %v5685
  %v5687 = vrot.slane %v5629, 2
  %v5688 = vrot.slane %v5632, 2
  %v5689 = vsel %vm3363, %v5687, %v5688
  %v5690 = vrot.slane %v5633, 2
  %v5691 = vsel %vm3363, %v5682, %v5690
  %v5692 = vrot.slane %v5634, 2
  %v5693 = vsel %vm3363, %v5685, %v5692
  %v5694 = vrot.slane %v5635, 2
  %v5695 = vsel %vm3363, %v5688, %v5694
  %v5696 = vrot.slane %v5636, 2
  %v5697 = vsel %vm3363, %v5690, %v5696
  %v5698 = vrot.slane %v5637, 2
  %v5699 = vsel %vm3363, %v5692, %v5698
  %v5700 = vrot.slane %v5638, 2
  %v5701 = vsel %vm3363, %v5694, %v5700
  %v5702 = vrot.slane %v5639, 2
  %v5703 = vsel %vm3363, %v5696, %v5702
  %v5704 = vrot.slane %v5640, 2
  %v5705 = vsel %vm3363, %v5698, %v5704
  %v5706 = vrot.slane %v5641, 2
  %v5707 = vsel %vm3363, %v5700, %v5706
  %v5708 = vrot.slane %v5642, 2
  %v5709 = vsel %vm3363, %v5702, %v5708
  %v5710 = vrot.slane %v5643, 2
  %v5711 = vsel %vm3363, %v5704, %v5710
  %v5712 = vrot.slane %v5644, 2
  %v5713 = vsel %vm3363, %v5706, %v5712
  %v5714 = vrot.slane %v5645, 2
  %v5715 = vsel %vm3363, %v5708, %v5714
  %v5716 = vrot.slane %v5646, 2
  %v5717 = vsel %vm3363, %v5710, %v5716
  %v5718 = vrot.slane %v5647, 2
  %v5719 = vsel %vm3363, %v5712, %v5718
  %v5720 = vrot.slane %v5648, 2
  %v5721 = vsel %vm3363, %v5714, %v5720
  %v5722 = vrot.slane %v5649, 2
  %v5723 = vsel %vm3363, %v5716, %v5722
  %v5724 = vrot.slane %v5650, 2
  %v5725 = vsel %vm3363, %v5718, %v5724
  %v5726 = vrot.slane %v5651, 2
  %v5727 = vsel %vm3363, %v5720, %v5726
  %v5728 = vrot.slane %v5652, 2
  %v5729 = vsel %vm3363, %v5722, %v5728
  %v5730 = vrot.slane %v5653, 2
  %v5731 = vsel %vm3363, %v5724, %v5730
  %v5756 = vadd.f32 %v5579, %v5683
  %v5757 = vadd.f32 %v5580, %v5686
  %v5758 = vadd.f32 %v5581, %v5689
  %v5759 = vadd.f32 %v5582, %v5691
  %v5760 = vadd.f32 %v5583, %v5693
  %v5761 = vadd.f32 %v5584, %v5695
  %v5762 = vadd.f32 %v5585, %v5697
  %v5763 = vadd.f32 %v5586, %v5699
  %v5764 = vadd.f32 %v5587, %v5701
  %v5765 = vadd.f32 %v5588, %v5703
  %v5766 = vadd.f32 %v5589, %v5705
  %v5767 = vadd.f32 %v5590, %v5707
  %v5768 = vadd.f32 %v5591, %v5709
  %v5769 = vadd.f32 %v5592, %v5711
  %v5770 = vadd.f32 %v5593, %v5713
  %v5771 = vadd.f32 %v5594, %v5715
  %v5772 = vadd.f32 %v5595, %v5717
  %v5773 = vadd.f32 %v5596, %v5719
  %v5774 = vadd.f32 %v5597, %v5721
  %v5775 = vadd.f32 %v5598, %v5723
  %v5776 = vadd.f32 %v5599, %v5725
  %v5777 = vadd.f32 %v5600, %v5727
  %v5778 = vadd.f32 %v5601, %v5729
  %v5779 = vadd.f32 %v5602, %v5731
  %v5780 = vld [vmem:[#allocation2 + $0x228] sm:$0xf8]
  %v5781 = vld [vmem:[#allocation2 + $0x230] sm:$0xf8]
  %v5782 = vld [vmem:[#allocation2 + $0x238] sm:$0xf8]
  %v5783 = vld [vmem:[#allocation2 + $0x2e8] sm:$0x7]
  %v5784 = vld [vmem:[#allocation2 + $0x2f0] sm:$0x7]
  %v5785 = vld [vmem:[#allocation2 + $0x2f8] sm:$0x7]
  %s5786 = scalar_lea.vmem %s6, 51
  %v5787 = vld [vmem:[%s5786] ss:$8 sm:$0x7]
  %v5789 = vlaneseq
  %v5790 = vshrl.u32 %v5789, 7
  %v5791 = vsub.s32 0, %v5790
  %v5792 = vrot.slane %v5787, %v5791
  %v5793 = vlaneseq
  %v5794 = vshrl.u32 %v5793, 7
  %v5795 = vsub.s32 1, %v5794
  %v5796 = vrot.slane %v5787, %v5795
  %v5797 = vlaneseq
  %v5798 = vshrl.u32 %v5797, 7
  %v5799 = vsub.s32 2, %v5798
  %v5800 = vrot.slane %v5787, %v5799
  %v5804 = vmul.f32 %v5780, %v5792
  %v5805 = vmul.f32 %v5781, %v5796
  %v5806 = vmul.f32 %v5782, %v5800
  %v5807 = vmul.f32 %v3469, %v5792
  %v5808 = vmul.f32 %v3470, %v5796
  %v5809 = vmul.f32 %v3471, %v5800
  %v5810 = vmul.f32 %v3472, %v5792
  %v5811 = vmul.f32 %v3473, %v5796
  %v5812 = vmul.f32 %v3474, %v5800
  %v5813 = vmul.f32 %v3475, %v5792
  %v5814 = vmul.f32 %v3476, %v5796
  %v5815 = vmul.f32 %v3477, %v5800
  %v5816 = vmul.f32 %v3478, %v5792
  %v5817 = vmul.f32 %v3479, %v5796
  %v5818 = vmul.f32 %v3480, %v5800
  %v5819 = vmul.f32 %v3481, %v5792
  %v5820 = vmul.f32 %v3482, %v5796
  %v5821 = vmul.f32 %v3483, %v5800
  %v5822 = vmul.f32 %v3484, %v5792
  %v5823 = vmul.f32 %v3485, %v5796
  %v5824 = vmul.f32 %v3486, %v5800
  %v5825 = vmul.f32 %v5069, %v5792
  %v5826 = vmul.f32 %v5070, %v5796
  %v5827 = vmul.f32 %v5071, %v5800
  %v5828 = vmul.f32 %v5783, %v5792
  %v5829 = vmul.f32 %v5784, %v5796
  %v5830 = vmul.f32 %v5785, %v5800
  %v5858 = vrot.slane %v5804, 3
  %v5859 = vrot.slane %v5807, 3
  %v5860 = vsel %vm4966, %v5858, %v5859
  %v5861 = vrot.slane %v5805, 3
  %v5862 = vrot.slane %v5808, 3
  %v5863 = vsel %vm4966, %v5861, %v5862
  %v5864 = vrot.slane %v5806, 3
  %v5865 = vrot.slane %v5809, 3
  %v5866 = vsel %vm4966, %v5864, %v5865
  %v5867 = vrot.slane %v5810, 3
  %v5868 = vsel %vm4966, %v5859, %v5867
  %v5869 = vrot.slane %v5811, 3
  %v5870 = vsel %vm4966, %v5862, %v5869
  %v5871 = vrot.slane %v5812, 3
  %v5872 = vsel %vm4966, %v5865, %v5871
  %v5873 = vrot.slane %v5813, 3
  %v5874 = vsel %vm4966, %v5867, %v5873
  %v5875 = vrot.slane %v5814, 3
  %v5876 = vsel %vm4966, %v5869, %v5875
  %v5877 = vrot.slane %v5815, 3
  %v5878 = vsel %vm4966, %v5871, %v5877
  %v5879 = vrot.slane %v5816, 3
  %v5880 = vsel %vm4966, %v5873, %v5879
  %v5881 = vrot.slane %v5817, 3
  %v5882 = vsel %vm4966, %v5875, %v5881
  %v5883 = vrot.slane %v5818, 3
  %v5884 = vsel %vm4966, %v5877, %v5883
  %v5885 = vrot.slane %v5819, 3
  %v5886 = vsel %vm4966, %v5879, %v5885
  %v5887 = vrot.slane %v5820, 3
  %v5888 = vsel %vm4966, %v5881, %v5887
  %v5889 = vrot.slane %v5821, 3
  %v5890 = vsel %vm4966, %v5883, %v5889
  %v5891 = vrot.slane %v5822, 3
  %v5892 = vsel %vm4966, %v5885, %v5891
  %v5893 = vrot.slane %v5823, 3
  %v5894 = vsel %vm4966, %v5887, %v5893
  %v5895 = vrot.slane %v5824, 3
  %v5896 = vsel %vm4966, %v5889, %v5895
  %v5897 = vrot.slane %v5825, 3
  %v5898 = vsel %vm4966, %v5891, %v5897
  %v5899 = vrot.slane %v5826, 3
  %v5900 = vsel %vm4966, %v5893, %v5899
  %v5901 = vrot.slane %v5827, 3
  %v5902 = vsel %vm4966, %v5895, %v5901
  %v5903 = vrot.slane %v5828, 3
  %v5904 = vsel %vm4966, %v5897, %v5903
  %v5905 = vrot.slane %v5829, 3
  %v5906 = vsel %vm4966, %v5899, %v5905
  %v5907 = vrot.slane %v5830, 3
  %v5908 = vsel %vm4966, %v5901, %v5907
  %v5933 = vadd.f32 %v5756, %v5860
  %v5934 = vadd.f32 %v5757, %v5863
  %v5935 = vadd.f32 %v5758, %v5866
  %v5936 = vadd.f32 %v5759, %v5868
  %v5937 = vadd.f32 %v5760, %v5870
  %v5938 = vadd.f32 %v5761, %v5872
  %v5939 = vadd.f32 %v5762, %v5874
  %v5940 = vadd.f32 %v5763, %v5876
  %v5941 = vadd.f32 %v5764, %v5878
  %v5942 = vadd.f32 %v5765, %v5880
  %v5943 = vadd.f32 %v5766, %v5882
  %v5944 = vadd.f32 %v5767, %v5884
  %v5945 = vadd.f32 %v5768, %v5886
  %v5946 = vadd.f32 %v5769, %v5888
  %v5947 = vadd.f32 %v5770, %v5890
  %v5948 = vadd.f32 %v5771, %v5892
  %v5949 = vadd.f32 %v5772, %v5894
  %v5950 = vadd.f32 %v5773, %v5896
  %v5951 = vadd.f32 %v5774, %v5898
  %v5952 = vadd.f32 %v5775, %v5900
  %v5953 = vadd.f32 %v5776, %v5902
  %v5954 = vadd.f32 %v5777, %v5904
  %v5955 = vadd.f32 %v5778, %v5906
  %v5956 = vadd.f32 %v5779, %v5908
  %v5957 = vld [vmem:[#allocation2 + $0x30] sm:$0xfc]
  %v5958 = vld [vmem:[#allocation2 + $0x38] sm:$0xfc]
  %v5959 = vld [vmem:[#allocation2 + $0x40] sm:$0xfc]
  %v5960 = vld [vmem:[#allocation2 + $0xd8] sm:$0xff]
  %v5961 = vld [vmem:[#allocation2 + $0xe0] sm:$0xff]
  %v5962 = vld [vmem:[#allocation2 + $0xe8] sm:$0xff]
  %v5963 = vld [vmem:[#allocation2 + $0xf0] sm:$0x3]
  %v5964 = vld [vmem:[#allocation2 + $0xf8] sm:$0x3]
  %v5965 = vld [vmem:[#allocation2 + $0x100] sm:$0x3]
  %s5966 = scalar_lea.vmem %s6, 52
  %v5967 = vld [vmem:[%s5966] ss:$8 sm:$0x7]
  %v5969 = vlaneseq
  %v5970 = vshrl.u32 %v5969, 7
  %v5971 = vsub.s32 0, %v5970
  %v5972 = vrot.slane %v5967, %v5971
  %v5973 = vlaneseq
  %v5974 = vshrl.u32 %v5973, 7
  %v5975 = vsub.s32 1, %v5974
  %v5976 = vrot.slane %v5967, %v5975
  %v5977 = vlaneseq
  %v5978 = vshrl.u32 %v5977, 7
  %v5979 = vsub.s32 2, %v5978
  %v5980 = vrot.slane %v5967, %v5979
  %v5984 = vmul.f32 %v5957, %v5972
  %v5985 = vmul.f32 %v5958, %v5976
  %v5986 = vmul.f32 %v5959, %v5980
  %v5987 = vmul.f32 %v2760, %v5972
  %v5988 = vmul.f32 %v2761, %v5976
  %v5989 = vmul.f32 %v2762, %v5980
  %v5990 = vmul.f32 %v2763, %v5972
  %v5991 = vmul.f32 %v2764, %v5976
  %v5992 = vmul.f32 %v2765, %v5980
  %v5993 = vmul.f32 %v2766, %v5972
  %v5994 = vmul.f32 %v2767, %v5976
  %v5995 = vmul.f32 %v2768, %v5980
  %v5996 = vmul.f32 %v2769, %v5972
  %v5997 = vmul.f32 %v2770, %v5976
  %v5998 = vmul.f32 %v2771, %v5980
  %v5999 = vmul.f32 %v2772, %v5972
  %v6000 = vmul.f32 %v2773, %v5976
  %v6001 = vmul.f32 %v2774, %v5980
  %v6002 = vmul.f32 %v4177, %v5972
  %v6003 = vmul.f32 %v4178, %v5976
  %v6004 = vmul.f32 %v4179, %v5980
  %v6005 = vmul.f32 %v5960, %v5972
  %v6006 = vmul.f32 %v5961, %v5976
  %v6007 = vmul.f32 %v5962, %v5980
  %v6008 = vmul.f32 %v5963, %v5972
  %v6009 = vmul.f32 %v5964, %v5976
  %v6010 = vmul.f32 %v5965, %v5980
  %v6038 = vrot.slane %v5984, 2
  %v6039 = vrot.slane %v5987, 2
  %v6040 = vsel %vm3363, %v6038, %v6039
  %v6041 = vrot.slane %v5985, 2
  %v6042 = vrot.slane %v5988, 2
  %v6043 = vsel %vm3363, %v6041, %v6042
  %v6044 = vrot.slane %v5986, 2
  %v6045 = vrot.slane %v5989, 2
  %v6046 = vsel %vm3363, %v6044, %v6045
  %v6047 = vrot.slane %v5990, 2
  %v6048 = vsel %vm3363, %v6039, %v6047
  %v6049 = vrot.slane %v5991, 2
  %v6050 = vsel %vm3363, %v6042, %v6049
  %v6051 = vrot.slane %v5992, 2
  %v6052 = vsel %vm3363, %v6045, %v6051
  %v6053 = vrot.slane %v5993, 2
  %v6054 = vsel %vm3363, %v6047, %v6053
  %v6055 = vrot.slane %v5994, 2
  %v6056 = vsel %vm3363, %v6049, %v6055
  %v6057 = vrot.slane %v5995, 2
  %v6058 = vsel %vm3363, %v6051, %v6057
  %v6059 = vrot.slane %v5996, 2
  %v6060 = vsel %vm3363, %v6053, %v6059
  %v6061 = vrot.slane %v5997, 2
  %v6062 = vsel %vm3363, %v6055, %v6061
  %v6063 = vrot.slane %v5998, 2
  %v6064 = vsel %vm3363, %v6057, %v6063
  %v6065 = vrot.slane %v5999, 2
  %v6066 = vsel %vm3363, %v6059, %v6065
  %v6067 = vrot.slane %v6000, 2
  %v6068 = vsel %vm3363, %v6061, %v6067
  %v6069 = vrot.slane %v6001, 2
  %v6070 = vsel %vm3363, %v6063, %v6069
  %v6071 = vrot.slane %v6002, 2
  %v6072 = vsel %vm3363, %v6065, %v6071
  %v6073 = vrot.slane %v6003, 2
  %v6074 = vsel %vm3363, %v6067, %v6073
  %v6075 = vrot.slane %v6004, 2
  %v6076 = vsel %vm3363, %v6069, %v6075
  %v6077 = vrot.slane %v6005, 2
  %v6078 = vsel %vm3363, %v6071, %v6077
  %v6079 = vrot.slane %v6006, 2
  %v6080 = vsel %vm3363, %v6073, %v6079
  %v6081 = vrot.slane %v6007, 2
  %v6082 = vsel %vm3363, %v6075, %v6081
  %v6083 = vrot.slane %v6008, 2
  %v6084 = vsel %vm3363, %v6077, %v6083
  %v6085 = vrot.slane %v6009, 2
  %v6086 = vsel %vm3363, %v6079, %v6085
  %v6087 = vrot.slane %v6010, 2
  %v6088 = vsel %vm3363, %v6081, %v6087
  %v6113 = vadd.f32 %v5933, %v6040
  %v6114 = vadd.f32 %v5934, %v6043
  %v6115 = vadd.f32 %v5935, %v6046
  %v6116 = vadd.f32 %v5936, %v6048
  %v6117 = vadd.f32 %v5937, %v6050
  %v6118 = vadd.f32 %v5938, %v6052
  %v6119 = vadd.f32 %v5939, %v6054
  %v6120 = vadd.f32 %v5940, %v6056
  %v6121 = vadd.f32 %v5941, %v6058
  %v6122 = vadd.f32 %v5942, %v6060
  %v6123 = vadd.f32 %v5943, %v6062
  %v6124 = vadd.f32 %v5944, %v6064
  %v6125 = vadd.f32 %v5945, %v6066
  %v6126 = vadd.f32 %v5946, %v6068
  %v6127 = vadd.f32 %v5947, %v6070
  %v6128 = vadd.f32 %v5948, %v6072
  %v6129 = vadd.f32 %v5949, %v6074
  %v6130 = vadd.f32 %v5950, %v6076
  %v6131 = vadd.f32 %v5951, %v6078
  %v6132 = vadd.f32 %v5952, %v6080
  %v6133 = vadd.f32 %v5953, %v6082
  %v6134 = vadd.f32 %v5954, %v6084
  %v6135 = vadd.f32 %v5955, %v6086
  %v6136 = vadd.f32 %v5956, %v6088
  %v6137 = vld [vmem:[#allocation2 + $0x138] sm:$0xfc]
  %v6138 = vld [vmem:[#allocation2 + $0x140] sm:$0xfc]
  %v6139 = vld [vmem:[#allocation2 + $0x148] sm:$0xfc]
  %v6140 = vld [vmem:[#allocation2 + $0x1e0] sm:$0xff]
  %v6141 = vld [vmem:[#allocation2 + $0x1e8] sm:$0xff]
  %v6142 = vld [vmem:[#allocation2 + $0x1f0] sm:$0xff]
  %v6143 = vld [vmem:[#allocation2 + $0x1f8] sm:$0x3]
  %v6144 = vld [vmem:[#allocation2 + $0x200] sm:$0x3]
  %v6145 = vld [vmem:[#allocation2 + $0x208] sm:$0x3]
  %s6146 = scalar_lea.vmem %s6, 53
  %v6147 = vld [vmem:[%s6146] ss:$8 sm:$0x7]
  %v6149 = vlaneseq
  %v6150 = vshrl.u32 %v6149, 7
  %v6151 = vsub.s32 0, %v6150
  %v6152 = vrot.slane %v6147, %v6151
  %v6153 = vlaneseq
  %v6154 = vshrl.u32 %v6153, 7
  %v6155 = vsub.s32 1, %v6154
  %v6156 = vrot.slane %v6147, %v6155
  %v6157 = vlaneseq
  %v6158 = vshrl.u32 %v6157, 7
  %v6159 = vsub.s32 2, %v6158
  %v6160 = vrot.slane %v6147, %v6159
  %v6164 = vmul.f32 %v6137, %v6152
  %v6165 = vmul.f32 %v6138, %v6156
  %v6166 = vmul.f32 %v6139, %v6160
  %v6167 = vmul.f32 %v2849, %v6152
  %v6168 = vmul.f32 %v2850, %v6156
  %v6169 = vmul.f32 %v2851, %v6160
  %v6170 = vmul.f32 %v2852, %v6152
  %v6171 = vmul.f32 %v2853, %v6156
  %v6172 = vmul.f32 %v2854, %v6160
  %v6173 = vmul.f32 %v2855, %v6152
  %v6174 = vmul.f32 %v2856, %v6156
  %v6175 = vmul.f32 %v2857, %v6160
  %v6176 = vmul.f32 %v2858, %v6152
  %v6177 = vmul.f32 %v2859, %v6156
  %v6178 = vmul.f32 %v2860, %v6160
  %v6179 = vmul.f32 %v2861, %v6152
  %v6180 = vmul.f32 %v2862, %v6156
  %v6181 = vmul.f32 %v2863, %v6160
  %v6182 = vmul.f32 %v4357, %v6152
  %v6183 = vmul.f32 %v4358, %v6156
  %v6184 = vmul.f32 %v4359, %v6160
  %v6185 = vmul.f32 %v6140, %v6152
  %v6186 = vmul.f32 %v6141, %v6156
  %v6187 = vmul.f32 %v6142, %v6160
  %v6188 = vmul.f32 %v6143, %v6152
  %v6189 = vmul.f32 %v6144, %v6156
  %v6190 = vmul.f32 %v6145, %v6160
  %v6218 = vrot.slane %v6164, 2
  %v6219 = vrot.slane %v6167, 2
  %v6220 = vsel %vm3363, %v6218, %v6219
  %v6221 = vrot.slane %v6165, 2
  %v6222 = vrot.slane %v6168, 2
  %v6223 = vsel %vm3363, %v6221, %v6222
  %v6224 = vrot.slane %v6166, 2
  %v6225 = vrot.slane %v6169, 2
  %v6226 = vsel %vm3363, %v6224, %v6225
  %v6227 = vrot.slane %v6170, 2
  %v6228 = vsel %vm3363, %v6219, %v6227
  %v6229 = vrot.slane %v6171, 2
  %v6230 = vsel %vm3363, %v6222, %v6229
  %v6231 = vrot.slane %v6172, 2
  %v6232 = vsel %vm3363, %v6225, %v6231
  %v6233 = vrot.slane %v6173, 2
  %v6234 = vsel %vm3363, %v6227, %v6233
  %v6235 = vrot.slane %v6174, 2
  %v6236 = vsel %vm3363, %v6229, %v6235
  %v6237 = vrot.slane %v6175, 2
  %v6238 = vsel %vm3363, %v6231, %v6237
  %v6239 = vrot.slane %v6176, 2
  %v6240 = vsel %vm3363, %v6233, %v6239
  %v6241 = vrot.slane %v6177, 2
  %v6242 = vsel %vm3363, %v6235, %v6241
  %v6243 = vrot.slane %v6178, 2
  %v6244 = vsel %vm3363, %v6237, %v6243
  %v6245 = vrot.slane %v6179, 2
  %v6246 = vsel %vm3363, %v6239, %v6245
  %v6247 = vrot.slane %v6180, 2
  %v6248 = vsel %vm3363, %v6241, %v6247
  %v6249 = vrot.slane %v6181, 2
  %v6250 = vsel %vm3363, %v6243, %v6249
  %v6251 = vrot.slane %v6182, 2
  %v6252 = vsel %vm3363, %v6245, %v6251
  %v6253 = vrot.slane %v6183, 2
  %v6254 = vsel %vm3363, %v6247, %v6253
  %v6255 = vrot.slane %v6184, 2
  %v6256 = vsel %vm3363, %v6249, %v6255
  %v6257 = vrot.slane %v6185, 2
  %v6258 = vsel %vm3363, %v6251, %v6257
  %v6259 = vrot.slane %v6186, 2
  %v6260 = vsel %vm3363, %v6253, %v6259
  %v6261 = vrot.slane %v6187, 2
  %v6262 = vsel %vm3363, %v6255, %v6261
  %v6263 = vrot.slane %v6188, 2
  %v6264 = vsel %vm3363, %v6257, %v6263
  %v6265 = vrot.slane %v6189, 2
  %v6266 = vsel %vm3363, %v6259, %v6265
  %v6267 = vrot.slane %v6190, 2
  %v6268 = vsel %vm3363, %v6261, %v6267
  %v6293 = vadd.f32 %v6113, %v6220
  %v6294 = vadd.f32 %v6114, %v6223
  %v6295 = vadd.f32 %v6115, %v6226
  %v6296 = vadd.f32 %v6116, %v6228
  %v6297 = vadd.f32 %v6117, %v6230
  %v6298 = vadd.f32 %v6118, %v6232
  %v6299 = vadd.f32 %v6119, %v6234
  %v6300 = vadd.f32 %v6120, %v6236
  %v6301 = vadd.f32 %v6121, %v6238
  %v6302 = vadd.f32 %v6122, %v6240
  %v6303 = vadd.f32 %v6123, %v6242
  %v6304 = vadd.f32 %v6124, %v6244
  %v6305 = vadd.f32 %v6125, %v6246
  %v6306 = vadd.f32 %v6126, %v6248
  %v6307 = vadd.f32 %v6127, %v6250
  %v6308 = vadd.f32 %v6128, %v6252
  %v6309 = vadd.f32 %v6129, %v6254
  %v6310 = vadd.f32 %v6130, %v6256
  %v6311 = vadd.f32 %v6131, %v6258
  %v6312 = vadd.f32 %v6132, %v6260
  %v6313 = vadd.f32 %v6133, %v6262
  %v6314 = vadd.f32 %v6134, %v6264
  %v6315 = vadd.f32 %v6135, %v6266
  %v6316 = vadd.f32 %v6136, %v6268
  %v6317 = vld [vmem:[#allocation2 + $0x30] sm:$0xf8]
  %v6318 = vld [vmem:[#allocation2 + $0x38] sm:$0xf8]
  %v6319 = vld [vmem:[#allocation2 + $0x40] sm:$0xf8]
  %v6320 = vld [vmem:[#allocation2 + $0xf0] sm:$0x7]
  %v6321 = vld [vmem:[#allocation2 + $0xf8] sm:$0x7]
  %v6322 = vld [vmem:[#allocation2 + $0x100] sm:$0x7]
  %s6323 = scalar_lea.vmem %s6, 54
  %v6324 = vld [vmem:[%s6323] ss:$8 sm:$0x7]
  %v6326 = vlaneseq
  %v6327 = vshrl.u32 %v6326, 7
  %v6328 = vsub.s32 0, %v6327
  %v6329 = vrot.slane %v6324, %v6328
  %v6330 = vlaneseq
  %v6331 = vshrl.u32 %v6330, 7
  %v6332 = vsub.s32 1, %v6331
  %v6333 = vrot.slane %v6324, %v6332
  %v6334 = vlaneseq
  %v6335 = vshrl.u32 %v6334, 7
  %v6336 = vsub.s32 2, %v6335
  %v6337 = vrot.slane %v6324, %v6336
  %v6341 = vmul.f32 %v6317, %v6329
  %v6342 = vmul.f32 %v6318, %v6333
  %v6343 = vmul.f32 %v6319, %v6337
  %v6344 = vmul.f32 %v2760, %v6329
  %v6345 = vmul.f32 %v2761, %v6333
  %v6346 = vmul.f32 %v2762, %v6337
  %v6347 = vmul.f32 %v2763, %v6329
  %v6348 = vmul.f32 %v2764, %v6333
  %v6349 = vmul.f32 %v2765, %v6337
  %v6350 = vmul.f32 %v2766, %v6329
  %v6351 = vmul.f32 %v2767, %v6333
  %v6352 = vmul.f32 %v2768, %v6337
  %v6353 = vmul.f32 %v2769, %v6329
  %v6354 = vmul.f32 %v2770, %v6333
  %v6355 = vmul.f32 %v2771, %v6337
  %v6356 = vmul.f32 %v2772, %v6329
  %v6357 = vmul.f32 %v2773, %v6333
  %v6358 = vmul.f32 %v2774, %v6337
  %v6359 = vmul.f32 %v4177, %v6329
  %v6360 = vmul.f32 %v4178, %v6333
  %v6361 = vmul.f32 %v4179, %v6337
  %v6362 = vmul.f32 %v5960, %v6329
  %v6363 = vmul.f32 %v5961, %v6333
  %v6364 = vmul.f32 %v5962, %v6337
  %v6365 = vmul.f32 %v6320, %v6329
  %v6366 = vmul.f32 %v6321, %v6333
  %v6367 = vmul.f32 %v6322, %v6337
  %v6395 = vrot.slane %v6341, 3
  %v6396 = vrot.slane %v6344, 3
  %v6397 = vsel %vm4966, %v6395, %v6396
  %v6398 = vrot.slane %v6342, 3
  %v6399 = vrot.slane %v6345, 3
  %v6400 = vsel %vm4966, %v6398, %v6399
  %v6401 = vrot.slane %v6343, 3
  %v6402 = vrot.slane %v6346, 3
  %v6403 = vsel %vm4966, %v6401, %v6402
  %v6404 = vrot.slane %v6347, 3
  %v6405 = vsel %vm4966, %v6396, %v6404
  %v6406 = vrot.slane %v6348, 3
  %v6407 = vsel %vm4966, %v6399, %v6406
  %v6408 = vrot.slane %v6349, 3
  %v6409 = vsel %vm4966, %v6402, %v6408
  %v6410 = vrot.slane %v6350, 3
  %v6411 = vsel %vm4966, %v6404, %v6410
  %v6412 = vrot.slane %v6351, 3
  %v6413 = vsel %vm4966, %v6406, %v6412
  %v6414 = vrot.slane %v6352, 3
  %v6415 = vsel %vm4966, %v6408, %v6414
  %v6416 = vrot.slane %v6353, 3
  %v6417 = vsel %vm4966, %v6410, %v6416
  %v6418 = vrot.slane %v6354, 3
  %v6419 = vsel %vm4966, %v6412, %v6418
  %v6420 = vrot.slane %v6355, 3
  %v6421 = vsel %vm4966, %v6414, %v6420
  %v6422 = vrot.slane %v6356, 3
  %v6423 = vsel %vm4966, %v6416, %v6422
  %v6424 = vrot.slane %v6357, 3
  %v6425 = vsel %vm4966, %v6418, %v6424
  %v6426 = vrot.slane %v6358, 3
  %v6427 = vsel %vm4966, %v6420, %v6426
  %v6428 = vrot.slane %v6359, 3
  %v6429 = vsel %vm4966, %v6422, %v6428
  %v6430 = vrot.slane %v6360, 3
  %v6431 = vsel %vm4966, %v6424, %v6430
  %v6432 = vrot.slane %v6361, 3
  %v6433 = vsel %vm4966, %v6426, %v6432
  %v6434 = vrot.slane %v6362, 3
  %v6435 = vsel %vm4966, %v6428, %v6434
  %v6436 = vrot.slane %v6363, 3
  %v6437 = vsel %vm4966, %v6430, %v6436
  %v6438 = vrot.slane %v6364, 3
  %v6439 = vsel %vm4966, %v6432, %v6438
  %v6440 = vrot.slane %v6365, 3
  %v6441 = vsel %vm4966, %v6434, %v6440
  %v6442 = vrot.slane %v6366, 3
  %v6443 = vsel %vm4966, %v6436, %v6442
  %v6444 = vrot.slane %v6367, 3
  %v6445 = vsel %vm4966, %v6438, %v6444
  %v6470 = vadd.f32 %v6293, %v6397
  %v6471 = vadd.f32 %v6294, %v6400
  %v6472 = vadd.f32 %v6295, %v6403
  %v6473 = vadd.f32 %v6296, %v6405
  %v6474 = vadd.f32 %v6297, %v6407
  %v6475 = vadd.f32 %v6298, %v6409
  %v6476 = vadd.f32 %v6299, %v6411
  %v6477 = vadd.f32 %v6300, %v6413
  %v6478 = vadd.f32 %v6301, %v6415
  %v6479 = vadd.f32 %v6302, %v6417
  %v6480 = vadd.f32 %v6303, %v6419
  %v6481 = vadd.f32 %v6304, %v6421
  %v6482 = vadd.f32 %v6305, %v6423
  %v6483 = vadd.f32 %v6306, %v6425
  %v6484 = vadd.f32 %v6307, %v6427
  %v6485 = vadd.f32 %v6308, %v6429
  %v6486 = vadd.f32 %v6309, %v6431
  %v6487 = vadd.f32 %v6310, %v6433
  %v6488 = vadd.f32 %v6311, %v6435
  %v6489 = vadd.f32 %v6312, %v6437
  %v6490 = vadd.f32 %v6313, %v6439
  %v6491 = vadd.f32 %v6314, %v6441
  %v6492 = vadd.f32 %v6315, %v6443
  %v6493 = vadd.f32 %v6316, %v6445
  %v6494 = vld [vmem:[#allocation2 + $0x138] sm:$0xf8]
  %v6495 = vld [vmem:[#allocation2 + $0x140] sm:$0xf8]
  %v6496 = vld [vmem:[#allocation2 + $0x148] sm:$0xf8]
  %v6497 = vld [vmem:[#allocation2 + $0x1f8] sm:$0x7]
  %v6498 = vld [vmem:[#allocation2 + $0x200] sm:$0x7]
  %v6499 = vld [vmem:[#allocation2 + $0x208] sm:$0x7]
  %s6500 = scalar_lea.vmem %s6, 55
  %v6501 = vld [vmem:[%s6500] ss:$8 sm:$0x7]
  %v6503 = vlaneseq
  %v6504 = vshrl.u32 %v6503, 7
  %v6505 = vsub.s32 0, %v6504
  %v6506 = vrot.slane %v6501, %v6505
  %v6507 = vlaneseq
  %v6508 = vshrl.u32 %v6507, 7
  %v6509 = vsub.s32 1, %v6508
  %v6510 = vrot.slane %v6501, %v6509
  %v6511 = vlaneseq
  %v6512 = vshrl.u32 %v6511, 7
  %v6513 = vsub.s32 2, %v6512
  %v6514 = vrot.slane %v6501, %v6513
  %v6518 = vmul.f32 %v6494, %v6506
  %v6519 = vmul.f32 %v6495, %v6510
  %v6520 = vmul.f32 %v6496, %v6514
  %v6521 = vmul.f32 %v2849, %v6506
  %v6522 = vmul.f32 %v2850, %v6510
  %v6523 = vmul.f32 %v2851, %v6514
  %v6524 = vmul.f32 %v2852, %v6506
  %v6525 = vmul.f32 %v2853, %v6510
  %v6526 = vmul.f32 %v2854, %v6514
  %v6527 = vmul.f32 %v2855, %v6506
  %v6528 = vmul.f32 %v2856, %v6510
  %v6529 = vmul.f32 %v2857, %v6514
  %v6530 = vmul.f32 %v2858, %v6506
  %v6531 = vmul.f32 %v2859, %v6510
  %v6532 = vmul.f32 %v2860, %v6514
  %v6533 = vmul.f32 %v2861, %v6506
  %v6534 = vmul.f32 %v2862, %v6510
  %v6535 = vmul.f32 %v2863, %v6514
  %v6536 = vmul.f32 %v4357, %v6506
  %v6537 = vmul.f32 %v4358, %v6510
  %v6538 = vmul.f32 %v4359, %v6514
  %v6539 = vmul.f32 %v6140, %v6506
  %v6540 = vmul.f32 %v6141, %v6510
  %v6541 = vmul.f32 %v6142, %v6514
  %v6542 = vmul.f32 %v6497, %v6506
  %v6543 = vmul.f32 %v6498, %v6510
  %v6544 = vmul.f32 %v6499, %v6514
  %v6572 = vrot.slane %v6518, 3
  %v6573 = vrot.slane %v6521, 3
  %v6574 = vsel %vm4966, %v6572, %v6573
  %v6575 = vrot.slane %v6519, 3
  %v6576 = vrot.slane %v6522, 3
  %v6577 = vsel %vm4966, %v6575, %v6576
  %v6578 = vrot.slane %v6520, 3
  %v6579 = vrot.slane %v6523, 3
  %v6580 = vsel %vm4966, %v6578, %v6579
  %v6581 = vrot.slane %v6524, 3
  %v6582 = vsel %vm4966, %v6573, %v6581
  %v6583 = vrot.slane %v6525, 3
  %v6584 = vsel %vm4966, %v6576, %v6583
  %v6585 = vrot.slane %v6526, 3
  %v6586 = vsel %vm4966, %v6579, %v6585
  %v6587 = vrot.slane %v6527, 3
  %v6588 = vsel %vm4966, %v6581, %v6587
  %v6589 = vrot.slane %v6528, 3
  %v6590 = vsel %vm4966, %v6583, %v6589
  %v6591 = vrot.slane %v6529, 3
  %v6592 = vsel %vm4966, %v6585, %v6591
  %v6593 = vrot.slane %v6530, 3
  %v6594 = vsel %vm4966, %v6587, %v6593
  %v6595 = vrot.slane %v6531, 3
  %v6596 = vsel %vm4966, %v6589, %v6595
  %v6597 = vrot.slane %v6532, 3
  %v6598 = vsel %vm4966, %v6591, %v6597
  %v6599 = vrot.slane %v6533, 3
  %v6600 = vsel %vm4966, %v6593, %v6599
  %v6601 = vrot.slane %v6534, 3
  %v6602 = vsel %vm4966, %v6595, %v6601
  %v6603 = vrot.slane %v6535, 3
  %v6604 = vsel %vm4966, %v6597, %v6603
  %v6605 = vrot.slane %v6536, 3
  %v6606 = vsel %vm4966, %v6599, %v6605
  %v6607 = vrot.slane %v6537, 3
  %v6608 = vsel %vm4966, %v6601, %v6607
  %v6609 = vrot.slane %v6538, 3
  %v6610 = vsel %vm4966, %v6603, %v6609
  %v6611 = vrot.slane %v6539, 3
  %v6612 = vsel %vm4966, %v6605, %v6611
  %v6613 = vrot.slane %v6540, 3
  %v6614 = vsel %vm4966, %v6607, %v6613
  %v6615 = vrot.slane %v6541, 3
  %v6616 = vsel %vm4966, %v6609, %v6615
  %v6617 = vrot.slane %v6542, 3
  %v6618 = vsel %vm4966, %v6611, %v6617
  %v6619 = vrot.slane %v6543, 3
  %v6620 = vsel %vm4966, %v6613, %v6619
  %v6621 = vrot.slane %v6544, 3
  %v6622 = vsel %vm4966, %v6615, %v6621
  %v6647 = vadd.f32 %v6470, %v6574
  %v6648 = vadd.f32 %v6471, %v6577
  %v6649 = vadd.f32 %v6472, %v6580
  %v6650 = vadd.f32 %v6473, %v6582
  %v6651 = vadd.f32 %v6474, %v6584
  %v6652 = vadd.f32 %v6475, %v6586
  %v6653 = vadd.f32 %v6476, %v6588
  %v6654 = vadd.f32 %v6477, %v6590
  %v6655 = vadd.f32 %v6478, %v6592
  %v6656 = vadd.f32 %v6479, %v6594
  %v6657 = vadd.f32 %v6480, %v6596
  %v6658 = vadd.f32 %v6481, %v6598
  %v6659 = vadd.f32 %v6482, %v6600
  %v6660 = vadd.f32 %v6483, %v6602
  %v6661 = vadd.f32 %v6484, %v6604
  %v6662 = vadd.f32 %v6485, %v6606
  %v6663 = vadd.f32 %v6486, %v6608
  %v6664 = vadd.f32 %v6487, %v6610
  %v6665 = vadd.f32 %v6488, %v6612
  %v6666 = vadd.f32 %v6489, %v6614
  %v6667 = vadd.f32 %v6490, %v6616
  %v6668 = vadd.f32 %v6491, %v6618
  %v6669 = vadd.f32 %v6492, %v6620
  %v6670 = vadd.f32 %v6493, %v6622
  %v6671 = vld [vmem:[#allocation2 + $0x30] sm:$0xf0]
  %v6672 = vld [vmem:[#allocation2 + $0x38] sm:$0xf0]
  %v6673 = vld [vmem:[#allocation2 + $0x40] sm:$0xf0]
  %v6674 = vld [vmem:[#allocation2 + $0xf0] sm:$0xf]
  %v6675 = vld [vmem:[#allocation2 + $0xf8] sm:$0xf]
  %v6676 = vld [vmem:[#allocation2 + $0x100] sm:$0xf]
  %s6677 = scalar_lea.vmem %s6, 72
  %v6678 = vld [vmem:[%s6677] ss:$8 sm:$0x7]
  %v6680 = vlaneseq
  %v6681 = vshrl.u32 %v6680, 7
  %v6682 = vsub.s32 0, %v6681
  %v6683 = vrot.slane %v6678, %v6682
  %v6684 = vlaneseq
  %v6685 = vshrl.u32 %v6684, 7
  %v6686 = vsub.s32 1, %v6685
  %v6687 = vrot.slane %v6678, %v6686
  %v6688 = vlaneseq
  %v6689 = vshrl.u32 %v6688, 7
  %v6690 = vsub.s32 2, %v6689
  %v6691 = vrot.slane %v6678, %v6690
  %v6695 = vmul.f32 %v6671, %v6683
  %v6696 = vmul.f32 %v6672, %v6687
  %v6697 = vmul.f32 %v6673, %v6691
  %v6698 = vmul.f32 %v2760, %v6683
  %v6699 = vmul.f32 %v2761, %v6687
  %v6700 = vmul.f32 %v2762, %v6691
  %v6701 = vmul.f32 %v2763, %v6683
  %v6702 = vmul.f32 %v2764, %v6687
  %v6703 = vmul.f32 %v2765, %v6691
  %v6704 = vmul.f32 %v2766, %v6683
  %v6705 = vmul.f32 %v2767, %v6687
  %v6706 = vmul.f32 %v2768, %v6691
  %v6707 = vmul.f32 %v2769, %v6683
  %v6708 = vmul.f32 %v2770, %v6687
  %v6709 = vmul.f32 %v2771, %v6691
  %v6710 = vmul.f32 %v2772, %v6683
  %v6711 = vmul.f32 %v2773, %v6687
  %v6712 = vmul.f32 %v2774, %v6691
  %v6713 = vmul.f32 %v4177, %v6683
  %v6714 = vmul.f32 %v4178, %v6687
  %v6715 = vmul.f32 %v4179, %v6691
  %v6716 = vmul.f32 %v5960, %v6683
  %v6717 = vmul.f32 %v5961, %v6687
  %v6718 = vmul.f32 %v5962, %v6691
  %v6719 = vmul.f32 %v6674, %v6683
  %v6720 = vmul.f32 %v6675, %v6687
  %v6721 = vmul.f32 %v6676, %v6691
  %vm6749 = vcmask 1043456
  %v6750 = vrot.slane %v6695, 4
  %v6751 = vrot.slane %v6698, 4
  %v6752 = vsel %vm6749, %v6750, %v6751
  %v6753 = vrot.slane %v6696, 4
  %v6754 = vrot.slane %v6699, 4
  %v6755 = vsel %vm6749, %v6753, %v6754
  %v6756 = vrot.slane %v6697, 4
  %v6757 = vrot.slane %v6700, 4
  %v6758 = vsel %vm6749, %v6756, %v6757
  %v6759 = vrot.slane %v6701, 4
  %v6760 = vsel %vm6749, %v6751, %v6759
  %v6761 = vrot.slane %v6702, 4
  %v6762 = vsel %vm6749, %v6754, %v6761
  %v6763 = vrot.slane %v6703, 4
  %v6764 = vsel %vm6749, %v6757, %v6763
  %v6765 = vrot.slane %v6704, 4
  %v6766 = vsel %vm6749, %v6759, %v6765
  %v6767 = vrot.slane %v6705, 4
  %v6768 = vsel %vm6749, %v6761, %v6767
  %v6769 = vrot.slane %v6706, 4
  %v6770 = vsel %vm6749, %v6763, %v6769
  %v6771 = vrot.slane %v6707, 4
  %v6772 = vsel %vm6749, %v6765, %v6771
  %v6773 = vrot.slane %v6708, 4
  %v6774 = vsel %vm6749, %v6767, %v6773
  %v6775 = vrot.slane %v6709, 4
  %v6776 = vsel %vm6749, %v6769, %v6775
  %v6777 = vrot.slane %v6710, 4
  %v6778 = vsel %vm6749, %v6771, %v6777
  %v6779 = vrot.slane %v6711, 4
  %v6780 = vsel %vm6749, %v6773, %v6779
  %v6781 = vrot.slane %v6712, 4
  %v6782 = vsel %vm6749, %v6775, %v6781
  %v6783 = vrot.slane %v6713, 4
  %v6784 = vsel %vm6749, %v6777, %v6783
  %v6785 = vrot.slane %v6714, 4
  %v6786 = vsel %vm6749, %v6779, %v6785
  %v6787 = vrot.slane %v6715, 4
  %v6788 = vsel %vm6749, %v6781, %v6787
  %v6789 = vrot.slane %v6716, 4
  %v6790 = vsel %vm6749, %v6783, %v6789
  %v6791 = vrot.slane %v6717, 4
  %v6792 = vsel %vm6749, %v6785, %v6791
  %v6793 = vrot.slane %v6718, 4
  %v6794 = vsel %vm6749, %v6787, %v6793
  %v6795 = vrot.slane %v6719, 4
  %v6796 = vsel %vm6749, %v6789, %v6795
  %v6797 = vrot.slane %v6720, 4
  %v6798 = vsel %vm6749, %v6791, %v6797
  %v6799 = vrot.slane %v6721, 4
  %v6800 = vsel %vm6749, %v6793, %v6799
  %v6825 = vadd.f32 %v6647, %v6752
  %v6826 = vadd.f32 %v6648, %v6755
  %v6827 = vadd.f32 %v6649, %v6758
  %v6828 = vadd.f32 %v6650, %v6760
  %v6829 = vadd.f32 %v6651, %v6762
  %v6830 = vadd.f32 %v6652, %v6764
  %v6831 = vadd.f32 %v6653, %v6766
  %v6832 = vadd.f32 %v6654, %v6768
  %v6833 = vadd.f32 %v6655, %v6770
  %v6834 = vadd.f32 %v6656, %v6772
  %v6835 = vadd.f32 %v6657, %v6774
  %v6836 = vadd.f32 %v6658, %v6776
  %v6837 = vadd.f32 %v6659, %v6778
  %v6838 = vadd.f32 %v6660, %v6780
  %v6839 = vadd.f32 %v6661, %v6782
  %v6840 = vadd.f32 %v6662, %v6784
  %v6841 = vadd.f32 %v6663, %v6786
  %v6842 = vadd.f32 %v6664, %v6788
  %v6843 = vadd.f32 %v6665, %v6790
  %v6844 = vadd.f32 %v6666, %v6792
  %v6845 = vadd.f32 %v6667, %v6794
  %v6846 = vadd.f32 %v6668, %v6796
  %v6847 = vadd.f32 %v6669, %v6798
  %v6848 = vadd.f32 %v6670, %v6800
  %6849 = vst [vmem:[%s7] sm:$0xff] %v6825
  %6850 = vst [vmem:[%s7 + $0x8] sm:$0xff] %v6826
  %6851 = vst.msk [vmem:[%s7 + $0x10] sm:$0xff] %vm1296, %v6827
  %6852 = vst [vmem:[%s7 + $0x18] sm:$0xff] %v6828
  %6853 = vst [vmem:[%s7 + $0x20] sm:$0xff] %v6829
  %6854 = vst.msk [vmem:[%s7 + $0x28] sm:$0xff] %vm1296, %v6830
  %6855 = vst [vmem:[%s7 + $0x30] sm:$0xff] %v6831
  %6856 = vst [vmem:[%s7 + $0x38] sm:$0xff] %v6832
  %6857 = vst.msk [vmem:[%s7 + $0x40] sm:$0xff] %vm1296, %v6833
  %6858 = vst [vmem:[%s7 + $0x48] sm:$0xff] %v6834
  %6859 = vst [vmem:[%s7 + $0x50] sm:$0xff] %v6835
  %6860 = vst.msk [vmem:[%s7 + $0x58] sm:$0xff] %vm1296, %v6836
  %6861 = vst [vmem:[%s7 + $0x60] sm:$0xff] %v6837
  %6862 = vst [vmem:[%s7 + $0x68] sm:$0xff] %v6838
  %6863 = vst.msk [vmem:[%s7 + $0x70] sm:$0xff] %vm1296, %v6839
  %6864 = vst [vmem:[%s7 + $0x78] sm:$0xff] %v6840
  %6865 = vst [vmem:[%s7 + $0x80] sm:$0xff] %v6841
  %6866 = vst.msk [vmem:[%s7 + $0x88] sm:$0xff] %vm1296, %v6842
  %6867 = vst [vmem:[%s7 + $0x90] sm:$0xff] %v6843
  %6868 = vst [vmem:[%s7 + $0x98] sm:$0xff] %v6844
  %6869 = vst.msk [vmem:[%s7 + $0xa0] sm:$0xff] %vm1296, %v6845
  %6870 = vst [vmem:[%s7 + $0xa8] sm:$0xff] %v6846
  %6871 = vst [vmem:[%s7 + $0xb0] sm:$0xff] %v6847
  %6872 = vst.msk [vmem:[%s7 + $0xb8] sm:$0xff] %vm1296, %v6848
  // Predicated region
  $region30: #{model_forward.1} parent=0 // pred_check
    _
  $region31: #{model_forward.1} parent=0 // pred_check_branch
    %6874 = sbr.rel (0) target = $region33
  $region32: #{model_forward.1} parent=0 // pred_region
    _
  $region33: #{model_forward.1} parent=0 // pred_fallthru
    _
  // Predicated region
  $region34: #{model_forward.1} parent=0 // pred_check
    _
  $region35: #{model_forward.1} parent=0 // pred_check_branch
    %6876 = sbr.rel (0) target = $region37
  $region36: #{model_forward.1} parent=0 // pred_region
    _
  $region37: #{model_forward.1} parent=0 // pred_fallthru
    _

</llo_original>
